<compile_context>
chip_gen: v7x
topology: tpu7x:2x2x1
jax: 0.10.0
libtpu: 0.0.40
codegen_flags: <defaults>
</compile_context>

<pallas_src>
import numpy as np
import jax
import jax.numpy as jnp
from jax.experimental import pallas as pl
from jax.experimental.pallas import tpu as pltpu


_ICHUNK = 32   # i-values of the bilinear axis processed per MXU matmul chunk
_NACC = 4      # independent partial accumulators (breaks the serial VPU chain)


def bilinear_fusion_kernel(
    vcat_ref,      # (TB, dim1_og + dim2_og)                         f32
    wg_ref,        # (dim1_og + dim2_og, 2*(dim1+dim2))  [h1|h2|z1|z2]  bf16
    bg_ref,        # (1, 2*(dim1+dim2))                               f32
    wbd_ref,       # (dim1+dim2, dim1+dim2)   block-diag(wo1, wo2)    bf16
    bo_ref,        # (1, dim1+dim2)                                   f32
    wperm_ref,     # (dim2, dim1*256)         We1 core permuted       bf16
    wrc_ref,       # (dim1+dim2, 256)         We1 row/col correction  bf16
    be1_ref,       # (1, 256)                 be1 + We1[d1,d2,:]      f32
    w2_ref,        # (256, mmhid_pad)                                 bf16
    b2_ref,        # (1, mmhid_pad)                                   f32
    out_ref,       # (TB, mmhid_pad)
):
    f32, bf16 = jnp.float32, jnp.bfloat16
    x = vcat_ref[...].astype(bf16)                                    # MXU operand

    # --- fused gating: one matmul gives [h1|h2|z1|z2] ---
    hz = jnp.dot(x, wg_ref[...], preferred_element_type=f32) + bg_ref[...]
    dsum = wbd_ref.shape[0]                                           # dim1 + dim2
    h = jnp.maximum(hz[:, :dsum], 0.0)                                # relu([h1|h2])
    g = jax.nn.sigmoid(hz[:, dsum:]) * h                              # [g1|g2] (f32 VPU)

    # --- fused output projections (block-diagonal) -> o = [o1|o2] ---
    o = jnp.maximum(jnp.dot(g.astype(bf16), wbd_ref[...],
                            preferred_element_type=f32) + bo_ref[...], 0.0)

    # --- bilinear pooling + encoder1 ---
    # e1_pre = sum_{i<d1, j<d2} o1[i] o2[j] We1[i,j,:]              (chunked core)
    #        + sum_{i<d1} o1[i] We1[i,d2,:] + sum_{j<d2} o2[j] We1[d1,j,:]   (o @ wrc)
    #        + We1[d1,d2,:] + be1                                    (folded into be1_ref)
    d2 = wperm_ref.shape[0]
    d1 = dsum - d2
    n_enc = wrc_ref.shape[1]                                          # 256
    o_bf = o.astype(bf16)
    o2_bf = o_bf[:, d1:]

    base_acc = jnp.dot(o_bf, wrc_ref[...], preferred_element_type=f32) + be1_ref[...]

    # Chunked core: never materialize the full (TB, d1*256) intermediate; rotating
    # partial accumulators keep the FMA reduction off a single serial VPU chain.
    parts = [base_acc] + [jnp.zeros_like(base_acc) for _ in range(_NACC - 1)]
    chunk = min(_ICHUNK, d1)
    for base in range(0, d1, chunk):
        cs = min(chunk, d1 - base)
        t_chunk = jnp.dot(o2_bf, wperm_ref[:, base * n_enc:(base + cs) * n_enc],
                          preferred_element_type=f32)                 # (TB, cs*256)
        for i in range(cs):
            # Static, 256-aligned lane slices (no dynamic lane extracts); the per-i
            # lane broadcast is XLU work with slack next to the MXU matmuls.
            j = (base + i) % _NACC
            parts[j] = parts[j] + o[:, base + i:base + i + 1] * \
                t_chunk[:, i * n_enc:(i + 1) * n_enc]
    acc = parts[0]
    for j in range(1, _NACC):
        acc = acc + parts[j]
    e1 = jnp.maximum(acc, 0.0)                                        # (TB, 256)

    # --- encoder2 (skip=0): lane-dense padded output ---
    out = jnp.maximum(jnp.dot(e1.astype(bf16), w2_ref[...],
                              preferred_element_type=f32) + b2_ref[...], 0.0)
    out_ref[...] = out.astype(out_ref.dtype)


def _round_up(x, m):
    return ((x + m - 1) // m) * m


def pack_params(p):
    """Host-side weight packing. Call ONCE at load time (hoisted out of the forward)."""
    f32, bf16 = jnp.float32, jnp.bfloat16
    D1, d1 = p["wh1"].shape
    D2, d2 = p["wh2"].shape
    n_enc, mmhid = p["we2"].shape
    mm_pad = _round_up(mmhid, 128)

    # Gating pack: columns [h1 | h2 | z1 | z2]; h-weights zero-padded over the other
    # modality's rows so a single vcat @ W_gate reproduces vec1@wh1 / vec2@wh2 exactly.
    wh1_pad = jnp.concatenate([p["wh1"], jnp.zeros((D2, d1), f32)], axis=0)
    wh2_pad = jnp.concatenate([jnp.zeros((D1, d2), f32), p["wh2"]], axis=0)
    w_gate = jnp.concatenate([wh1_pad, wh2_pad, p["wz1"], p["wz2"]], axis=1).astype(bf16)
    b_gate = jnp.concatenate([p["bh1"], p["bh2"], p["bz1"], p["bz2"]], axis=1)

    # Block-diagonal output projection on [g1|g2].
    w_bd = (jnp.zeros((d1 + d2, d1 + d2), f32)
            .at[:d1, :d1].set(p["wo1"])
            .at[d1:, d1:].set(p["wo2"])).astype(bf16)
    b_o = jnp.concatenate([p["bo1"], p["bo2"]], axis=1)

    # Bilinear weights: We1 (d1+1, d2+1, 256).
    we1 = p["we1"]
    # TODO(synk): on v5e/v6e this stream could be int8 + per-column scale (v7x MXU has
    # no integer datapath, so keep bf16 there).
    w_perm = jnp.transpose(we1[:d1, :d2, :], (1, 0, 2)).reshape(d2, d1 * n_enc).astype(bf16)
    w_rowcol = jnp.concatenate([we1[:d1, d2, :], we1[d1, :d2, :]], axis=0).astype(bf16)
    b_e1 = p["be1"] + we1[d1, d2, :][None, :]            # constant-1 row/col term (f32)

    # Lane-dense encoder2 output (pad mmhid -> multiple of 128, sliced off outside).
    w2 = jnp.pad(p["we2"], ((0, 0), (0, mm_pad - mmhid))).astype(bf16)
    b2 = jnp.pad(p["be2"], ((0, 0), (0, mm_pad - mmhid)))

    return {"weights": (w_gate, b_gate, w_bd, b_o, w_perm, w_rowcol, b_e1, w2, b2),
            "mmhid": int(mmhid)}


def _vmem_limit_bytes():
    # ~85% of per-core VMEM: ~54 MiB on v7x (64 MiB/TC), ~109 MiB on v5e/v6e (128 MiB).
    try:
        cap = int(pltpu.get_tpu_info().vmem_capacity_bytes)
    except Exception:
        cap = 128 * 1024 * 1024
    return int(cap * 0.85)


def bilinear_fusion(vec1, vec2, packed, *, block_b=128):
    """packed = pack_params(params), computed once at load time (not per forward)."""
    weights = packed["weights"]
    mmhid = packed["mmhid"]
    mm_pad = weights[-1].shape[1]

    # vcat precomputed in the wrapper -> no lane-axis concat inside the kernel.
    vcat = jnp.concatenate([vec1.astype(jnp.float32),
                            vec2.astype(jnp.float32)], axis=1)
    B, D = vcat.shape

    # Batch tiling: >= 8 sublanes; prefer >= 2 grid steps so the "parallel" axis can
    # feed both v7x TensorCores (at tiny batch the one-time weight load dominates and
    # a single step is fine).  v6e (128 MiB VMEM) can pass block_b=256.
    TB = min(block_b, _round_up(B, 8))
    if B > 8:
        TB = min(TB, _round_up((B + 1) // 2, 8))
    Bp = _round_up(B, TB)
    if Bp != B:
        vcat = jnp.pad(vcat, ((0, Bp - B), (0, 0)))

    # Constant-index weights: single-buffered so e.g. the bf16 We1 core is not
    # duplicated by the default double-buffering.
    # TODO(synk): at real MCAT dims on v7x, if residency is still tight, add an inner
    # "arbitrary" grid axis over i-chunks of wperm instead of keeping it resident.
    def weight_spec(w):
        return pl.BlockSpec(w.shape, lambda i: (0, 0), pipeline_mode=pl.Buffered(1))

    out = pl.pallas_call(
        bilinear_fusion_kernel,
        out_shape=jax.ShapeDtypeStruct((Bp, mm_pad), vec1.dtype),
        grid=(Bp // TB,),
        in_specs=[pl.BlockSpec((TB, D), lambda i: (i, 0))]
                 + [weight_spec(w) for w in weights],
        out_specs=pl.BlockSpec((TB, mm_pad), lambda i: (i, 0)),
        compiler_params=pltpu.CompilerParams(
            dimension_semantics=("parallel",),      # megacore / 2-TC split on v7x
            vmem_limit_bytes=_vmem_limit_bytes(),
        ),
    )(vcat, *weights)

    return out[:B, :mmhid]


def _linear_init(key, fan_in, fan_out):
    """PyTorch nn.Linear default init; weight returned pre-transposed (in, out)."""
    kw, kb = jax.random.split(key)
    bound = 1.0 / np.sqrt(fan_in)
    w = jax.random.uniform(kw, (fan_in, fan_out), jnp.float32, -bound, bound)
    b = jax.random.uniform(kb, (1, fan_out), jnp.float32, -bound, bound)
    return w, b


def init_params(key, dim1_og, dim2_og, scale_dim1=1, scale_dim2=1, mmhid=64):
    dim1, dim2 = dim1_og // scale_dim1, dim2_og // scale_dim2
    keys = jax.random.split(key, 8)
    p = {}
    p["wh1"], p["bh1"] = _linear_init(keys[0], dim1_og, dim1)
    p["wz1"], p["bz1"] = _linear_init(keys[1], dim1_og + dim2_og, dim1)
    p["wo1"], p["bo1"] = _linear_init(keys[2], dim1, dim1)
    p["wh2"], p["bh2"] = _linear_init(keys[3], dim2_og, dim2)
    p["wz2"], p["bz2"] = _linear_init(keys[4], dim1_og + dim2_og, dim2)
    p["wo2"], p["bo2"] = _linear_init(keys[5], dim2, dim2)
    we1_flat, p["be1"] = _linear_init(keys[6], (dim1 + 1) * (dim2 + 1), 256)
    p["we1"] = we1_flat.reshape(dim1 + 1, dim2 + 1, 256)   # [i, j, k]
    p["we2"], p["be2"] = _linear_init(keys[7], 256, mmhid)  # skip=0 -> in = 256
    return p


def reference(vec1, vec2, p):
    """Pure-JAX reference of BilinearFusion.forward (eval mode, defaults)."""
    relu, sig = jax.nn.relu, jax.nn.sigmoid
    vcat = jnp.concatenate([vec1, vec2], axis=1)
    h1 = relu(vec1 @ p["wh1"] + p["bh1"])
    z1 = vcat @ p["wz1"] + p["bz1"]
    o1 = relu((sig(z1) * h1) @ p["wo1"] + p["bo1"])
    h2 = relu(vec2 @ p["wh2"] + p["bh2"])
    z2 = vcat @ p["wz2"] + p["bz2"]
    o2 = relu((sig(z2) * h2) @ p["wo2"] + p["bo2"])
    B = vec1.shape[0]
    ones = jnp.ones((B, 1), vec1.dtype)
    o1p = jnp.concatenate([o1, ones], axis=1)
    o2p = jnp.concatenate([o2, ones], axis=1)
    o12 = (o1p[:, :, None] * o2p[:, None, :]).reshape(B, -1)
    e1 = relu(o12 @ p["we1"].reshape(-1, 256) + p["be1"])
    return relu(e1 @ p["we2"] + p["be2"])


if __name__ == "__main__":
    # Small synthetic shapes: batch=2, dim1=dim2=32, mmhid=64.
    B, DIM1, DIM2, MMHID = 2, 32, 32, 64
    key = jax.random.PRNGKey(0)
    k1, k2, kp = jax.random.split(key, 3)
    vec1 = jax.random.normal(k1, (B, DIM1), jnp.float32)
    vec2 = jax.random.normal(k2, (B, DIM2), jnp.float32)
    params = init_params(kp, DIM1, DIM2, mmhid=MMHID)

    # Weight packing is hoisted out of the per-call path: done once at "load time".
    packed = pack_params(params)
    packed["weights"] = tuple(jax.block_until_ready(w) for w in packed["weights"])

    out = jax.block_until_ready(bilinear_fusion(vec1, vec2, packed))

    ref = jax.block_until_ready(reference(vec1, vec2, params))
    # bf16 weight storage on the MXU path -> relaxed tolerance vs the f32 reference.
    np.testing.assert_allclose(np.asarray(out), np.asarray(ref), rtol=1e-2, atol=1e-2)

    print("KERNEL_OK")
</pallas_src>

<mosaic_0001>
module attributes {stable_mosaic.version = 11 : i64} {
  func.func @bilinear_fusion_kernel(%arg0: i32, %arg1: memref<8x64xf32, #tpu.memory_space<vmem>>, %arg2: memref<64x128xbf16, #tpu.memory_space<vmem>>, %arg3: memref<1x128xf32, #tpu.memory_space<vmem>>, %arg4: memref<64x64xbf16, #tpu.memory_space<vmem>>, %arg5: memref<1x64xf32, #tpu.memory_space<vmem>>, %arg6: memref<32x8192xbf16, #tpu.memory_space<vmem>>, %arg7: memref<64x256xbf16, #tpu.memory_space<vmem>>, %arg8: memref<1x256xf32, #tpu.memory_space<vmem>>, %arg9: memref<256x128xbf16, #tpu.memory_space<vmem>>, %arg10: memref<1x128xf32, #tpu.memory_space<vmem>>, %arg11: memref<8x128xf32, #tpu.memory_space<vmem>>) attributes {dimension_semantics = [#tpu.dimension_semantics<parallel>], iteration_bounds = array<i64: 1>, scalar_prefetch = 0 : i64, scratch_operands = 0 : i64, tpu.core_type = #tpu.core_type<tc>, window_params = [{transform_indices = @transform_0, window_bounds = array<i64: 8, 64>}, {pipeline_mode = #tpu.pipeline_mode<synchronous>, transform_indices = @transform_1, window_bounds = array<i64: 64, 128>}, {pipeline_mode = #tpu.pipeline_mode<synchronous>, transform_indices = @transform_2, window_bounds = array<i64: 1, 128>}, {pipeline_mode = #tpu.pipeline_mode<synchronous>, transform_indices = @transform_3, window_bounds = array<i64: 64, 64>}, {pipeline_mode = #tpu.pipeline_mode<synchronous>, transform_indices = @transform_4, window_bounds = array<i64: 1, 64>}, {pipeline_mode = #tpu.pipeline_mode<synchronous>, transform_indices = @transform_5, window_bounds = array<i64: 32, 8192>}, {pipeline_mode = #tpu.pipeline_mode<synchronous>, transform_indices = @transform_6, window_bounds = array<i64: 64, 256>}, {pipeline_mode = #tpu.pipeline_mode<synchronous>, transform_indices = @transform_7, window_bounds = array<i64: 1, 256>}, {pipeline_mode = #tpu.pipeline_mode<synchronous>, transform_indices = @transform_8, window_bounds = array<i64: 256, 128>}, {pipeline_mode = #tpu.pipeline_mode<synchronous>, transform_indices = @transform_9, window_bounds = array<i64: 1, 128>}, {transform_indices = @transform_10, window_bounds = array<i64: 8, 128>}]} {
    %c0 = arith.constant 0 : index
    %c0_0 = arith.constant 0 : index
    %0 = vector.load %arg1[%c0, %c0_0] : memref<8x64xf32, #tpu.memory_space<vmem>>, vector<8x64xf32>
    %1 = arith.truncf %0 : vector<8x64xf32> to vector<8x64xbf16>
    %c0_1 = arith.constant 0 : index
    %c0_2 = arith.constant 0 : index
    %2 = vector.load %arg2[%c0_1, %c0_2] : memref<64x128xbf16, #tpu.memory_space<vmem>>, vector<64x128xbf16>
    %cst = arith.constant dense<0.000000e+00> : vector<8x128xf32>
    %3 = tpu.matmul %1, %2, %cst {dimension_numbers = #tpu.dot_dimension_numbers<[1], [0], [0], [1], [0, 0, 1, 1], [], []>} : vector<8x64xbf16>, vector<64x128xbf16>, vector<8x128xf32> -> vector<8x128xf32>
    %c0_3 = arith.constant 0 : index
    %c0_4 = arith.constant 0 : index
    %4 = vector.load %arg3[%c0_3, %c0_4] : memref<1x128xf32, #tpu.memory_space<vmem>>, vector<1x128xf32>
    %5 = vector.broadcast %4 : vector<1x128xf32> to vector<8x128xf32>
    %6 = arith.addf %3, %5 : vector<8x128xf32>
    %7 = vector.extract_strided_slice %6 {offsets = [0, 0], sizes = [8, 64], strides = [1, 1]} : vector<8x128xf32> to vector<8x64xf32>
    %cst_5 = arith.constant 0.000000e+00 : f32
    %8 = vector.broadcast %cst_5 : f32 to vector<8x64xf32>
    %9 = arith.maximumf %7, %8 : vector<8x64xf32>
    %10 = vector.extract_strided_slice %6 {offsets = [0, 64], sizes = [8, 64], strides = [1, 1]} : vector<8x128xf32> to vector<8x64xf32>
    %11 = arith.negf %10 : vector<8x64xf32>
    %12 = math.exp %11 : vector<8x64xf32>
    %cst_6 = arith.constant 1.000000e+00 : f32
    %13 = vector.broadcast %cst_6 : f32 to vector<8x64xf32>
    %14 = arith.addf %13, %12 : vector<8x64xf32>
    %15 = arith.divf %13, %14 : vector<8x64xf32>
    %16 = arith.mulf %15, %9 : vector<8x64xf32>
    %17 = arith.truncf %16 : vector<8x64xf32> to vector<8x64xbf16>
    %c0_7 = arith.constant 0 : index
    %c0_8 = arith.constant 0 : index
    %18 = vector.load %arg4[%c0_7, %c0_8] : memref<64x64xbf16, #tpu.memory_space<vmem>>, vector<64x64xbf16>
    %cst_9 = arith.constant dense<0.000000e+00> : vector<8x64xf32>
    %19 = tpu.matmul %17, %18, %cst_9 {dimension_numbers = #tpu.dot_dimension_numbers<[1], [0], [0], [1], [0, 0, 1, 1], [], []>} : vector<8x64xbf16>, vector<64x64xbf16>, vector<8x64xf32> -> vector<8x64xf32>
    %c0_10 = arith.constant 0 : index
    %c0_11 = arith.constant 0 : index
    %20 = vector.load %arg5[%c0_10, %c0_11] : memref<1x64xf32, #tpu.memory_space<vmem>>, vector<1x64xf32>
    %21 = vector.broadcast %20 : vector<1x64xf32> to vector<8x64xf32>
    %22 = arith.addf %19, %21 : vector<8x64xf32>
    %cst_12 = arith.constant 0.000000e+00 : f32
    %23 = vector.broadcast %cst_12 : f32 to vector<8x64xf32>
    %24 = arith.maximumf %22, %23 : vector<8x64xf32>
    %25 = arith.truncf %24 : vector<8x64xf32> to vector<8x64xbf16>
    %26 = vector.extract_strided_slice %25 {offsets = [0, 32], sizes = [8, 32], strides = [1, 1]} : vector<8x64xbf16> to vector<8x32xbf16>
    %c0_13 = arith.constant 0 : index
    %c0_14 = arith.constant 0 : index
    %27 = vector.load %arg7[%c0_13, %c0_14] : memref<64x256xbf16, #tpu.memory_space<vmem>>, vector<64x256xbf16>
    %cst_15 = arith.constant dense<0.000000e+00> : vector<8x256xf32>
    %28 = tpu.matmul %25, %27, %cst_15 {dimension_numbers = #tpu.dot_dimension_numbers<[1], [0], [0], [1], [0, 0, 1, 1], [], []>} : vector<8x64xbf16>, vector<64x256xbf16>, vector<8x256xf32> -> vector<8x256xf32>
    %c0_16 = arith.constant 0 : index
    %c0_17 = arith.constant 0 : index
    %29 = vector.load %arg8[%c0_16, %c0_17] : memref<1x256xf32, #tpu.memory_space<vmem>>, vector<1x256xf32>
    %30 = vector.broadcast %29 : vector<1x256xf32> to vector<8x256xf32>
    %31 = arith.addf %28, %30 : vector<8x256xf32>
    %cst_18 = arith.constant 0.000000e+00 : f32
    %32 = vector.broadcast %cst_18 : f32 to vector<8x256xf32>
    %cst_19 = arith.constant 0.000000e+00 : f32
    %33 = vector.broadcast %cst_19 : f32 to vector<8x256xf32>
    %cst_20 = arith.constant 0.000000e+00 : f32
    %34 = vector.broadcast %cst_20 : f32 to vector<8x256xf32>
    %c0_21 = arith.constant 0 : index
    %c0_22 = arith.constant 0 : index
    %35 = vector.load %arg6[%c0_21, %c0_22] : memref<32x8192xbf16, #tpu.memory_space<vmem>>, vector<32x8192xbf16>
    %cst_23 = arith.constant dense<0.000000e+00> : vector<8x8192xf32>
    %36 = tpu.matmul %26, %35, %cst_23 {dimension_numbers = #tpu.dot_dimension_numbers<[1], [0], [0], [1], [0, 0, 1, 1], [], []>} : vector<8x32xbf16>, vector<32x8192xbf16>, vector<8x8192xf32> -> vector<8x8192xf32>
    %37 = vector.extract_strided_slice %24 {offsets = [0, 0], sizes = [8, 1], strides = [1, 1]} : vector<8x64xf32> to vector<8x1xf32>
    %38 = vector.extract_strided_slice %36 {offsets = [0, 0], sizes = [8, 256], strides = [1, 1]} : vector<8x8192xf32> to vector<8x256xf32>
    %39 = vector.broadcast %37 : vector<8x1xf32> to vector<8x256xf32>
    %40 = arith.mulf %39, %38 : vector<8x256xf32>
    %41 = arith.addf %31, %40 : vector<8x256xf32>
    %42 = vector.extract_strided_slice %24 {offsets = [0, 1], sizes = [8, 1], strides = [1, 1]} : vector<8x64xf32> to vector<8x1xf32>
    %43 = vector.extract_strided_slice %36 {offsets = [0, 256], sizes = [8, 256], strides = [1, 1]} : vector<8x8192xf32> to vector<8x256xf32>
    %44 = vector.broadcast %42 : vector<8x1xf32> to vector<8x256xf32>
    %45 = arith.mulf %44, %43 : vector<8x256xf32>
    %46 = arith.addf %32, %45 : vector<8x256xf32>
    %47 = vector.extract_strided_slice %24 {offsets = [0, 2], sizes = [8, 1], strides = [1, 1]} : vector<8x64xf32> to vector<8x1xf32>
    %48 = vector.extract_strided_slice %36 {offsets = [0, 512], sizes = [8, 256], strides = [1, 1]} : vector<8x8192xf32> to vector<8x256xf32>
    %49 = vector.broadcast %47 : vector<8x1xf32> to vector<8x256xf32>
    %50 = arith.mulf %49, %48 : vector<8x256xf32>
    %51 = arith.addf %33, %50 : vector<8x256xf32>
    %52 = vector.extract_strided_slice %24 {offsets = [0, 3], sizes = [8, 1], strides = [1, 1]} : vector<8x64xf32> to vector<8x1xf32>
    %53 = vector.extract_strided_slice %36 {offsets = [0, 768], sizes = [8, 256], strides = [1, 1]} : vector<8x8192xf32> to vector<8x256xf32>
    %54 = vector.broadcast %52 : vector<8x1xf32> to vector<8x256xf32>
    %55 = arith.mulf %54, %53 : vector<8x256xf32>
    %56 = arith.addf %34, %55 : vector<8x256xf32>
    %57 = vector.extract_strided_slice %24 {offsets = [0, 4], sizes = [8, 1], strides = [1, 1]} : vector<8x64xf32> to vector<8x1xf32>
    %58 = vector.extract_strided_slice %36 {offsets = [0, 1024], sizes = [8, 256], strides = [1, 1]} : vector<8x8192xf32> to vector<8x256xf32>
    %59 = vector.broadcast %57 : vector<8x1xf32> to vector<8x256xf32>
    %60 = arith.mulf %59, %58 : vector<8x256xf32>
    %61 = arith.addf %41, %60 : vector<8x256xf32>
    %62 = vector.extract_strided_slice %24 {offsets = [0, 5], sizes = [8, 1], strides = [1, 1]} : vector<8x64xf32> to vector<8x1xf32>
    %63 = vector.extract_strided_slice %36 {offsets = [0, 1280], sizes = [8, 256], strides = [1, 1]} : vector<8x8192xf32> to vector<8x256xf32>
    %64 = vector.broadcast %62 : vector<8x1xf32> to vector<8x256xf32>
    %65 = arith.mulf %64, %63 : vector<8x256xf32>
    %66 = arith.addf %46, %65 : vector<8x256xf32>
    %67 = vector.extract_strided_slice %24 {offsets = [0, 6], sizes = [8, 1], strides = [1, 1]} : vector<8x64xf32> to vector<8x1xf32>
    %68 = vector.extract_strided_slice %36 {offsets = [0, 1536], sizes = [8, 256], strides = [1, 1]} : vector<8x8192xf32> to vector<8x256xf32>
    %69 = vector.broadcast %67 : vector<8x1xf32> to vector<8x256xf32>
    %70 = arith.mulf %69, %68 : vector<8x256xf32>
    %71 = arith.addf %51, %70 : vector<8x256xf32>
    %72 = vector.extract_strided_slice %24 {offsets = [0, 7], sizes = [8, 1], strides = [1, 1]} : vector<8x64xf32> to vector<8x1xf32>
    %73 = vector.extract_strided_slice %36 {offsets = [0, 1792], sizes = [8, 256], strides = [1, 1]} : vector<8x8192xf32> to vector<8x256xf32>
    %74 = vector.broadcast %72 : vector<8x1xf32> to vector<8x256xf32>
    %75 = arith.mulf %74, %73 : vector<8x256xf32>
    %76 = arith.addf %56, %75 : vector<8x256xf32>
    %77 = vector.extract_strided_slice %24 {offsets = [0, 8], sizes = [8, 1], strides = [1, 1]} : vector<8x64xf32> to vector<8x1xf32>
    %78 = vector.extract_strided_slice %36 {offsets = [0, 2048], sizes = [8, 256], strides = [1, 1]} : vector<8x8192xf32> to vector<8x256xf32>
    %79 = vector.broadcast %77 : vector<8x1xf32> to vector<8x256xf32>
    %80 = arith.mulf %79, %78 : vector<8x256xf32>
    %81 = arith.addf %61, %80 : vector<8x256xf32>
    %82 = vector.extract_strided_slice %24 {offsets = [0, 9], sizes = [8, 1], strides = [1, 1]} : vector<8x64xf32> to vector<8x1xf32>
    %83 = vector.extract_strided_slice %36 {offsets = [0, 2304], sizes = [8, 256], strides = [1, 1]} : vector<8x8192xf32> to vector<8x256xf32>
    %84 = vector.broadcast %82 : vector<8x1xf32> to vector<8x256xf32>
    %85 = arith.mulf %84, %83 : vector<8x256xf32>
    %86 = arith.addf %66, %85 : vector<8x256xf32>
    %87 = vector.extract_strided_slice %24 {offsets = [0, 10], sizes = [8, 1], strides = [1, 1]} : vector<8x64xf32> to vector<8x1xf32>
    %88 = vector.extract_strided_slice %36 {offsets = [0, 2560], sizes = [8, 256], strides = [1, 1]} : vector<8x8192xf32> to vector<8x256xf32>
    %89 = vector.broadcast %87 : vector<8x1xf32> to vector<8x256xf32>
    %90 = arith.mulf %89, %88 : vector<8x256xf32>
    %91 = arith.addf %71, %90 : vector<8x256xf32>
    %92 = vector.extract_strided_slice %24 {offsets = [0, 11], sizes = [8, 1], strides = [1, 1]} : vector<8x64xf32> to vector<8x1xf32>
    %93 = vector.extract_strided_slice %36 {offsets = [0, 2816], sizes = [8, 256], strides = [1, 1]} : vector<8x8192xf32> to vector<8x256xf32>
    %94 = vector.broadcast %92 : vector<8x1xf32> to vector<8x256xf32>
    %95 = arith.mulf %94, %93 : vector<8x256xf32>
    %96 = arith.addf %76, %95 : vector<8x256xf32>
    %97 = vector.extract_strided_slice %24 {offsets = [0, 12], sizes = [8, 1], strides = [1, 1]} : vector<8x64xf32> to vector<8x1xf32>
    %98 = vector.extract_strided_slice %36 {offsets = [0, 3072], sizes = [8, 256], strides = [1, 1]} : vector<8x8192xf32> to vector<8x256xf32>
    %99 = vector.broadcast %97 : vector<8x1xf32> to vector<8x256xf32>
    %100 = arith.mulf %99, %98 : vector<8x256xf32>
    %101 = arith.addf %81, %100 : vector<8x256xf32>
    %102 = vector.extract_strided_slice %24 {offsets = [0, 13], sizes = [8, 1], strides = [1, 1]} : vector<8x64xf32> to vector<8x1xf32>
    %103 = vector.extract_strided_slice %36 {offsets = [0, 3328], sizes = [8, 256], strides = [1, 1]} : vector<8x8192xf32> to vector<8x256xf32>
    %104 = vector.broadcast %102 : vector<8x1xf32> to vector<8x256xf32>
    %105 = arith.mulf %104, %103 : vector<8x256xf32>
    %106 = arith.addf %86, %105 : vector<8x256xf32>
    %107 = vector.extract_strided_slice %24 {offsets = [0, 14], sizes = [8, 1], strides = [1, 1]} : vector<8x64xf32> to vector<8x1xf32>
    %108 = vector.extract_strided_slice %36 {offsets = [0, 3584], sizes = [8, 256], strides = [1, 1]} : vector<8x8192xf32> to vector<8x256xf32>
    %109 = vector.broadcast %107 : vector<8x1xf32> to vector<8x256xf32>
    %110 = arith.mulf %109, %108 : vector<8x256xf32>
    %111 = arith.addf %91, %110 : vector<8x256xf32>
    %112 = vector.extract_strided_slice %24 {offsets = [0, 15], sizes = [8, 1], strides = [1, 1]} : vector<8x64xf32> to vector<8x1xf32>
    %113 = vector.extract_strided_slice %36 {offsets = [0, 3840], sizes = [8, 256], strides = [1, 1]} : vector<8x8192xf32> to vector<8x256xf32>
    %114 = vector.broadcast %112 : vector<8x1xf32> to vector<8x256xf32>
    %115 = arith.mulf %114, %113 : vector<8x256xf32>
    %116 = arith.addf %96, %115 : vector<8x256xf32>
    %117 = vector.extract_strided_slice %24 {offsets = [0, 16], sizes = [8, 1], strides = [1, 1]} : vector<8x64xf32> to vector<8x1xf32>
    %118 = vector.extract_strided_slice %36 {offsets = [0, 4096], sizes = [8, 256], strides = [1, 1]} : vector<8x8192xf32> to vector<8x256xf32>
    %119 = vector.broadcast %117 : vector<8x1xf32> to vector<8x256xf32>
    %120 = arith.mulf %119, %118 : vector<8x256xf32>
    %121 = arith.addf %101, %120 : vector<8x256xf32>
    %122 = vector.extract_strided_slice %24 {offsets = [0, 17], sizes = [8, 1], strides = [1, 1]} : vector<8x64xf32> to vector<8x1xf32>
    %123 = vector.extract_strided_slice %36 {offsets = [0, 4352], sizes = [8, 256], strides = [1, 1]} : vector<8x8192xf32> to vector<8x256xf32>
    %124 = vector.broadcast %122 : vector<8x1xf32> to vector<8x256xf32>
    %125 = arith.mulf %124, %123 : vector<8x256xf32>
    %126 = arith.addf %106, %125 : vector<8x256xf32>
    %127 = vector.extract_strided_slice %24 {offsets = [0, 18], sizes = [8, 1], strides = [1, 1]} : vector<8x64xf32> to vector<8x1xf32>
    %128 = vector.extract_strided_slice %36 {offsets = [0, 4608], sizes = [8, 256], strides = [1, 1]} : vector<8x8192xf32> to vector<8x256xf32>
    %129 = vector.broadcast %127 : vector<8x1xf32> to vector<8x256xf32>
    %130 = arith.mulf %129, %128 : vector<8x256xf32>
    %131 = arith.addf %111, %130 : vector<8x256xf32>
    %132 = vector.extract_strided_slice %24 {offsets = [0, 19], sizes = [8, 1], strides = [1, 1]} : vector<8x64xf32> to vector<8x1xf32>
    %133 = vector.extract_strided_slice %36 {offsets = [0, 4864], sizes = [8, 256], strides = [1, 1]} : vector<8x8192xf32> to vector<8x256xf32>
    %134 = vector.broadcast %132 : vector<8x1xf32> to vector<8x256xf32>
    %135 = arith.mulf %134, %133 : vector<8x256xf32>
    %136 = arith.addf %116, %135 : vector<8x256xf32>
    %137 = vector.extract_strided_slice %24 {offsets = [0, 20], sizes = [8, 1], strides = [1, 1]} : vector<8x64xf32> to vector<8x1xf32>
    %138 = vector.extract_strided_slice %36 {offsets = [0, 5120], sizes = [8, 256], strides = [1, 1]} : vector<8x8192xf32> to vector<8x256xf32>
    %139 = vector.broadcast %137 : vector<8x1xf32> to vector<8x256xf32>
    %140 = arith.mulf %139, %138 : vector<8x256xf32>
    %141 = arith.addf %121, %140 : vector<8x256xf32>
    %142 = vector.extract_strided_slice %24 {offsets = [0, 21], sizes = [8, 1], strides = [1, 1]} : vector<8x64xf32> to vector<8x1xf32>
    %143 = vector.extract_strided_slice %36 {offsets = [0, 5376], sizes = [8, 256], strides = [1, 1]} : vector<8x8192xf32> to vector<8x256xf32>
    %144 = vector.broadcast %142 : vector<8x1xf32> to vector<8x256xf32>
    %145 = arith.mulf %144, %143 : vector<8x256xf32>
    %146 = arith.addf %126, %145 : vector<8x256xf32>
    %147 = vector.extract_strided_slice %24 {offsets = [0, 22], sizes = [8, 1], strides = [1, 1]} : vector<8x64xf32> to vector<8x1xf32>
    %148 = vector.extract_strided_slice %36 {offsets = [0, 5632], sizes = [8, 256], strides = [1, 1]} : vector<8x8192xf32> to vector<8x256xf32>
    %149 = vector.broadcast %147 : vector<8x1xf32> to vector<8x256xf32>
    %150 = arith.mulf %149, %148 : vector<8x256xf32>
    %151 = arith.addf %131, %150 : vector<8x256xf32>
    %152 = vector.extract_strided_slice %24 {offsets = [0, 23], sizes = [8, 1], strides = [1, 1]} : vector<8x64xf32> to vector<8x1xf32>
    %153 = vector.extract_strided_slice %36 {offsets = [0, 5888], sizes = [8, 256], strides = [1, 1]} : vector<8x8192xf32> to vector<8x256xf32>
    %154 = vector.broadcast %152 : vector<8x1xf32> to vector<8x256xf32>
    %155 = arith.mulf %154, %153 : vector<8x256xf32>
    %156 = arith.addf %136, %155 : vector<8x256xf32>
    %157 = vector.extract_strided_slice %24 {offsets = [0, 24], sizes = [8, 1], strides = [1, 1]} : vector<8x64xf32> to vector<8x1xf32>
    %158 = vector.extract_strided_slice %36 {offsets = [0, 6144], sizes = [8, 256], strides = [1, 1]} : vector<8x8192xf32> to vector<8x256xf32>
    %159 = vector.broadcast %157 : vector<8x1xf32> to vector<8x256xf32>
    %160 = arith.mulf %159, %158 : vector<8x256xf32>
    %161 = arith.addf %141, %160 : vector<8x256xf32>
    %162 = vector.extract_strided_slice %24 {offsets = [0, 25], sizes = [8, 1], strides = [1, 1]} : vector<8x64xf32> to vector<8x1xf32>
    %163 = vector.extract_strided_slice %36 {offsets = [0, 6400], sizes = [8, 256], strides = [1, 1]} : vector<8x8192xf32> to vector<8x256xf32>
    %164 = vector.broadcast %162 : vector<8x1xf32> to vector<8x256xf32>
    %165 = arith.mulf %164, %163 : vector<8x256xf32>
    %166 = arith.addf %146, %165 : vector<8x256xf32>
    %167 = vector.extract_strided_slice %24 {offsets = [0, 26], sizes = [8, 1], strides = [1, 1]} : vector<8x64xf32> to vector<8x1xf32>
    %168 = vector.extract_strided_slice %36 {offsets = [0, 6656], sizes = [8, 256], strides = [1, 1]} : vector<8x8192xf32> to vector<8x256xf32>
    %169 = vector.broadcast %167 : vector<8x1xf32> to vector<8x256xf32>
    %170 = arith.mulf %169, %168 : vector<8x256xf32>
    %171 = arith.addf %151, %170 : vector<8x256xf32>
    %172 = vector.extract_strided_slice %24 {offsets = [0, 27], sizes = [8, 1], strides = [1, 1]} : vector<8x64xf32> to vector<8x1xf32>
    %173 = vector.extract_strided_slice %36 {offsets = [0, 6912], sizes = [8, 256], strides = [1, 1]} : vector<8x8192xf32> to vector<8x256xf32>
    %174 = vector.broadcast %172 : vector<8x1xf32> to vector<8x256xf32>
    %175 = arith.mulf %174, %173 : vector<8x256xf32>
    %176 = arith.addf %156, %175 : vector<8x256xf32>
    %177 = vector.extract_strided_slice %24 {offsets = [0, 28], sizes = [8, 1], strides = [1, 1]} : vector<8x64xf32> to vector<8x1xf32>
    %178 = vector.extract_strided_slice %36 {offsets = [0, 7168], sizes = [8, 256], strides = [1, 1]} : vector<8x8192xf32> to vector<8x256xf32>
    %179 = vector.broadcast %177 : vector<8x1xf32> to vector<8x256xf32>
    %180 = arith.mulf %179, %178 : vector<8x256xf32>
    %181 = arith.addf %161, %180 : vector<8x256xf32>
    %182 = vector.extract_strided_slice %24 {offsets = [0, 29], sizes = [8, 1], strides = [1, 1]} : vector<8x64xf32> to vector<8x1xf32>
    %183 = vector.extract_strided_slice %36 {offsets = [0, 7424], sizes = [8, 256], strides = [1, 1]} : vector<8x8192xf32> to vector<8x256xf32>
    %184 = vector.broadcast %182 : vector<8x1xf32> to vector<8x256xf32>
    %185 = arith.mulf %184, %183 : vector<8x256xf32>
    %186 = arith.addf %166, %185 : vector<8x256xf32>
    %187 = vector.extract_strided_slice %24 {offsets = [0, 30], sizes = [8, 1], strides = [1, 1]} : vector<8x64xf32> to vector<8x1xf32>
    %188 = vector.extract_strided_slice %36 {offsets = [0, 7680], sizes = [8, 256], strides = [1, 1]} : vector<8x8192xf32> to vector<8x256xf32>
    %189 = vector.broadcast %187 : vector<8x1xf32> to vector<8x256xf32>
    %190 = arith.mulf %189, %188 : vector<8x256xf32>
    %191 = arith.addf %171, %190 : vector<8x256xf32>
    %192 = vector.extract_strided_slice %24 {offsets = [0, 31], sizes = [8, 1], strides = [1, 1]} : vector<8x64xf32> to vector<8x1xf32>
    %193 = vector.extract_strided_slice %36 {offsets = [0, 7936], sizes = [8, 256], strides = [1, 1]} : vector<8x8192xf32> to vector<8x256xf32>
    %194 = vector.broadcast %192 : vector<8x1xf32> to vector<8x256xf32>
    %195 = arith.mulf %194, %193 : vector<8x256xf32>
    %196 = arith.addf %176, %195 : vector<8x256xf32>
    %197 = arith.addf %181, %186 : vector<8x256xf32>
    %198 = arith.addf %197, %191 : vector<8x256xf32>
    %199 = arith.addf %198, %196 : vector<8x256xf32>
    %cst_24 = arith.constant 0.000000e+00 : f32
    %200 = vector.broadcast %cst_24 : f32 to vector<8x256xf32>
    %201 = arith.maximumf %199, %200 : vector<8x256xf32>
    %202 = arith.truncf %201 : vector<8x256xf32> to vector<8x256xbf16>
    %c0_25 = arith.constant 0 : index
    %c0_26 = arith.constant 0 : index
    %203 = vector.load %arg9[%c0_25, %c0_26] : memref<256x128xbf16, #tpu.memory_space<vmem>>, vector<256x128xbf16>
    %cst_27 = arith.constant dense<0.000000e+00> : vector<8x128xf32>
    %204 = tpu.matmul %202, %203, %cst_27 {dimension_numbers = #tpu.dot_dimension_numbers<[1], [0], [0], [1], [0, 0, 1, 1], [], []>} : vector<8x256xbf16>, vector<256x128xbf16>, vector<8x128xf32> -> vector<8x128xf32>
    %c0_28 = arith.constant 0 : index
    %c0_29 = arith.constant 0 : index
    %205 = vector.load %arg10[%c0_28, %c0_29] : memref<1x128xf32, #tpu.memory_space<vmem>>, vector<1x128xf32>
    %206 = vector.broadcast %205 : vector<1x128xf32> to vector<8x128xf32>
    %207 = arith.addf %204, %206 : vector<8x128xf32>
    %cst_30 = arith.constant 0.000000e+00 : f32
    %208 = vector.broadcast %cst_30 : f32 to vector<8x128xf32>
    %209 = arith.maximumf %207, %208 : vector<8x128xf32>
    %c0_31 = arith.constant 0 : index
    %c0_32 = arith.constant 0 : index
    %210 = vector.load %arg11[%c0_31, %c0_32] : memref<8x128xf32, #tpu.memory_space<vmem>>, vector<8x128xf32>
    tpu.vector_store %arg11[%c0_31, %c0_32], %209 {strides = array<i32>} : memref<8x128xf32, #tpu.memory_space<vmem>>, vector<8x128xf32>,
    return
  }
  func.func @transform_0(%arg0: i32) -> (i32, i32) {
    %c0_i32 = arith.constant 0 : i32
    %c0_i32_0 = arith.constant 0 : i32
    return %arg0, %c0_i32 : i32, i32
  }
  func.func @transform_1(%arg0: i32) -> (i32, i32) {
    %c0_i32 = arith.constant 0 : i32
    %c0_i32_0 = arith.constant 0 : i32
    %c0_i32_1 = arith.constant 0 : i32
    return %c0_i32, %c0_i32_0 : i32, i32
  }
  func.func @transform_2(%arg0: i32) -> (i32, i32) {
    %c0_i32 = arith.constant 0 : i32
    %c0_i32_0 = arith.constant 0 : i32
    %c0_i32_1 = arith.constant 0 : i32
    return %c0_i32, %c0_i32_0 : i32, i32
  }
  func.func @transform_3(%arg0: i32) -> (i32, i32) {
    %c0_i32 = arith.constant 0 : i32
    %c0_i32_0 = arith.constant 0 : i32
    %c0_i32_1 = arith.constant 0 : i32
    return %c0_i32, %c0_i32_0 : i32, i32
  }
  func.func @transform_4(%arg0: i32) -> (i32, i32) {
    %c0_i32 = arith.constant 0 : i32
    %c0_i32_0 = arith.constant 0 : i32
    %c0_i32_1 = arith.constant 0 : i32
    return %c0_i32, %c0_i32_0 : i32, i32
  }
  func.func @transform_5(%arg0: i32) -> (i32, i32) {
    %c0_i32 = arith.constant 0 : i32
    %c0_i32_0 = arith.constant 0 : i32
    %c0_i32_1 = arith.constant 0 : i32
    return %c0_i32, %c0_i32_0 : i32, i32
  }
  func.func @transform_6(%arg0: i32) -> (i32, i32) {
    %c0_i32 = arith.constant 0 : i32
    %c0_i32_0 = arith.constant 0 : i32
    %c0_i32_1 = arith.constant 0 : i32
    return %c0_i32, %c0_i32_0 : i32, i32
  }
  func.func @transform_7(%arg0: i32) -> (i32, i32) {
    %c0_i32 = arith.constant 0 : i32
    %c0_i32_0 = arith.constant 0 : i32
    %c0_i32_1 = arith.constant 0 : i32
    return %c0_i32, %c0_i32_0 : i32, i32
  }
  func.func @transform_8(%arg0: i32) -> (i32, i32) {
    %c0_i32 = arith.constant 0 : i32
    %c0_i32_0 = arith.constant 0 : i32
    %c0_i32_1 = arith.constant 0 : i32
    return %c0_i32, %c0_i32_0 : i32, i32
  }
  func.func @transform_9(%arg0: i32) -> (i32, i32) {
    %c0_i32 = arith.constant 0 : i32
    %c0_i32_0 = arith.constant 0 : i32
    %c0_i32_1 = arith.constant 0 : i32
    return %c0_i32, %c0_i32_0 : i32, i32
  }
  func.func @transform_10(%arg0: i32) -> (i32, i32) {
    %c0_i32 = arith.constant 0 : i32
    %c0_i32_0 = arith.constant 0 : i32
    return %arg0, %c0_i32 : i32, i32
  }
}

</mosaic_0001>

<llo_original>
// kernel: tpu_custom_call.1
$region0: #{tpu_custom_call.1}
  #allocation0 [shape = 'u32[]', space=smem, size = 0x4, offset = 0x4, fixed_abs, tag = 'smem constant byte address 0x4 - core index']
  #allocation1 [shape = 'u32[144,128]{1,0:T(1,128)}', space=vmem, size = 0x12000, scoped, tag = 'internal scratch']
  %s0 = inlined_call_operand.hbm [shape: f32[8,64], index: 0, kind: input, shape index: {}]
  %s1 = inlined_call_operand.hbm [shape: bf16[64,128], index: 1, kind: input, shape index: {}]
  %s2 = inlined_call_operand.hbm [shape: f32[1,128], index: 2, kind: input, shape index: {}]
  %s3 = inlined_call_operand.hbm [shape: bf16[64,64], index: 3, kind: input, shape index: {}]
  %s4 = inlined_call_operand.hbm [shape: f32[1,64], index: 4, kind: input, shape index: {}]
  %s5 = inlined_call_operand.hbm [shape: bf16[32,8192], index: 5, kind: input, shape index: {}]
  %s6 = inlined_call_operand.hbm [shape: bf16[64,256], index: 6, kind: input, shape index: {}]
  %s7 = inlined_call_operand.hbm [shape: f32[1,256], index: 7, kind: input, shape index: {}]
  %s8 = inlined_call_operand.hbm [shape: bf16[256,128], index: 8, kind: input, shape index: {}]
  %s9 = inlined_call_operand.hbm [shape: f32[1,128], index: 9, kind: input, shape index: {}]
  %s10 = inlined_call_operand.hbm [shape: f32[8,128], index: 10, kind: output, shape index: {}]
  %s11 = sld [smem:[#allocation0]]
  $region90: #{tpu_custom_call.1} parent=0
    _
  %s13 = ssub.s32 1, %s11
  %s14 = scalar_select 0, %s13, %s11
  $region1: #{tpu_custom_call.1} parent=0
    #allocation2 [shape = 'u8[4096]{0}', space=vmem, size = 0x1000, scoped, tag = 'input window, operand 0, single buffered']
    #allocation3 [shape = 's32[1]{0}', space=sflag, size = 0x4, scoped, tag = 'scoped memory for tpu_custom_call.1']
    #allocation4 [shape = 's32[1]{0}', space=sflag, size = 0x4, scoped, tag = 'scoped memory for tpu_custom_call.1']
    #allocation5 [shape = 'u8[16384]{0}', space=vmem, size = 0x4000, scoped, tag = 'input window, operand 1, single buffered']
    #allocation6 [shape = 's32[1]{0}', space=sflag, size = 0x4, scoped, tag = 'scoped memory for tpu_custom_call.1']
    #allocation7 [shape = 'u8[512]{0}', space=vmem, size = 0x400, scoped, tag = 'input window, operand 2, single buffered']
    #allocation8 [shape = 'u8[16384]{0}', space=vmem, size = 0x4000, scoped, tag = 'input window, operand 3, single buffered']
    #allocation9 [shape = 's32[1]{0}', space=sflag, size = 0x4, scoped, tag = 'scoped memory for tpu_custom_call.1']
    #allocation10 [shape = 'u8[512]{0}', space=vmem, size = 0x400, scoped, tag = 'input window, operand 4, single buffered']
    #allocation11 [shape = 'u8[524288]{0}', space=vmem, size = 0x80000, scoped, tag = 'input window, operand 5, single buffered']
    #allocation12 [shape = 's32[1]{0}', space=sflag, size = 0x4, scoped, tag = 'scoped memory for tpu_custom_call.1']
    #allocation13 [shape = 'u8[32768]{0}', space=vmem, size = 0x8000, scoped, tag = 'input window, operand 6, single buffered']
    #allocation14 [shape = 'u8[1024]{0}', space=vmem, size = 0x400, scoped, tag = 'input window, operand 7, single buffered']
    #allocation15 [shape = 's32[1]{0}', space=sflag, size = 0x4, scoped, tag = 'scoped memory for tpu_custom_call.1']
    #allocation16 [shape = 'u8[65536]{0}', space=vmem, size = 0x10000, scoped, tag = 'input window, operand 8, single buffered']
    #allocation17 [shape = 'u8[512]{0}', space=vmem, size = 0x400, scoped, tag = 'input window, operand 9, single buffered']
    #allocation18 [shape = 's32[1]{0}', space=sflag, size = 0x4, scoped, tag = 'scoped memory for tpu_custom_call.1']
    #allocation19 [shape = 'u8[4096]{0}', space=vmem, size = 0x1000, scoped, tag = 'output window, operand 0, single buffered']
    %15 = vsyncpa [#allocation3], 0
    %16 = vsyncpa [#allocation6], 0
    %17 = vsyncpa [#allocation9], 0
    %18 = vsyncpa [#allocation12], 0
    %19 = vsyncpa [#allocation15], 0
    %20 = vsyncpa [#allocation18], 0
    %21 = vsyncpa [#allocation4], 0
    // Predicated region
    $region2: #{tpu_custom_call.1} parent=1 // pred_check
      _
    $region3: #{tpu_custom_call.1} parent=1 // pred_check_branch
      %23 = sbr.rel (0) target = $region5
    $region4: #{tpu_custom_call.1} parent=1 // pred_region
      %s25 = ssub.s32 128, 128
      %26 = vsyncadd [#allocation3], %s25
      %s28 = sshll.u32 [#allocation2], 4
      %s29 = int_to_ptr.vmem [resolvable:$true] %s28
      %31 = dma.hbm_to_vmem [thread:$0]  %s0, 128, %s29, [#allocation3]
    $region5: #{tpu_custom_call.1} parent=1 // pred_fallthru
      _
    // Predicated region
    $region6: #{tpu_custom_call.1} parent=1 // pred_check
      _
    $region7: #{tpu_custom_call.1} parent=1 // pred_check_branch
      %33 = sbr.rel (0) target = $region9
    $region8: #{tpu_custom_call.1} parent=1 // pred_region
      %s35 = ssub.s32 512, 512
      %36 = vsyncadd [#allocation6], %s35
      %s37 = sshll.u32 [#allocation5], 4
      %s38 = int_to_ptr.vmem [resolvable:$true] %s37
      %43 = dma.hbm_to_vmem [thread:$0]  %s1, 512, %s38, [#allocation6], 64, 64, 4
    $region9: #{tpu_custom_call.1} parent=1 // pred_fallthru
      _
    // Predicated region
    $region10: #{tpu_custom_call.1} parent=1 // pred_check
      _
    $region11: #{tpu_custom_call.1} parent=1 // pred_check_branch
      %45 = sbr.rel (0) target = $region13
    $region12: #{tpu_custom_call.1} parent=1 // pred_region
      %s47 = ssub.s32 16, 16
      %48 = vsyncadd [#allocation6], %s47
      %s50 = sshll.u32 [#allocation7], 4
      %s51 = int_to_ptr.vmem [resolvable:$true] %s50
      %53 = dma.hbm_to_vmem [thread:$0]  %s2, 16, %s51, [#allocation6]
    $region13: #{tpu_custom_call.1} parent=1 // pred_fallthru
      _
    // Predicated region
    $region14: #{tpu_custom_call.1} parent=1 // pred_check
      _
    $region15: #{tpu_custom_call.1} parent=1 // pred_check_branch
      %55 = sbr.rel (0) target = $region17
    $region16: #{tpu_custom_call.1} parent=1 // pred_region
      %s57 = ssub.s32 512, 512
      %58 = vsyncadd [#allocation9], %s57
      %s59 = sshll.u32 [#allocation8], 4
      %s60 = int_to_ptr.vmem [resolvable:$true] %s59
      %65 = dma.hbm_to_vmem [thread:$0]  %s3, 512, %s60, [#allocation9], 64, 64, 4
    $region17: #{tpu_custom_call.1} parent=1 // pred_fallthru
      _
    // Predicated region
    $region18: #{tpu_custom_call.1} parent=1 // pred_check
      _
    $region19: #{tpu_custom_call.1} parent=1 // pred_check_branch
      %67 = sbr.rel (0) target = $region21
    $region20: #{tpu_custom_call.1} parent=1 // pred_region
      %s69 = ssub.s32 16, 16
      %70 = vsyncadd [#allocation9], %s69
      %s72 = sshll.u32 [#allocation10], 4
      %s73 = int_to_ptr.vmem [resolvable:$true] %s72
      %75 = dma.hbm_to_vmem [thread:$0]  %s4, 16, %s73, [#allocation9]
    $region21: #{tpu_custom_call.1} parent=1 // pred_fallthru
      _
    // Predicated region
    $region22: #{tpu_custom_call.1} parent=1 // pred_check
      _
    $region23: #{tpu_custom_call.1} parent=1 // pred_check_branch
      %77 = sbr.rel (0) target = $region25
    $region24: #{tpu_custom_call.1} parent=1 // pred_region
      %s79 = ssub.s32 16384, 16384
      %80 = vsyncadd [#allocation12], %s79
      %s81 = sshll.u32 [#allocation11], 4
      %s82 = int_to_ptr.vmem [resolvable:$true] %s81
      %87 = dma.hbm_to_vmem [thread:$0]  %s5, 16384, %s82, [#allocation12], 4096, 4096, 256
    $region25: #{tpu_custom_call.1} parent=1 // pred_fallthru
      _
    // Predicated region
    $region26: #{tpu_custom_call.1} parent=1 // pred_check
      _
    $region27: #{tpu_custom_call.1} parent=1 // pred_check_branch
      %89 = sbr.rel (0) target = $region29
    $region28: #{tpu_custom_call.1} parent=1 // pred_region
      %s91 = ssub.s32 1024, 1024
      %92 = vsyncadd [#allocation12], %s91
      %s93 = sshll.u32 [#allocation13], 4
      %s94 = int_to_ptr.vmem [resolvable:$true] %s93
      %99 = dma.hbm_to_vmem [thread:$0]  %s6, 1024, %s94, [#allocation12], 128, 128, 8
    $region29: #{tpu_custom_call.1} parent=1 // pred_fallthru
      _
    // Predicated region
    $region30: #{tpu_custom_call.1} parent=1 // pred_check
      _
    $region31: #{tpu_custom_call.1} parent=1 // pred_check_branch
      %101 = sbr.rel (0) target = $region33
    $region32: #{tpu_custom_call.1} parent=1 // pred_region
      %s103 = ssub.s32 32, 32
      %104 = vsyncadd [#allocation15], %s103
      %s106 = sshll.u32 [#allocation14], 4
      %s107 = int_to_ptr.vmem [resolvable:$true] %s106
      %109 = dma.hbm_to_vmem [thread:$0]  %s7, 32, %s107, [#allocation15]
    $region33: #{tpu_custom_call.1} parent=1 // pred_fallthru
      _
    // Predicated region
    $region34: #{tpu_custom_call.1} parent=1 // pred_check
      _
    $region35: #{tpu_custom_call.1} parent=1 // pred_check_branch
      %111 = sbr.rel (0) target = $region37
    $region36: #{tpu_custom_call.1} parent=1 // pred_region
      %s113 = ssub.s32 2048, 2048
      %114 = vsyncadd [#allocation15], %s113
      %s115 = sshll.u32 [#allocation16], 4
      %s116 = int_to_ptr.vmem [resolvable:$true] %s115
      %121 = dma.hbm_to_vmem [thread:$0]  %s8, 2048, %s116, [#allocation15], 64, 64, 4
    $region37: #{tpu_custom_call.1} parent=1 // pred_fallthru
      _
    // Predicated region
    $region38: #{tpu_custom_call.1} parent=1 // pred_check
      _
    $region39: #{tpu_custom_call.1} parent=1 // pred_check_branch
      %123 = sbr.rel (0) target = $region41
    $region40: #{tpu_custom_call.1} parent=1 // pred_region
      %s125 = ssub.s32 16, 16
      %126 = vsyncadd [#allocation18], %s125
      %s128 = sshll.u32 [#allocation17], 4
      %s129 = int_to_ptr.vmem [resolvable:$true] %s128
      %131 = dma.hbm_to_vmem [thread:$0]  %s9, 16, %s129, [#allocation18]
    $region41: #{tpu_custom_call.1} parent=1 // pred_fallthru
      _
    // Predicated region
    $region42: #{tpu_custom_call.1} parent=1 // pred_check
      _
    $region43: #{tpu_custom_call.1} parent=1 // pred_check_branch
      %133 = sbr.rel (0) target = $region45
    $region44: #{tpu_custom_call.1} parent=1 // pred_region
      %134 = dma.done [#allocation3], 128
    $region45: #{tpu_custom_call.1} parent=1 // pred_fallthru
      _
    // Predicated region
    $region46: #{tpu_custom_call.1} parent=1 // pred_check
      _
    $region47: #{tpu_custom_call.1} parent=1 // pred_check_branch
      %136 = sbr.rel (0) target = $region49
    $region48: #{tpu_custom_call.1} parent=1 // pred_region
      %137 = dma.done [#allocation6], 512
    $region49: #{tpu_custom_call.1} parent=1 // pred_fallthru
      _
    // Predicated region
    $region50: #{tpu_custom_call.1} parent=1 // pred_check
      _
    $region51: #{tpu_custom_call.1} parent=1 // pred_check_branch
      %139 = sbr.rel (0) target = $region53
    $region52: #{tpu_custom_call.1} parent=1 // pred_region
      %140 = dma.done [#allocation6], 16
    $region53: #{tpu_custom_call.1} parent=1 // pred_fallthru
      _
    // Predicated region
    $region54: #{tpu_custom_call.1} parent=1 // pred_check
      _
    $region55: #{tpu_custom_call.1} parent=1 // pred_check_branch
      %142 = sbr.rel (0) target = $region57
    $region56: #{tpu_custom_call.1} parent=1 // pred_region
      %143 = dma.done [#allocation9], 512
    $region57: #{tpu_custom_call.1} parent=1 // pred_fallthru
      _
    // Predicated region
    $region58: #{tpu_custom_call.1} parent=1 // pred_check
      _
    $region59: #{tpu_custom_call.1} parent=1 // pred_check_branch
      %145 = sbr.rel (0) target = $region61
    $region60: #{tpu_custom_call.1} parent=1 // pred_region
      %146 = dma.done [#allocation9], 16
    $region61: #{tpu_custom_call.1} parent=1 // pred_fallthru
      _
    // Predicated region
    $region62: #{tpu_custom_call.1} parent=1 // pred_check
      _
    $region63: #{tpu_custom_call.1} parent=1 // pred_check_branch
      %148 = sbr.rel (0) target = $region65
    $region64: #{tpu_custom_call.1} parent=1 // pred_region
      %149 = dma.done [#allocation12], 16384
    $region65: #{tpu_custom_call.1} parent=1 // pred_fallthru
      _
    // Predicated region
    $region66: #{tpu_custom_call.1} parent=1 // pred_check
      _
    $region67: #{tpu_custom_call.1} parent=1 // pred_check_branch
      %151 = sbr.rel (0) target = $region69
    $region68: #{tpu_custom_call.1} parent=1 // pred_region
      %152 = dma.done [#allocation12], 1024
    $region69: #{tpu_custom_call.1} parent=1 // pred_fallthru
      _
    // Predicated region
    $region70: #{tpu_custom_call.1} parent=1 // pred_check
      _
    $region71: #{tpu_custom_call.1} parent=1 // pred_check_branch
      %154 = sbr.rel (0) target = $region73
    $region72: #{tpu_custom_call.1} parent=1 // pred_region
      %155 = dma.done [#allocation15], 32
    $region73: #{tpu_custom_call.1} parent=1 // pred_fallthru
      _
    // Predicated region
    $region74: #{tpu_custom_call.1} parent=1 // pred_check
      _
    $region75: #{tpu_custom_call.1} parent=1 // pred_check_branch
      %157 = sbr.rel (0) target = $region77
    $region76: #{tpu_custom_call.1} parent=1 // pred_region
      %158 = dma.done [#allocation15], 2048
    $region77: #{tpu_custom_call.1} parent=1 // pred_fallthru
      _
    // Predicated region
    $region78: #{tpu_custom_call.1} parent=1 // pred_check
      _
    $region79: #{tpu_custom_call.1} parent=1 // pred_check_branch
      %160 = sbr.rel (0) target = $region81
    $region80: #{tpu_custom_call.1} parent=1 // pred_region
      %161 = dma.done [#allocation18], 16
    $region81: #{tpu_custom_call.1} parent=1 // pred_fallthru
      _
    %v163 = vld [vmem:[#allocation2] sm:$0xff]
    %v164 = vpack.c.bf16 %v163, %v163
    %v165 = vld [vmem:[#allocation5] sm:$0xf]
    %v166 = vld [vmem:[#allocation5 + $0x4] sm:$0xf]
    %v167 = vld [vmem:[#allocation5 + $0x8] sm:$0xf]
    %v168 = vld [vmem:[#allocation5 + $0xc] sm:$0xf]
    %v169 = vld [vmem:[#allocation5 + $0x10] sm:$0xf]
    %v170 = vld [vmem:[#allocation5 + $0x14] sm:$0xf]
    %v171 = vld [vmem:[#allocation5 + $0x18] sm:$0xf]
    %v172 = vld [vmem:[#allocation5 + $0x1c] sm:$0xf]
    %v173 = vld [vmem:[#allocation7] sm:$0x1]
    %v175 = vlaneseq
    %v176 = vshrl.u32 %v175, 7
    %v177 = vsub.s32 0, %v176
    %v178 = vrot.slane %v173, %v177
    %v188 = vunpack.c.l.b16 %v165
    %v189 = vunpack.c.l.b16 %v166
    %v190 = vunpack.c.l.b16 %v167
    %v191 = vunpack.c.l.b16 %v168
    %v192 = vunpack.c.l.b16 %v169
    %v193 = vunpack.c.l.b16 %v170
    %v194 = vunpack.c.l.b16 %v171
    %v195 = vunpack.c.l.b16 %v172
    %v196 = vpack.c.b16 %v189, %v188
    %v197 = vpack.c.b16 %v191, %v190
    %v198 = vpack.c.b16 %v193, %v192
    %v199 = vpack.c.b16 %v195, %v194
    %vm204 = vcmask 523264
    %v206 = vsel %vm204, %v164, 0
    %208 = vmatprep.subr.bf16.mxu0 0
    %209 = vmatpush1.bf16.msra.mxu0 %v196
    %210 = vmatprep.subr.bf16.mxu0 0
    %211 = vmatpush1.bf16.msra.mxu0 %v197
    %212 = vmatprep.subr.bf16.mxu0 0
    %213 = vmatpush1.bf16.msra.mxu0 %v198
    %214 = vmatprep.subr.bf16.mxu0 0
    %215 = vmatpush1.bf16.msra.mxu0 %v199
    %216 = vmatprep.subr.bf16.mxu0 0
    %217 = vmatpush1.bf16.msra.mxu0 0
    %218 = vmatprep.subr.bf16.mxu0 0
    %219 = vmatpush1.bf16.msra.mxu0 0
    %220 = vmatprep.subr.bf16.mxu0 0
    %221 = vmatpush1.bf16.msra.mxu0 0
    %222 = vmatprep.subr.bf16.mxu0 0
    %223 = vmatpush1.bf16.msra.mxu0 0
    %224 = vmatprep.subr.bf16.mxu0 0
    %225 = vmatpush1.bf16.msra.mxu0 0
    %226 = vmatprep.subr.bf16.mxu0 0
    %227 = vmatpush1.bf16.msra.mxu0 0
    %228 = vmatprep.subr.bf16.mxu0 0
    %229 = vmatpush1.bf16.msra.mxu0 0
    %230 = vmatprep.subr.bf16.mxu0 0
    %231 = vmatpush1.bf16.msra.mxu0 0
    %232 = vmatprep.subr.bf16.mxu0 0
    %233 = vmatpush1.bf16.msra.mxu0 0
    %234 = vmatprep.subr.bf16.mxu0 0
    %235 = vmatpush1.bf16.msra.mxu0 0
    %236 = vmatprep.subr.bf16.mxu0 0
    %237 = vmatpush1.bf16.msra.mxu0 0
    %238 = vmatprep.subr.bf16.mxu0 0
    %239 = vmatpush1.bf16.msra.mxu0 0
    %240 = vmatprep.mubr.bf16.mxu0 0
    %241 = vmatmul.mubr.bf16.gmra.mrb[0].mxu0 %v206
    %v242 = vpop.f32.mrb[0].mxu0
    %v243 = vadd.f32 %v178, %v242
    %v244 = vpop.f32.mrb[0].mxu0
    %v245 = vpop.f32.mrb[0].mxu0
    %v246 = vpop.f32.mrb[0].mxu0
    %247 = vdwg.mxu0
    %v248 = vmax.f32 %v243, 0.0
    %v249 = vxor.u32 %v243, 2147483648
    %v250 = vmul.f32 %v249, 1.442695
    %v251 = vpow.pop %v250
    %v252 = vadd.f32 %v251, 1.0
    %v253 = vrcp.pop %v252
    %v254 = vmul.f32 1.0, %v253
    %256 = vrot.lane.b32.xlu0 %v248, 64
    %v257 = vpop.permute.xlu0 %256
    %v259 = vmul.f32 %v254, %v257
    %v260 = vpack.c.bf16 %v259, %v259
    %v261 = vld [vmem:[#allocation8] sm:$0xf]
    %v262 = vld [vmem:[#allocation8 + $0x4] sm:$0xf]
    %v263 = vld [vmem:[#allocation8 + $0x8] sm:$0xf]
    %v264 = vld [vmem:[#allocation8 + $0xc] sm:$0xf]
    %v265 = vld [vmem:[#allocation8 + $0x10] sm:$0xf]
    %v266 = vld [vmem:[#allocation8 + $0x14] sm:$0xf]
    %v267 = vld [vmem:[#allocation8 + $0x18] sm:$0xf]
    %v268 = vld [vmem:[#allocation8 + $0x1c] sm:$0xf]
    %v269 = vld [vmem:[#allocation10] sm:$0x1]
    %v271 = vlaneseq
    %v272 = vshrl.u32 %v271, 7
    %v273 = vsub.s32 0, %v272
    %v274 = vrot.slane %v269, %v273
    %277 = vrot.lane.b32.xlu0 %v260, 64
    %v278 = vpop.permute.xlu0 %277
    %v287 = vunpack.c.l.b16 %v261
    %v288 = vunpack.c.l.b16 %v262
    %v289 = vunpack.c.l.b16 %v263
    %v290 = vunpack.c.l.b16 %v264
    %v291 = vunpack.c.l.b16 %v265
    %v292 = vunpack.c.l.b16 %v266
    %v293 = vunpack.c.l.b16 %v267
    %v294 = vunpack.c.l.b16 %v268
    %v295 = vpack.c.b16 %v288, %v287
    %v296 = vpack.c.b16 %v290, %v289
    %v297 = vpack.c.b16 %v292, %v291
    %v298 = vpack.c.b16 %v294, %v293
    %v304 = vsel %vm204, %v278, 0
    %306 = vmatprep.subr.bf16.mxu0 0
    %307 = vmatpush1.bf16.msra.mxu0 %v295
    %308 = vmatprep.subr.bf16.mxu0 0
    %309 = vmatpush1.bf16.msra.mxu0 %v296
    %310 = vmatprep.subr.bf16.mxu0 0
    %311 = vmatpush1.bf16.msra.mxu0 %v297
    %312 = vmatprep.subr.bf16.mxu0 0
    %313 = vmatpush1.bf16.msra.mxu0 %v298
    %314 = vmatprep.subr.bf16.mxu0 0
    %315 = vmatpush1.bf16.msra.mxu0 0
    %316 = vmatprep.subr.bf16.mxu0 0
    %317 = vmatpush1.bf16.msra.mxu0 0
    %318 = vmatprep.subr.bf16.mxu0 0
    %319 = vmatpush1.bf16.msra.mxu0 0
    %320 = vmatprep.subr.bf16.mxu0 0
    %321 = vmatpush1.bf16.msra.mxu0 0
    %322 = vmatprep.subr.bf16.mxu0 0
    %323 = vmatpush1.bf16.msra.mxu0 0
    %324 = vmatprep.subr.bf16.mxu0 0
    %325 = vmatpush1.bf16.msra.mxu0 0
    %326 = vmatprep.subr.bf16.mxu0 0
    %327 = vmatpush1.bf16.msra.mxu0 0
    %328 = vmatprep.subr.bf16.mxu0 0
    %329 = vmatpush1.bf16.msra.mxu0 0
    %330 = vmatprep.subr.bf16.mxu0 0
    %331 = vmatpush1.bf16.msra.mxu0 0
    %332 = vmatprep.subr.bf16.mxu0 0
    %333 = vmatpush1.bf16.msra.mxu0 0
    %334 = vmatprep.subr.bf16.mxu0 0
    %335 = vmatpush1.bf16.msra.mxu0 0
    %336 = vmatprep.subr.bf16.mxu0 0
    %337 = vmatpush1.bf16.msra.mxu0 0
    %338 = vmatprep.mubr.bf16.mxu0 0
    %339 = vmatmul.mubr.bf16.gmra.mrb[0].mxu0 %v304
    %v340 = vpop.f32.mrb[0].mxu0
    %v341 = vadd.f32 %v274, %v340
    %v342 = vpop.f32.mrb[0].mxu0
    %v343 = vpop.f32.mrb[0].mxu0
    %v344 = vpop.f32.mrb[0].mxu0
    %345 = vdwg.mxu0
    %v346 = vmax.f32 %v341, 0.0
    %v347 = vpack.c.bf16 %v346, %v346
    %v348 = vld [vmem:[#allocation13] sm:$0xff]
    %v349 = vld [vmem:[#allocation13 + $0x8] sm:$0xff]
    %v350 = vld [vmem:[#allocation13 + $0x10] sm:$0xff]
    %v351 = vld [vmem:[#allocation13 + $0x18] sm:$0xff]
    %v352 = vld [vmem:[#allocation13 + $0x20] sm:$0xff]
    %v353 = vld [vmem:[#allocation13 + $0x28] sm:$0xff]
    %v354 = vld [vmem:[#allocation13 + $0x30] sm:$0xff]
    %v355 = vld [vmem:[#allocation13 + $0x38] sm:$0xff]
    %v356 = vld [vmem:[#allocation14] sm:$0x3]
    %v358 = vlaneseq
    %v359 = vshrl.u32 %v358, 7
    %v360 = vsub.s32 0, %v359
    %v361 = vrot.slane %v356, %v360
    %v362 = vlaneseq
    %v363 = vshrl.u32 %v362, 7
    %v364 = vsub.s32 1, %v363
    %v365 = vrot.slane %v356, %v364
    %v376 = vunpack.c.l.b16 %v348
    %v377 = vunpack.c.h.b16 %v348
    %v378 = vunpack.c.l.b16 %v349
    %v379 = vunpack.c.h.b16 %v349
    %v380 = vunpack.c.l.b16 %v350
    %v381 = vunpack.c.h.b16 %v350
    %v382 = vunpack.c.l.b16 %v351
    %v383 = vunpack.c.h.b16 %v351
    %v384 = vunpack.c.l.b16 %v352
    %v385 = vunpack.c.h.b16 %v352
    %v386 = vunpack.c.l.b16 %v353
    %v387 = vunpack.c.h.b16 %v353
    %v388 = vunpack.c.l.b16 %v354
    %v389 = vunpack.c.h.b16 %v354
    %v390 = vunpack.c.l.b16 %v355
    %v391 = vunpack.c.h.b16 %v355
    %v392 = vpack.c.b16 %v378, %v376
    %v393 = vpack.c.b16 %v379, %v377
    %v394 = vpack.c.b16 %v382, %v380
    %v395 = vpack.c.b16 %v383, %v381
    %v396 = vpack.c.b16 %v386, %v384
    %v397 = vpack.c.b16 %v387, %v385
    %v398 = vpack.c.b16 %v390, %v388
    %v399 = vpack.c.b16 %v391, %v389
    %v409 = vsel %vm204, %v347, 0
    %411 = vmatprep.subr.bf16.mxu0 %v393
    %412 = vmatpush1.bf16.msra.mxu0 %v392
    %413 = vmatprep.subr.bf16.mxu0 %v395
    %414 = vmatpush1.bf16.msra.mxu0 %v394
    %415 = vmatprep.subr.bf16.mxu0 %v397
    %416 = vmatpush1.bf16.msra.mxu0 %v396
    %417 = vmatprep.subr.bf16.mxu0 %v399
    %418 = vmatpush1.bf16.msra.mxu0 %v398
    %419 = vmatprep.subr.bf16.mxu0 0
    %420 = vmatpush1.bf16.msra.mxu0 0
    %421 = vmatprep.subr.bf16.mxu0 0
    %422 = vmatpush1.bf16.msra.mxu0 0
    %423 = vmatprep.subr.bf16.mxu0 0
    %424 = vmatpush1.bf16.msra.mxu0 0
    %425 = vmatprep.subr.bf16.mxu0 0
    %426 = vmatpush1.bf16.msra.mxu0 0
    %427 = vmatprep.subr.bf16.mxu0 0
    %428 = vmatpush1.bf16.msra.mxu0 0
    %429 = vmatprep.subr.bf16.mxu0 0
    %430 = vmatpush1.bf16.msra.mxu0 0
    %431 = vmatprep.subr.bf16.mxu0 0
    %432 = vmatpush1.bf16.msra.mxu0 0
    %433 = vmatprep.subr.bf16.mxu0 0
    %434 = vmatpush1.bf16.msra.mxu0 0
    %435 = vmatprep.subr.bf16.mxu0 0
    %436 = vmatpush1.bf16.msra.mxu0 0
    %437 = vmatprep.subr.bf16.mxu0 0
    %438 = vmatpush1.bf16.msra.mxu0 0
    %439 = vmatprep.subr.bf16.mxu0 0
    %440 = vmatpush1.bf16.msra.mxu0 0
    %441 = vmatprep.subr.bf16.mxu0 0
    %442 = vmatpush1.bf16.msra.mxu0 0
    %443 = vmatprep.mubr.bf16.mxu0 0
    %444 = vmatmul.mubr.bf16.gmra.mrb[0].mxu0 %v409
    %v445 = vpop.f32.mrb[0].mxu0
    %v446 = vadd.f32 %v361, %v445
    %v447 = vpop.f32.mrb[0].mxu0
    %v448 = vadd.f32 %v365, %v447
    %v449 = vpop.f32.mrb[0].mxu0
    %v450 = vpop.f32.mrb[0].mxu0
    %451 = vdwg.mxu0
    %v452 = vld [vmem:[#allocation11] sm:$0xff]
    %v453 = vld [vmem:[#allocation11 + $0x8] sm:$0xff]
    %v454 = vld [vmem:[#allocation11 + $0x10] sm:$0xff]
    %v455 = vld [vmem:[#allocation11 + $0x18] sm:$0xff]
    %v456 = vld [vmem:[#allocation11 + $0x20] sm:$0xff]
    %v457 = vld [vmem:[#allocation11 + $0x28] sm:$0xff]
    %v458 = vld [vmem:[#allocation11 + $0x30] sm:$0xff]
    %v459 = vld [vmem:[#allocation11 + $0x38] sm:$0xff]
    %v460 = vld [vmem:[#allocation11 + $0x40] sm:$0xff]
    %v461 = vld [vmem:[#allocation11 + $0x48] sm:$0xff]
    %v462 = vld [vmem:[#allocation11 + $0x50] sm:$0xff]
    %v463 = vld [vmem:[#allocation11 + $0x58] sm:$0xff]
    %v464 = vld [vmem:[#allocation11 + $0x60] sm:$0xff]
    %v465 = vld [vmem:[#allocation11 + $0x68] sm:$0xff]
    %v466 = vld [vmem:[#allocation11 + $0x70] sm:$0xff]
    %v467 = vld [vmem:[#allocation11 + $0x78] sm:$0xff]
    %v468 = vld [vmem:[#allocation11 + $0x80] sm:$0xff]
    %v469 = vld [vmem:[#allocation11 + $0x88] sm:$0xff]
    %v470 = vld [vmem:[#allocation11 + $0x90] sm:$0xff]
    %v471 = vld [vmem:[#allocation11 + $0x98] sm:$0xff]
    %v472 = vld [vmem:[#allocation11 + $0xa0] sm:$0xff]
    %v473 = vld [vmem:[#allocation11 + $0xa8] sm:$0xff]
    %v474 = vld [vmem:[#allocation11 + $0xb0] sm:$0xff]
    %v475 = vld [vmem:[#allocation11 + $0xb8] sm:$0xff]
    %v476 = vld [vmem:[#allocation11 + $0xc0] sm:$0xff]
    %v477 = vld [vmem:[#allocation11 + $0xc8] sm:$0xff]
    %v478 = vld [vmem:[#allocation11 + $0xd0] sm:$0xff]
    %v479 = vld [vmem:[#allocation11 + $0xd8] sm:$0xff]
    %v480 = vld [vmem:[#allocation11 + $0xe0] sm:$0xff]
    %v481 = vld [vmem:[#allocation11 + $0xe8] sm:$0xff]
    %v482 = vld [vmem:[#allocation11 + $0xf0] sm:$0xff]
    %v483 = vld [vmem:[#allocation11 + $0xf8] sm:$0xff]
    %v484 = vld [vmem:[#allocation11 + $0x100] sm:$0xff]
    %v485 = vld [vmem:[#allocation11 + $0x108] sm:$0xff]
    %v486 = vld [vmem:[#allocation11 + $0x110] sm:$0xff]
    %v487 = vld [vmem:[#allocation11 + $0x118] sm:$0xff]
    %v488 = vld [vmem:[#allocation11 + $0x120] sm:$0xff]
    %v489 = vld [vmem:[#allocation11 + $0x128] sm:$0xff]
    %v490 = vld [vmem:[#allocation11 + $0x130] sm:$0xff]
    %v491 = vld [vmem:[#allocation11 + $0x138] sm:$0xff]
    %v492 = vld [vmem:[#allocation11 + $0x140] sm:$0xff]
    %v493 = vld [vmem:[#allocation11 + $0x148] sm:$0xff]
    %v494 = vld [vmem:[#allocation11 + $0x150] sm:$0xff]
    %v495 = vld [vmem:[#allocation11 + $0x158] sm:$0xff]
    %v496 = vld [vmem:[#allocation11 + $0x160] sm:$0xff]
    %v497 = vld [vmem:[#allocation11 + $0x168] sm:$0xff]
    %v498 = vld [vmem:[#allocation11 + $0x170] sm:$0xff]
    %v499 = vld [vmem:[#allocation11 + $0x178] sm:$0xff]
    %v500 = vld [vmem:[#allocation11 + $0x180] sm:$0xff]
    %v501 = vld [vmem:[#allocation11 + $0x188] sm:$0xff]
    %v502 = vld [vmem:[#allocation11 + $0x190] sm:$0xff]
    %v503 = vld [vmem:[#allocation11 + $0x198] sm:$0xff]
    %v504 = vld [vmem:[#allocation11 + $0x1a0] sm:$0xff]
    %v505 = vld [vmem:[#allocation11 + $0x1a8] sm:$0xff]
    %v506 = vld [vmem:[#allocation11 + $0x1b0] sm:$0xff]
    %v507 = vld [vmem:[#allocation11 + $0x1b8] sm:$0xff]
    %v508 = vld [vmem:[#allocation11 + $0x1c0] sm:$0xff]
    %v509 = vld [vmem:[#allocation11 + $0x1c8] sm:$0xff]
    %v510 = vld [vmem:[#allocation11 + $0x1d0] sm:$0xff]
    %v511 = vld [vmem:[#allocation11 + $0x1d8] sm:$0xff]
    %v512 = vld [vmem:[#allocation11 + $0x1e0] sm:$0xff]
    %v513 = vld [vmem:[#allocation11 + $0x1e8] sm:$0xff]
    %v514 = vld [vmem:[#allocation11 + $0x1f0] sm:$0xff]
    %v515 = vld [vmem:[#allocation11 + $0x1f8] sm:$0xff]
    %v516 = vld [vmem:[#allocation11 + $0x200] sm:$0xff]
    %v517 = vld [vmem:[#allocation11 + $0x208] sm:$0xff]
    %v518 = vld [vmem:[#allocation11 + $0x210] sm:$0xff]
    %v519 = vld [vmem:[#allocation11 + $0x218] sm:$0xff]
    %v520 = vld [vmem:[#allocation11 + $0x220] sm:$0xff]
    %v521 = vld [vmem:[#allocation11 + $0x228] sm:$0xff]
    %v522 = vld [vmem:[#allocation11 + $0x230] sm:$0xff]
    %v523 = vld [vmem:[#allocation11 + $0x238] sm:$0xff]
    %v524 = vld [vmem:[#allocation11 + $0x240] sm:$0xff]
    %v525 = vld [vmem:[#allocation11 + $0x248] sm:$0xff]
    %v526 = vld [vmem:[#allocation11 + $0x250] sm:$0xff]
    %v527 = vld [vmem:[#allocation11 + $0x258] sm:$0xff]
    %v528 = vld [vmem:[#allocation11 + $0x260] sm:$0xff]
    %v529 = vld [vmem:[#allocation11 + $0x268] sm:$0xff]
    %v530 = vld [vmem:[#allocation11 + $0x270] sm:$0xff]
    %v531 = vld [vmem:[#allocation11 + $0x278] sm:$0xff]
    %v532 = vld [vmem:[#allocation11 + $0x280] sm:$0xff]
    %v533 = vld [vmem:[#allocation11 + $0x288] sm:$0xff]
    %v534 = vld [vmem:[#allocation11 + $0x290] sm:$0xff]
    %v535 = vld [vmem:[#allocation11 + $0x298] sm:$0xff]
    %v536 = vld [vmem:[#allocation11 + $0x2a0] sm:$0xff]
    %v537 = vld [vmem:[#allocation11 + $0x2a8] sm:$0xff]
    %v538 = vld [vmem:[#allocation11 + $0x2b0] sm:$0xff]
    %v539 = vld [vmem:[#allocation11 + $0x2b8] sm:$0xff]
    %v540 = vld [vmem:[#allocation11 + $0x2c0] sm:$0xff]
    %v541 = vld [vmem:[#allocation11 + $0x2c8] sm:$0xff]
    %v542 = vld [vmem:[#allocation11 + $0x2d0] sm:$0xff]
    %v543 = vld [vmem:[#allocation11 + $0x2d8] sm:$0xff]
    %v544 = vld [vmem:[#allocation11 + $0x2e0] sm:$0xff]
    %v545 = vld [vmem:[#allocation11 + $0x2e8] sm:$0xff]
    %v546 = vld [vmem:[#allocation11 + $0x2f0] sm:$0xff]
    %v547 = vld [vmem:[#allocation11 + $0x2f8] sm:$0xff]
    %v548 = vld [vmem:[#allocation11 + $0x300] sm:$0xff]
    %v549 = vld [vmem:[#allocation11 + $0x308] sm:$0xff]
    %v550 = vld [vmem:[#allocation11 + $0x310] sm:$0xff]
    %v551 = vld [vmem:[#allocation11 + $0x318] sm:$0xff]
    %v552 = vld [vmem:[#allocation11 + $0x320] sm:$0xff]
    %v553 = vld [vmem:[#allocation11 + $0x328] sm:$0xff]
    %v554 = vld [vmem:[#allocation11 + $0x330] sm:$0xff]
    %v555 = vld [vmem:[#allocation11 + $0x338] sm:$0xff]
    %v556 = vld [vmem:[#allocation11 + $0x340] sm:$0xff]
    %v557 = vld [vmem:[#allocation11 + $0x348] sm:$0xff]
    %v558 = vld [vmem:[#allocation11 + $0x350] sm:$0xff]
    %v559 = vld [vmem:[#allocation11 + $0x358] sm:$0xff]
    %v560 = vld [vmem:[#allocation11 + $0x360] sm:$0xff]
    %v561 = vld [vmem:[#allocation11 + $0x368] sm:$0xff]
    %v562 = vld [vmem:[#allocation11 + $0x370] sm:$0xff]
    %v563 = vld [vmem:[#allocation11 + $0x378] sm:$0xff]
    %v564 = vld [vmem:[#allocation11 + $0x380] sm:$0xff]
    %v565 = vld [vmem:[#allocation11 + $0x388] sm:$0xff]
    %v566 = vld [vmem:[#allocation11 + $0x390] sm:$0xff]
    %v567 = vld [vmem:[#allocation11 + $0x398] sm:$0xff]
    %v568 = vld [vmem:[#allocation11 + $0x3a0] sm:$0xff]
    %v569 = vld [vmem:[#allocation11 + $0x3a8] sm:$0xff]
    %v570 = vld [vmem:[#allocation11 + $0x3b0] sm:$0xff]
    %v571 = vld [vmem:[#allocation11 + $0x3b8] sm:$0xff]
    %v572 = vld [vmem:[#allocation11 + $0x3c0] sm:$0xff]
    %v573 = vld [vmem:[#allocation11 + $0x3c8] sm:$0xff]
    %v574 = vld [vmem:[#allocation11 + $0x3d0] sm:$0xff]
    %v575 = vld [vmem:[#allocation11 + $0x3d8] sm:$0xff]
    %v576 = vld [vmem:[#allocation11 + $0x3e0] sm:$0xff]
    %v577 = vld [vmem:[#allocation11 + $0x3e8] sm:$0xff]
    %v578 = vld [vmem:[#allocation11 + $0x3f0] sm:$0xff]
    %v579 = vld [vmem:[#allocation11 + $0x3f8] sm:$0xff]
    %581 = vrot.lane.b32.xlu0 %v347, 96
    %v582 = vpop.permute.xlu0 %581
    %v711 = vunpack.c.l.b16 %v452
    %v712 = vunpack.c.h.b16 %v452
    %v713 = vunpack.c.l.b16 %v453
    %v714 = vunpack.c.h.b16 %v453
    %v715 = vunpack.c.l.b16 %v454
    %v716 = vunpack.c.h.b16 %v454
    %v717 = vunpack.c.l.b16 %v455
    %v718 = vunpack.c.h.b16 %v455
    %v719 = vunpack.c.l.b16 %v456
    %v720 = vunpack.c.h.b16 %v456
    %v721 = vunpack.c.l.b16 %v457
    %v722 = vunpack.c.h.b16 %v457
    %v723 = vunpack.c.l.b16 %v458
    %v724 = vunpack.c.h.b16 %v458
    %v725 = vunpack.c.l.b16 %v459
    %v726 = vunpack.c.h.b16 %v459
    %v727 = vunpack.c.l.b16 %v460
    %v728 = vunpack.c.h.b16 %v460
    %v729 = vunpack.c.l.b16 %v461
    %v730 = vunpack.c.h.b16 %v461
    %v731 = vunpack.c.l.b16 %v462
    %v732 = vunpack.c.h.b16 %v462
    %v733 = vunpack.c.l.b16 %v463
    %v734 = vunpack.c.h.b16 %v463
    %v735 = vunpack.c.l.b16 %v464
    %v736 = vunpack.c.h.b16 %v464
    %v737 = vunpack.c.l.b16 %v465
    %v738 = vunpack.c.h.b16 %v465
    %v739 = vunpack.c.l.b16 %v466
    %v740 = vunpack.c.h.b16 %v466
    %v741 = vunpack.c.l.b16 %v467
    %v742 = vunpack.c.h.b16 %v467
    %v743 = vunpack.c.l.b16 %v468
    %v744 = vunpack.c.h.b16 %v468
    %v745 = vunpack.c.l.b16 %v469
    %v746 = vunpack.c.h.b16 %v469
    %v747 = vunpack.c.l.b16 %v470
    %v748 = vunpack.c.h.b16 %v470
    %v749 = vunpack.c.l.b16 %v471
    %v750 = vunpack.c.h.b16 %v471
    %v751 = vunpack.c.l.b16 %v472
    %v752 = vunpack.c.h.b16 %v472
    %v753 = vunpack.c.l.b16 %v473
    %v754 = vunpack.c.h.b16 %v473
    %v755 = vunpack.c.l.b16 %v474
    %v756 = vunpack.c.h.b16 %v474
    %v757 = vunpack.c.l.b16 %v475
    %v758 = vunpack.c.h.b16 %v475
    %v759 = vunpack.c.l.b16 %v476
    %v760 = vunpack.c.h.b16 %v476
    %v761 = vunpack.c.l.b16 %v477
    %v762 = vunpack.c.h.b16 %v477
    %v763 = vunpack.c.l.b16 %v478
    %v764 = vunpack.c.h.b16 %v478
    %v765 = vunpack.c.l.b16 %v479
    %v766 = vunpack.c.h.b16 %v479
    %v767 = vunpack.c.l.b16 %v480
    %v768 = vunpack.c.h.b16 %v480
    %v769 = vunpack.c.l.b16 %v481
    %v770 = vunpack.c.h.b16 %v481
    %v771 = vunpack.c.l.b16 %v482
    %v772 = vunpack.c.h.b16 %v482
    %v773 = vunpack.c.l.b16 %v483
    %v774 = vunpack.c.h.b16 %v483
    %v775 = vunpack.c.l.b16 %v484
    %v776 = vunpack.c.h.b16 %v484
    %v777 = vunpack.c.l.b16 %v485
    %v778 = vunpack.c.h.b16 %v485
    %v779 = vunpack.c.l.b16 %v486
    %v780 = vunpack.c.h.b16 %v486
    %v781 = vunpack.c.l.b16 %v487
    %v782 = vunpack.c.h.b16 %v487
    %v783 = vunpack.c.l.b16 %v488
    %v784 = vunpack.c.h.b16 %v488
    %v785 = vunpack.c.l.b16 %v489
    %v786 = vunpack.c.h.b16 %v489
    %v787 = vunpack.c.l.b16 %v490
    %v788 = vunpack.c.h.b16 %v490
    %v789 = vunpack.c.l.b16 %v491
    %v790 = vunpack.c.h.b16 %v491
    %v791 = vunpack.c.l.b16 %v492
    %v792 = vunpack.c.h.b16 %v492
    %v793 = vunpack.c.l.b16 %v493
    %v794 = vunpack.c.h.b16 %v493
    %v795 = vunpack.c.l.b16 %v494
    %v796 = vunpack.c.h.b16 %v494
    %v797 = vunpack.c.l.b16 %v495
    %v798 = vunpack.c.h.b16 %v495
    %v799 = vunpack.c.l.b16 %v496
    %v800 = vunpack.c.h.b16 %v496
    %v801 = vunpack.c.l.b16 %v497
    %v802 = vunpack.c.h.b16 %v497
    %v803 = vunpack.c.l.b16 %v498
    %v804 = vunpack.c.h.b16 %v498
    %v805 = vunpack.c.l.b16 %v499
    %v806 = vunpack.c.h.b16 %v499
    %v807 = vunpack.c.l.b16 %v500
    %v808 = vunpack.c.h.b16 %v500
    %v809 = vunpack.c.l.b16 %v501
    %v810 = vunpack.c.h.b16 %v501
    %v811 = vunpack.c.l.b16 %v502
    %v812 = vunpack.c.h.b16 %v502
    %v813 = vunpack.c.l.b16 %v503
    %v814 = vunpack.c.h.b16 %v503
    %v815 = vunpack.c.l.b16 %v504
    %v816 = vunpack.c.h.b16 %v504
    %v817 = vunpack.c.l.b16 %v505
    %v818 = vunpack.c.h.b16 %v505
    %v819 = vunpack.c.l.b16 %v506
    %v820 = vunpack.c.h.b16 %v506
    %v821 = vunpack.c.l.b16 %v507
    %v822 = vunpack.c.h.b16 %v507
    %v823 = vunpack.c.l.b16 %v508
    %v824 = vunpack.c.h.b16 %v508
    %v825 = vunpack.c.l.b16 %v509
    %v826 = vunpack.c.h.b16 %v509
    %v827 = vunpack.c.l.b16 %v510
    %v828 = vunpack.c.h.b16 %v510
    %v829 = vunpack.c.l.b16 %v511
    %v830 = vunpack.c.h.b16 %v511
    %v831 = vunpack.c.l.b16 %v512
    %v832 = vunpack.c.h.b16 %v512
    %v833 = vunpack.c.l.b16 %v513
    %v834 = vunpack.c.h.b16 %v513
    %v835 = vunpack.c.l.b16 %v514
    %v836 = vunpack.c.h.b16 %v514
    %v837 = vunpack.c.l.b16 %v515
    %v838 = vunpack.c.h.b16 %v515
    %v839 = vunpack.c.l.b16 %v516
    %v840 = vunpack.c.h.b16 %v516
    %v841 = vunpack.c.l.b16 %v517
    %v842 = vunpack.c.h.b16 %v517
    %v843 = vunpack.c.l.b16 %v518
    %v844 = vunpack.c.h.b16 %v518
    %v845 = vunpack.c.l.b16 %v519
    %v846 = vunpack.c.h.b16 %v519
    %v847 = vunpack.c.l.b16 %v520
    %v848 = vunpack.c.h.b16 %v520
    %v849 = vunpack.c.l.b16 %v521
    %v850 = vunpack.c.h.b16 %v521
    %v851 = vunpack.c.l.b16 %v522
    %v852 = vunpack.c.h.b16 %v522
    %v853 = vunpack.c.l.b16 %v523
    %v854 = vunpack.c.h.b16 %v523
    %v855 = vunpack.c.l.b16 %v524
    %v856 = vunpack.c.h.b16 %v524
    %v857 = vunpack.c.l.b16 %v525
    %v858 = vunpack.c.h.b16 %v525
    %v859 = vunpack.c.l.b16 %v526
    %v860 = vunpack.c.h.b16 %v526
    %v861 = vunpack.c.l.b16 %v527
    %v862 = vunpack.c.h.b16 %v527
    %v863 = vunpack.c.l.b16 %v528
    %v864 = vunpack.c.h.b16 %v528
    %v865 = vunpack.c.l.b16 %v529
    %v866 = vunpack.c.h.b16 %v529
    %v867 = vunpack.c.l.b16 %v530
    %v868 = vunpack.c.h.b16 %v530
    %v869 = vunpack.c.l.b16 %v531
    %v870 = vunpack.c.h.b16 %v531
    %v871 = vunpack.c.l.b16 %v532
    %v872 = vunpack.c.h.b16 %v532
    %v873 = vunpack.c.l.b16 %v533
    %v874 = vunpack.c.h.b16 %v533
    %v875 = vunpack.c.l.b16 %v534
    %v876 = vunpack.c.h.b16 %v534
    %v877 = vunpack.c.l.b16 %v535
    %v878 = vunpack.c.h.b16 %v535
    %v879 = vunpack.c.l.b16 %v536
    %v880 = vunpack.c.h.b16 %v536
    %v881 = vunpack.c.l.b16 %v537
    %v882 = vunpack.c.h.b16 %v537
    %v883 = vunpack.c.l.b16 %v538
    %v884 = vunpack.c.h.b16 %v538
    %v885 = vunpack.c.l.b16 %v539
    %v886 = vunpack.c.h.b16 %v539
    %v887 = vunpack.c.l.b16 %v540
    %v888 = vunpack.c.h.b16 %v540
    %v889 = vunpack.c.l.b16 %v541
    %v890 = vunpack.c.h.b16 %v541
    %v891 = vunpack.c.l.b16 %v542
    %v892 = vunpack.c.h.b16 %v542
    %v893 = vunpack.c.l.b16 %v543
    %v894 = vunpack.c.h.b16 %v543
    %v895 = vunpack.c.l.b16 %v544
    %v896 = vunpack.c.h.b16 %v544
    %v897 = vunpack.c.l.b16 %v545
    %v898 = vunpack.c.h.b16 %v545
    %v899 = vunpack.c.l.b16 %v546
    %v900 = vunpack.c.h.b16 %v546
    %v901 = vunpack.c.l.b16 %v547
    %v902 = vunpack.c.h.b16 %v547
    %v903 = vunpack.c.l.b16 %v548
    %v904 = vunpack.c.h.b16 %v548
    %v905 = vunpack.c.l.b16 %v549
    %v906 = vunpack.c.h.b16 %v549
    %v907 = vunpack.c.l.b16 %v550
    %v908 = vunpack.c.h.b16 %v550
    %v909 = vunpack.c.l.b16 %v551
    %v910 = vunpack.c.h.b16 %v551
    %v911 = vunpack.c.l.b16 %v552
    %v912 = vunpack.c.h.b16 %v552
    %v913 = vunpack.c.l.b16 %v553
    %v914 = vunpack.c.h.b16 %v553
    %v915 = vunpack.c.l.b16 %v554
    %v916 = vunpack.c.h.b16 %v554
    %v917 = vunpack.c.l.b16 %v555
    %v918 = vunpack.c.h.b16 %v555
    %v919 = vunpack.c.l.b16 %v556
    %v920 = vunpack.c.h.b16 %v556
    %v921 = vunpack.c.l.b16 %v557
    %v922 = vunpack.c.h.b16 %v557
    %v923 = vunpack.c.l.b16 %v558
    %v924 = vunpack.c.h.b16 %v558
    %v925 = vunpack.c.l.b16 %v559
    %v926 = vunpack.c.h.b16 %v559
    %v927 = vunpack.c.l.b16 %v560
    %v928 = vunpack.c.h.b16 %v560
    %v929 = vunpack.c.l.b16 %v561
    %v930 = vunpack.c.h.b16 %v561
    %v931 = vunpack.c.l.b16 %v562
    %v932 = vunpack.c.h.b16 %v562
    %v933 = vunpack.c.l.b16 %v563
    %v934 = vunpack.c.h.b16 %v563
    %v935 = vunpack.c.l.b16 %v564
    %v936 = vunpack.c.h.b16 %v564
    %v937 = vunpack.c.l.b16 %v565
    %v938 = vunpack.c.h.b16 %v565
    %v939 = vunpack.c.l.b16 %v566
    %v940 = vunpack.c.h.b16 %v566
    %v941 = vunpack.c.l.b16 %v567
    %v942 = vunpack.c.h.b16 %v567
    %v943 = vunpack.c.l.b16 %v568
    %v944 = vunpack.c.h.b16 %v568
    %v945 = vunpack.c.l.b16 %v569
    %v946 = vunpack.c.h.b16 %v569
    %v947 = vunpack.c.l.b16 %v570
    %v948 = vunpack.c.h.b16 %v570
    %v949 = vunpack.c.l.b16 %v571
    %v950 = vunpack.c.h.b16 %v571
    %v951 = vunpack.c.l.b16 %v572
    %v952 = vunpack.c.h.b16 %v572
    %v953 = vunpack.c.l.b16 %v573
    %v954 = vunpack.c.h.b16 %v573
    %v955 = vunpack.c.l.b16 %v574
    %v956 = vunpack.c.h.b16 %v574
    %v957 = vunpack.c.l.b16 %v575
    %v958 = vunpack.c.h.b16 %v575
    %v959 = vunpack.c.l.b16 %v576
    %v960 = vunpack.c.h.b16 %v576
    %v961 = vunpack.c.l.b16 %v577
    %v962 = vunpack.c.h.b16 %v577
    %v963 = vunpack.c.l.b16 %v578
    %v964 = vunpack.c.h.b16 %v578
    %v965 = vunpack.c.l.b16 %v579
    %v966 = vunpack.c.h.b16 %v579
    %v967 = vpack.c.b16 %v775, %v711
    %v968 = vpack.c.b16 %v776, %v712
    %v969 = vpack.c.b16 %v777, %v713
    %v970 = vpack.c.b16 %v778, %v714
    %v971 = vpack.c.b16 %v779, %v715
    %v972 = vpack.c.b16 %v780, %v716
    %v973 = vpack.c.b16 %v781, %v717
    %v974 = vpack.c.b16 %v782, %v718
    %v975 = vpack.c.b16 %v783, %v719
    %v976 = vpack.c.b16 %v784, %v720
    %v977 = vpack.c.b16 %v785, %v721
    %v978 = vpack.c.b16 %v786, %v722
    %v979 = vpack.c.b16 %v787, %v723
    %v980 = vpack.c.b16 %v788, %v724
    %v981 = vpack.c.b16 %v789, %v725
    %v982 = vpack.c.b16 %v790, %v726
    %v983 = vpack.c.b16 %v791, %v727
    %v984 = vpack.c.b16 %v792, %v728
    %v985 = vpack.c.b16 %v793, %v729
    %v986 = vpack.c.b16 %v794, %v730
    %v987 = vpack.c.b16 %v795, %v731
    %v988 = vpack.c.b16 %v796, %v732
    %v989 = vpack.c.b16 %v797, %v733
    %v990 = vpack.c.b16 %v798, %v734
    %v991 = vpack.c.b16 %v799, %v735
    %v992 = vpack.c.b16 %v800, %v736
    %v993 = vpack.c.b16 %v801, %v737
    %v994 = vpack.c.b16 %v802, %v738
    %v995 = vpack.c.b16 %v803, %v739
    %v996 = vpack.c.b16 %v804, %v740
    %v997 = vpack.c.b16 %v805, %v741
    %v998 = vpack.c.b16 %v806, %v742
    %v999 = vpack.c.b16 %v807, %v743
    %v1000 = vpack.c.b16 %v808, %v744
    %v1001 = vpack.c.b16 %v809, %v745
    %v1002 = vpack.c.b16 %v810, %v746
    %v1003 = vpack.c.b16 %v811, %v747
    %v1004 = vpack.c.b16 %v812, %v748
    %v1005 = vpack.c.b16 %v813, %v749
    %v1006 = vpack.c.b16 %v814, %v750
    %v1007 = vpack.c.b16 %v815, %v751
    %v1008 = vpack.c.b16 %v816, %v752
    %v1009 = vpack.c.b16 %v817, %v753
    %v1010 = vpack.c.b16 %v818, %v754
    %v1011 = vpack.c.b16 %v819, %v755
    %v1012 = vpack.c.b16 %v820, %v756
    %v1013 = vpack.c.b16 %v821, %v757
    %v1014 = vpack.c.b16 %v822, %v758
    %v1015 = vpack.c.b16 %v823, %v759
    %v1016 = vpack.c.b16 %v824, %v760
    %v1017 = vpack.c.b16 %v825, %v761
    %v1018 = vpack.c.b16 %v826, %v762
    %v1019 = vpack.c.b16 %v827, %v763
    %v1020 = vpack.c.b16 %v828, %v764
    %v1021 = vpack.c.b16 %v829, %v765
    %v1022 = vpack.c.b16 %v830, %v766
    %v1023 = vpack.c.b16 %v831, %v767
    %v1024 = vpack.c.b16 %v832, %v768
    %v1025 = vpack.c.b16 %v833, %v769
    %v1026 = vpack.c.b16 %v834, %v770
    %v1027 = vpack.c.b16 %v835, %v771
    %v1028 = vpack.c.b16 %v836, %v772
    %v1029 = vpack.c.b16 %v837, %v773
    %v1030 = vpack.c.b16 %v838, %v774
    %v1031 = vpack.c.b16 %v903, %v839
    %v1032 = vpack.c.b16 %v904, %v840
    %v1033 = vpack.c.b16 %v905, %v841
    %v1034 = vpack.c.b16 %v906, %v842
    %v1035 = vpack.c.b16 %v907, %v843
    %v1036 = vpack.c.b16 %v908, %v844
    %v1037 = vpack.c.b16 %v909, %v845
    %v1038 = vpack.c.b16 %v910, %v846
    %v1039 = vpack.c.b16 %v911, %v847
    %v1040 = vpack.c.b16 %v912, %v848
    %v1041 = vpack.c.b16 %v913, %v849
    %v1042 = vpack.c.b16 %v914, %v850
    %v1043 = vpack.c.b16 %v915, %v851
    %v1044 = vpack.c.b16 %v916, %v852
    %v1045 = vpack.c.b16 %v917, %v853
    %v1046 = vpack.c.b16 %v918, %v854
    %v1047 = vpack.c.b16 %v919, %v855
    %v1048 = vpack.c.b16 %v920, %v856
    %v1049 = vpack.c.b16 %v921, %v857
    %v1050 = vpack.c.b16 %v922, %v858
    %v1051 = vpack.c.b16 %v923, %v859
    %v1052 = vpack.c.b16 %v924, %v860
    %v1053 = vpack.c.b16 %v925, %v861
    %v1054 = vpack.c.b16 %v926, %v862
    %v1055 = vpack.c.b16 %v927, %v863
    %v1056 = vpack.c.b16 %v928, %v864
    %v1057 = vpack.c.b16 %v929, %v865
    %v1058 = vpack.c.b16 %v930, %v866
    %v1059 = vpack.c.b16 %v931, %v867
    %v1060 = vpack.c.b16 %v932, %v868
    %v1061 = vpack.c.b16 %v933, %v869
    %v1062 = vpack.c.b16 %v934, %v870
    %v1063 = vpack.c.b16 %v935, %v871
    %v1064 = vpack.c.b16 %v936, %v872
    %v1065 = vpack.c.b16 %v937, %v873
    %v1066 = vpack.c.b16 %v938, %v874
    %v1067 = vpack.c.b16 %v939, %v875
    %v1068 = vpack.c.b16 %v940, %v876
    %v1069 = vpack.c.b16 %v941, %v877
    %v1070 = vpack.c.b16 %v942, %v878
    %v1071 = vpack.c.b16 %v943, %v879
    %v1072 = vpack.c.b16 %v944, %v880
    %v1073 = vpack.c.b16 %v945, %v881
    %v1074 = vpack.c.b16 %v946, %v882
    %v1075 = vpack.c.b16 %v947, %v883
    %v1076 = vpack.c.b16 %v948, %v884
    %v1077 = vpack.c.b16 %v949, %v885
    %v1078 = vpack.c.b16 %v950, %v886
    %v1079 = vpack.c.b16 %v951, %v887
    %v1080 = vpack.c.b16 %v952, %v888
    %v1081 = vpack.c.b16 %v953, %v889
    %v1082 = vpack.c.b16 %v954, %v890
    %v1083 = vpack.c.b16 %v955, %v891
    %v1084 = vpack.c.b16 %v956, %v892
    %v1085 = vpack.c.b16 %v957, %v893
    %v1086 = vpack.c.b16 %v958, %v894
    %v1087 = vpack.c.b16 %v959, %v895
    %v1088 = vpack.c.b16 %v960, %v896
    %v1089 = vpack.c.b16 %v961, %v897
    %v1090 = vpack.c.b16 %v962, %v898
    %v1091 = vpack.c.b16 %v963, %v899
    %v1092 = vpack.c.b16 %v964, %v900
    %v1093 = vpack.c.b16 %v965, %v901
    %v1094 = vpack.c.b16 %v966, %v902
    %vm1223 = vcmask 261120
    %v1225 = vsel %vm1223, %v582, 0
    %1227 = vmatprep.subr.bf16.mxu0 %v968
    %1228 = vmatpush1.bf16.msra.mxu0 %v967
    %1229 = vmatprep.subr.bf16.mxu0 %v1032
    %1230 = vmatpush1.bf16.msra.mxu0 %v1031
    %1231 = vmatprep.subr.bf16.mxu0 0
    %1232 = vmatpush1.bf16.msra.mxu0 0
    %1233 = vmatprep.subr.bf16.mxu0 0
    %1234 = vmatpush1.bf16.msra.mxu0 0
    %1235 = vmatprep.subr.bf16.mxu0 0
    %1236 = vmatpush1.bf16.msra.mxu0 0
    %1237 = vmatprep.subr.bf16.mxu0 0
    %1238 = vmatpush1.bf16.msra.mxu0 0
    %1239 = vmatprep.subr.bf16.mxu0 0
    %1240 = vmatpush1.bf16.msra.mxu0 0
    %1241 = vmatprep.subr.bf16.mxu0 0
    %1242 = vmatpush1.bf16.msra.mxu0 0
    %1243 = vmatprep.subr.bf16.mxu0 0
    %1244 = vmatpush1.bf16.msra.mxu0 0
    %1245 = vmatprep.subr.bf16.mxu0 0
    %1246 = vmatpush1.bf16.msra.mxu0 0
    %1247 = vmatprep.subr.bf16.mxu0 0
    %1248 = vmatpush1.bf16.msra.mxu0 0
    %1249 = vmatprep.subr.bf16.mxu0 0
    %1250 = vmatpush1.bf16.msra.mxu0 0
    %1251 = vmatprep.subr.bf16.mxu0 0
    %1252 = vmatpush1.bf16.msra.mxu0 0
    %1253 = vmatprep.subr.bf16.mxu0 0
    %1254 = vmatpush1.bf16.msra.mxu0 0
    %1255 = vmatprep.subr.bf16.mxu0 0
    %1256 = vmatpush1.bf16.msra.mxu0 0
    %1257 = vmatprep.subr.bf16.mxu0 0
    %1258 = vmatpush1.bf16.msra.mxu0 0
    %1259 = vmatprep.mubr.bf16.mxu0 0
    %1260 = vmatmul.mubr.bf16.gmra.mrb[0].mxu0 %v1225
    %v1261 = vpop.f32.mrb[0].mxu0
    %v1262 = vadd.f32 0.0, %v1261
    %v1263 = vpop.f32.mrb[0].mxu0
    %v1264 = vadd.f32 0.0, %v1263
    %v1265 = vpop.f32.mrb[0].mxu0
    %v1266 = vpop.f32.mrb[0].mxu0
    %1267 = vdwg.mxu0
    %1268 = vmatprep.subr.bf16.mxu0 %v970
    %1269 = vmatpush1.bf16.msra.mxu0 %v969
    %1270 = vmatprep.subr.bf16.mxu0 %v1034
    %1271 = vmatpush1.bf16.msra.mxu0 %v1033
    %1272 = vmatprep.subr.bf16.mxu0 0
    %1273 = vmatpush1.bf16.msra.mxu0 0
    %1274 = vmatprep.subr.bf16.mxu0 0
    %1275 = vmatpush1.bf16.msra.mxu0 0
    %1276 = vmatprep.subr.bf16.mxu0 0
    %1277 = vmatpush1.bf16.msra.mxu0 0
    %1278 = vmatprep.subr.bf16.mxu0 0
    %1279 = vmatpush1.bf16.msra.mxu0 0
    %1280 = vmatprep.subr.bf16.mxu0 0
    %1281 = vmatpush1.bf16.msra.mxu0 0
    %1282 = vmatprep.subr.bf16.mxu0 0
    %1283 = vmatpush1.bf16.msra.mxu0 0
    %1284 = vmatprep.subr.bf16.mxu0 0
    %1285 = vmatpush1.bf16.msra.mxu0 0
    %1286 = vmatprep.subr.bf16.mxu0 0
    %1287 = vmatpush1.bf16.msra.mxu0 0
    %1288 = vmatprep.subr.bf16.mxu0 0
    %1289 = vmatpush1.bf16.msra.mxu0 0
    %1290 = vmatprep.subr.bf16.mxu0 0
    %1291 = vmatpush1.bf16.msra.mxu0 0
    %1292 = vmatprep.subr.bf16.mxu0 0
    %1293 = vmatpush1.bf16.msra.mxu0 0
    %1294 = vmatprep.subr.bf16.mxu0 0
    %1295 = vmatpush1.bf16.msra.mxu0 0
    %1296 = vmatprep.subr.bf16.mxu0 0
    %1297 = vmatpush1.bf16.msra.mxu0 0
    %1298 = vmatprep.subr.bf16.mxu0 0
    %1299 = vmatpush1.bf16.msra.mxu0 0
    %1300 = vmatprep.mubr.bf16.mxu0 0
    %1301 = vmatmul.mubr.bf16.gmra.mrb[0].mxu0 %v1225
    %v1302 = vpop.f32.mrb[0].mxu0
    %v1303 = vadd.f32 0.0, %v1302
    %v1304 = vpop.f32.mrb[0].mxu0
    %v1305 = vadd.f32 0.0, %v1304
    %v1306 = vpop.f32.mrb[0].mxu0
    %v1307 = vpop.f32.mrb[0].mxu0
    %1308 = vdwg.mxu0
    %1309 = vmatprep.subr.bf16.mxu0 %v972
    %1310 = vmatpush1.bf16.msra.mxu0 %v971
    %1311 = vmatprep.subr.bf16.mxu0 %v1036
    %1312 = vmatpush1.bf16.msra.mxu0 %v1035
    %1313 = vmatprep.subr.bf16.mxu0 0
    %1314 = vmatpush1.bf16.msra.mxu0 0
    %1315 = vmatprep.subr.bf16.mxu0 0
    %1316 = vmatpush1.bf16.msra.mxu0 0
    %1317 = vmatprep.subr.bf16.mxu0 0
    %1318 = vmatpush1.bf16.msra.mxu0 0
    %1319 = vmatprep.subr.bf16.mxu0 0
    %1320 = vmatpush1.bf16.msra.mxu0 0
    %1321 = vmatprep.subr.bf16.mxu0 0
    %1322 = vmatpush1.bf16.msra.mxu0 0
    %1323 = vmatprep.subr.bf16.mxu0 0
    %1324 = vmatpush1.bf16.msra.mxu0 0
    %1325 = vmatprep.subr.bf16.mxu0 0
    %1326 = vmatpush1.bf16.msra.mxu0 0
    %1327 = vmatprep.subr.bf16.mxu0 0
    %1328 = vmatpush1.bf16.msra.mxu0 0
    %1329 = vmatprep.subr.bf16.mxu0 0
    %1330 = vmatpush1.bf16.msra.mxu0 0
    %1331 = vmatprep.subr.bf16.mxu0 0
    %1332 = vmatpush1.bf16.msra.mxu0 0
    %1333 = vmatprep.subr.bf16.mxu0 0
    %1334 = vmatpush1.bf16.msra.mxu0 0
    %1335 = vmatprep.subr.bf16.mxu0 0
    %1336 = vmatpush1.bf16.msra.mxu0 0
    %1337 = vmatprep.subr.bf16.mxu0 0
    %1338 = vmatpush1.bf16.msra.mxu0 0
    %1339 = vmatprep.subr.bf16.mxu0 0
    %1340 = vmatpush1.bf16.msra.mxu0 0
    %1341 = vmatprep.mubr.bf16.mxu0 0
    %1342 = vmatmul.mubr.bf16.gmra.mrb[0].mxu0 %v1225
    %v1343 = vpop.f32.mrb[0].mxu0
    %v1344 = vadd.f32 0.0, %v1343
    %v1345 = vpop.f32.mrb[0].mxu0
    %v1346 = vadd.f32 0.0, %v1345
    %v1347 = vpop.f32.mrb[0].mxu0
    %v1348 = vpop.f32.mrb[0].mxu0
    %1349 = vdwg.mxu0
    %1350 = vmatprep.subr.bf16.mxu0 %v974
    %1351 = vmatpush1.bf16.msra.mxu0 %v973
    %1352 = vmatprep.subr.bf16.mxu0 %v1038
    %1353 = vmatpush1.bf16.msra.mxu0 %v1037
    %1354 = vmatprep.subr.bf16.mxu0 0
    %1355 = vmatpush1.bf16.msra.mxu0 0
    %1356 = vmatprep.subr.bf16.mxu0 0
    %1357 = vmatpush1.bf16.msra.mxu0 0
    %1358 = vmatprep.subr.bf16.mxu0 0
    %1359 = vmatpush1.bf16.msra.mxu0 0
    %1360 = vmatprep.subr.bf16.mxu0 0
    %1361 = vmatpush1.bf16.msra.mxu0 0
    %1362 = vmatprep.subr.bf16.mxu0 0
    %1363 = vmatpush1.bf16.msra.mxu0 0
    %1364 = vmatprep.subr.bf16.mxu0 0
    %1365 = vmatpush1.bf16.msra.mxu0 0
    %1366 = vmatprep.subr.bf16.mxu0 0
    %1367 = vmatpush1.bf16.msra.mxu0 0
    %1368 = vmatprep.subr.bf16.mxu0 0
    %1369 = vmatpush1.bf16.msra.mxu0 0
    %1370 = vmatprep.subr.bf16.mxu0 0
    %1371 = vmatpush1.bf16.msra.mxu0 0
    %1372 = vmatprep.subr.bf16.mxu0 0
    %1373 = vmatpush1.bf16.msra.mxu0 0
    %1374 = vmatprep.subr.bf16.mxu0 0
    %1375 = vmatpush1.bf16.msra.mxu0 0
    %1376 = vmatprep.subr.bf16.mxu0 0
    %1377 = vmatpush1.bf16.msra.mxu0 0
    %1378 = vmatprep.subr.bf16.mxu0 0
    %1379 = vmatpush1.bf16.msra.mxu0 0
    %1380 = vmatprep.subr.bf16.mxu0 0
    %1381 = vmatpush1.bf16.msra.mxu0 0
    %1382 = vmatprep.mubr.bf16.mxu0 0
    %1383 = vmatmul.mubr.bf16.gmra.mrb[0].mxu0 %v1225
    %v1384 = vpop.f32.mrb[0].mxu0
    %v1385 = vadd.f32 0.0, %v1384
    %v1386 = vpop.f32.mrb[0].mxu0
    %v1387 = vadd.f32 0.0, %v1386
    %v1388 = vpop.f32.mrb[0].mxu0
    %v1389 = vpop.f32.mrb[0].mxu0
    %1390 = vdwg.mxu0
    %1391 = vmatprep.subr.bf16.mxu0 %v976
    %1392 = vmatpush1.bf16.msra.mxu0 %v975
    %1393 = vmatprep.subr.bf16.mxu0 %v1040
    %1394 = vmatpush1.bf16.msra.mxu0 %v1039
    %1395 = vmatprep.subr.bf16.mxu0 0
    %1396 = vmatpush1.bf16.msra.mxu0 0
    %1397 = vmatprep.subr.bf16.mxu0 0
    %1398 = vmatpush1.bf16.msra.mxu0 0
    %1399 = vmatprep.subr.bf16.mxu0 0
    %1400 = vmatpush1.bf16.msra.mxu0 0
    %1401 = vmatprep.subr.bf16.mxu0 0
    %1402 = vmatpush1.bf16.msra.mxu0 0
    %1403 = vmatprep.subr.bf16.mxu0 0
    %1404 = vmatpush1.bf16.msra.mxu0 0
    %1405 = vmatprep.subr.bf16.mxu0 0
    %1406 = vmatpush1.bf16.msra.mxu0 0
    %1407 = vmatprep.subr.bf16.mxu0 0
    %1408 = vmatpush1.bf16.msra.mxu0 0
    %1409 = vmatprep.subr.bf16.mxu0 0
    %1410 = vmatpush1.bf16.msra.mxu0 0
    %1411 = vmatprep.subr.bf16.mxu0 0
    %1412 = vmatpush1.bf16.msra.mxu0 0
    %1413 = vmatprep.subr.bf16.mxu0 0
    %1414 = vmatpush1.bf16.msra.mxu0 0
    %1415 = vmatprep.subr.bf16.mxu0 0
    %1416 = vmatpush1.bf16.msra.mxu0 0
    %1417 = vmatprep.subr.bf16.mxu0 0
    %1418 = vmatpush1.bf16.msra.mxu0 0
    %1419 = vmatprep.subr.bf16.mxu0 0
    %1420 = vmatpush1.bf16.msra.mxu0 0
    %1421 = vmatprep.subr.bf16.mxu0 0
    %1422 = vmatpush1.bf16.msra.mxu0 0
    %1423 = vmatprep.mubr.bf16.mxu0 0
    %1424 = vmatmul.mubr.bf16.gmra.mrb[0].mxu0 %v1225
    %v1425 = vpop.f32.mrb[0].mxu0
    %v1426 = vadd.f32 0.0, %v1425
    %v1427 = vpop.f32.mrb[0].mxu0
    %v1428 = vadd.f32 0.0, %v1427
    %v1429 = vpop.f32.mrb[0].mxu0
    %v1430 = vpop.f32.mrb[0].mxu0
    %1431 = vdwg.mxu0
    %1432 = vmatprep.subr.bf16.mxu0 %v978
    %1433 = vmatpush1.bf16.msra.mxu0 %v977
    %1434 = vmatprep.subr.bf16.mxu0 %v1042
    %1435 = vmatpush1.bf16.msra.mxu0 %v1041
    %1436 = vmatprep.subr.bf16.mxu0 0
    %1437 = vmatpush1.bf16.msra.mxu0 0
    %1438 = vmatprep.subr.bf16.mxu0 0
    %1439 = vmatpush1.bf16.msra.mxu0 0
    %1440 = vmatprep.subr.bf16.mxu0 0
    %1441 = vmatpush1.bf16.msra.mxu0 0
    %1442 = vmatprep.subr.bf16.mxu0 0
    %1443 = vmatpush1.bf16.msra.mxu0 0
    %1444 = vmatprep.subr.bf16.mxu0 0
    %1445 = vmatpush1.bf16.msra.mxu0 0
    %1446 = vmatprep.subr.bf16.mxu0 0
    %1447 = vmatpush1.bf16.msra.mxu0 0
    %1448 = vmatprep.subr.bf16.mxu0 0
    %1449 = vmatpush1.bf16.msra.mxu0 0
    %1450 = vmatprep.subr.bf16.mxu0 0
    %1451 = vmatpush1.bf16.msra.mxu0 0
    %1452 = vmatprep.subr.bf16.mxu0 0
    %1453 = vmatpush1.bf16.msra.mxu0 0
    %1454 = vmatprep.subr.bf16.mxu0 0
    %1455 = vmatpush1.bf16.msra.mxu0 0
    %1456 = vmatprep.subr.bf16.mxu0 0
    %1457 = vmatpush1.bf16.msra.mxu0 0
    %1458 = vmatprep.subr.bf16.mxu0 0
    %1459 = vmatpush1.bf16.msra.mxu0 0
    %1460 = vmatprep.subr.bf16.mxu0 0
    %1461 = vmatpush1.bf16.msra.mxu0 0
    %1462 = vmatprep.subr.bf16.mxu0 0
    %1463 = vmatpush1.bf16.msra.mxu0 0
    %1464 = vmatprep.mubr.bf16.mxu0 0
    %1465 = vmatmul.mubr.bf16.gmra.mrb[0].mxu0 %v1225
    %v1466 = vpop.f32.mrb[0].mxu0
    %v1467 = vadd.f32 0.0, %v1466
    %v1468 = vpop.f32.mrb[0].mxu0
    %v1469 = vadd.f32 0.0, %v1468
    %v1470 = vpop.f32.mrb[0].mxu0
    %v1471 = vpop.f32.mrb[0].mxu0
    %1472 = vdwg.mxu0
    %1473 = vmatprep.subr.bf16.mxu0 %v980
    %1474 = vmatpush1.bf16.msra.mxu0 %v979
    %1475 = vmatprep.subr.bf16.mxu0 %v1044
    %1476 = vmatpush1.bf16.msra.mxu0 %v1043
    %1477 = vmatprep.subr.bf16.mxu0 0
    %1478 = vmatpush1.bf16.msra.mxu0 0
    %1479 = vmatprep.subr.bf16.mxu0 0
    %1480 = vmatpush1.bf16.msra.mxu0 0
    %1481 = vmatprep.subr.bf16.mxu0 0
    %1482 = vmatpush1.bf16.msra.mxu0 0
    %1483 = vmatprep.subr.bf16.mxu0 0
    %1484 = vmatpush1.bf16.msra.mxu0 0
    %1485 = vmatprep.subr.bf16.mxu0 0
    %1486 = vmatpush1.bf16.msra.mxu0 0
    %1487 = vmatprep.subr.bf16.mxu0 0
    %1488 = vmatpush1.bf16.msra.mxu0 0
    %1489 = vmatprep.subr.bf16.mxu0 0
    %1490 = vmatpush1.bf16.msra.mxu0 0
    %1491 = vmatprep.subr.bf16.mxu0 0
    %1492 = vmatpush1.bf16.msra.mxu0 0
    %1493 = vmatprep.subr.bf16.mxu0 0
    %1494 = vmatpush1.bf16.msra.mxu0 0
    %1495 = vmatprep.subr.bf16.mxu0 0
    %1496 = vmatpush1.bf16.msra.mxu0 0
    %1497 = vmatprep.subr.bf16.mxu0 0
    %1498 = vmatpush1.bf16.msra.mxu0 0
    %1499 = vmatprep.subr.bf16.mxu0 0
    %1500 = vmatpush1.bf16.msra.mxu0 0
    %1501 = vmatprep.subr.bf16.mxu0 0
    %1502 = vmatpush1.bf16.msra.mxu0 0
    %1503 = vmatprep.subr.bf16.mxu0 0
    %1504 = vmatpush1.bf16.msra.mxu0 0
    %1505 = vmatprep.mubr.bf16.mxu0 0
    %1506 = vmatmul.mubr.bf16.gmra.mrb[0].mxu0 %v1225
    %v1507 = vpop.f32.mrb[0].mxu0
    %v1508 = vadd.f32 0.0, %v1507
    %v1509 = vpop.f32.mrb[0].mxu0
    %v1510 = vadd.f32 0.0, %v1509
    %v1511 = vpop.f32.mrb[0].mxu0
    %v1512 = vpop.f32.mrb[0].mxu0
    %1513 = vdwg.mxu0
    %1514 = vmatprep.subr.bf16.mxu0 %v982
    %1515 = vmatpush1.bf16.msra.mxu0 %v981
    %1516 = vmatprep.subr.bf16.mxu0 %v1046
    %1517 = vmatpush1.bf16.msra.mxu0 %v1045
    %1518 = vmatprep.subr.bf16.mxu0 0
    %1519 = vmatpush1.bf16.msra.mxu0 0
    %1520 = vmatprep.subr.bf16.mxu0 0
    %1521 = vmatpush1.bf16.msra.mxu0 0
    %1522 = vmatprep.subr.bf16.mxu0 0
    %1523 = vmatpush1.bf16.msra.mxu0 0
    %1524 = vmatprep.subr.bf16.mxu0 0
    %1525 = vmatpush1.bf16.msra.mxu0 0
    %1526 = vmatprep.subr.bf16.mxu0 0
    %1527 = vmatpush1.bf16.msra.mxu0 0
    %1528 = vmatprep.subr.bf16.mxu0 0
    %1529 = vmatpush1.bf16.msra.mxu0 0
    %1530 = vmatprep.subr.bf16.mxu0 0
    %1531 = vmatpush1.bf16.msra.mxu0 0
    %1532 = vmatprep.subr.bf16.mxu0 0
    %1533 = vmatpush1.bf16.msra.mxu0 0
    %1534 = vmatprep.subr.bf16.mxu0 0
    %1535 = vmatpush1.bf16.msra.mxu0 0
    %1536 = vmatprep.subr.bf16.mxu0 0
    %1537 = vmatpush1.bf16.msra.mxu0 0
    %1538 = vmatprep.subr.bf16.mxu0 0
    %1539 = vmatpush1.bf16.msra.mxu0 0
    %1540 = vmatprep.subr.bf16.mxu0 0
    %1541 = vmatpush1.bf16.msra.mxu0 0
    %1542 = vmatprep.subr.bf16.mxu0 0
    %1543 = vmatpush1.bf16.msra.mxu0 0
    %1544 = vmatprep.subr.bf16.mxu0 0
    %1545 = vmatpush1.bf16.msra.mxu0 0
    %1546 = vmatprep.mubr.bf16.mxu0 0
    %1547 = vmatmul.mubr.bf16.gmra.mrb[0].mxu0 %v1225
    %v1548 = vpop.f32.mrb[0].mxu0
    %v1549 = vadd.f32 0.0, %v1548
    %v1550 = vpop.f32.mrb[0].mxu0
    %v1551 = vadd.f32 0.0, %v1550
    %v1552 = vpop.f32.mrb[0].mxu0
    %v1553 = vpop.f32.mrb[0].mxu0
    %1554 = vdwg.mxu0
    %1555 = vmatprep.subr.bf16.mxu0 %v984
    %1556 = vmatpush1.bf16.msra.mxu0 %v983
    %1557 = vmatprep.subr.bf16.mxu0 %v1048
    %1558 = vmatpush1.bf16.msra.mxu0 %v1047
    %1559 = vmatprep.subr.bf16.mxu0 0
    %1560 = vmatpush1.bf16.msra.mxu0 0
    %1561 = vmatprep.subr.bf16.mxu0 0
    %1562 = vmatpush1.bf16.msra.mxu0 0
    %1563 = vmatprep.subr.bf16.mxu0 0
    %1564 = vmatpush1.bf16.msra.mxu0 0
    %1565 = vmatprep.subr.bf16.mxu0 0
    %1566 = vmatpush1.bf16.msra.mxu0 0
    %1567 = vmatprep.subr.bf16.mxu0 0
    %1568 = vmatpush1.bf16.msra.mxu0 0
    %1569 = vmatprep.subr.bf16.mxu0 0
    %1570 = vmatpush1.bf16.msra.mxu0 0
    %1571 = vmatprep.subr.bf16.mxu0 0
    %1572 = vmatpush1.bf16.msra.mxu0 0
    %1573 = vmatprep.subr.bf16.mxu0 0
    %1574 = vmatpush1.bf16.msra.mxu0 0
    %1575 = vmatprep.subr.bf16.mxu0 0
    %1576 = vmatpush1.bf16.msra.mxu0 0
    %1577 = vmatprep.subr.bf16.mxu0 0
    %1578 = vmatpush1.bf16.msra.mxu0 0
    %1579 = vmatprep.subr.bf16.mxu0 0
    %1580 = vmatpush1.bf16.msra.mxu0 0
    %1581 = vmatprep.subr.bf16.mxu0 0
    %1582 = vmatpush1.bf16.msra.mxu0 0
    %1583 = vmatprep.subr.bf16.mxu0 0
    %1584 = vmatpush1.bf16.msra.mxu0 0
    %1585 = vmatprep.subr.bf16.mxu0 0
    %1586 = vmatpush1.bf16.msra.mxu0 0
    %1587 = vmatprep.mubr.bf16.mxu0 0
    %1588 = vmatmul.mubr.bf16.gmra.mrb[0].mxu0 %v1225
    %v1589 = vpop.f32.mrb[0].mxu0
    %v1590 = vadd.f32 0.0, %v1589
    %v1591 = vpop.f32.mrb[0].mxu0
    %v1592 = vadd.f32 0.0, %v1591
    %v1593 = vpop.f32.mrb[0].mxu0
    %v1594 = vpop.f32.mrb[0].mxu0
    %1595 = vdwg.mxu0
    %1596 = vmatprep.subr.bf16.mxu0 %v986
    %1597 = vmatpush1.bf16.msra.mxu0 %v985
    %1598 = vmatprep.subr.bf16.mxu0 %v1050
    %1599 = vmatpush1.bf16.msra.mxu0 %v1049
    %1600 = vmatprep.subr.bf16.mxu0 0
    %1601 = vmatpush1.bf16.msra.mxu0 0
    %1602 = vmatprep.subr.bf16.mxu0 0
    %1603 = vmatpush1.bf16.msra.mxu0 0
    %1604 = vmatprep.subr.bf16.mxu0 0
    %1605 = vmatpush1.bf16.msra.mxu0 0
    %1606 = vmatprep.subr.bf16.mxu0 0
    %1607 = vmatpush1.bf16.msra.mxu0 0
    %1608 = vmatprep.subr.bf16.mxu0 0
    %1609 = vmatpush1.bf16.msra.mxu0 0
    %1610 = vmatprep.subr.bf16.mxu0 0
    %1611 = vmatpush1.bf16.msra.mxu0 0
    %1612 = vmatprep.subr.bf16.mxu0 0
    %1613 = vmatpush1.bf16.msra.mxu0 0
    %1614 = vmatprep.subr.bf16.mxu0 0
    %1615 = vmatpush1.bf16.msra.mxu0 0
    %1616 = vmatprep.subr.bf16.mxu0 0
    %1617 = vmatpush1.bf16.msra.mxu0 0
    %1618 = vmatprep.subr.bf16.mxu0 0
    %1619 = vmatpush1.bf16.msra.mxu0 0
    %1620 = vmatprep.subr.bf16.mxu0 0
    %1621 = vmatpush1.bf16.msra.mxu0 0
    %1622 = vmatprep.subr.bf16.mxu0 0
    %1623 = vmatpush1.bf16.msra.mxu0 0
    %1624 = vmatprep.subr.bf16.mxu0 0
    %1625 = vmatpush1.bf16.msra.mxu0 0
    %1626 = vmatprep.subr.bf16.mxu0 0
    %1627 = vmatpush1.bf16.msra.mxu0 0
    %1628 = vmatprep.mubr.bf16.mxu0 0
    %1629 = vmatmul.mubr.bf16.gmra.mrb[0].mxu0 %v1225
    %v1630 = vpop.f32.mrb[0].mxu0
    %v1631 = vadd.f32 0.0, %v1630
    %v1632 = vpop.f32.mrb[0].mxu0
    %v1633 = vadd.f32 0.0, %v1632
    %v1634 = vpop.f32.mrb[0].mxu0
    %v1635 = vpop.f32.mrb[0].mxu0
    %1636 = vdwg.mxu0
    %1637 = vmatprep.subr.bf16.mxu0 %v988
    %1638 = vmatpush1.bf16.msra.mxu0 %v987
    %1639 = vmatprep.subr.bf16.mxu0 %v1052
    %1640 = vmatpush1.bf16.msra.mxu0 %v1051
    %1641 = vmatprep.subr.bf16.mxu0 0
    %1642 = vmatpush1.bf16.msra.mxu0 0
    %1643 = vmatprep.subr.bf16.mxu0 0
    %1644 = vmatpush1.bf16.msra.mxu0 0
    %1645 = vmatprep.subr.bf16.mxu0 0
    %1646 = vmatpush1.bf16.msra.mxu0 0
    %1647 = vmatprep.subr.bf16.mxu0 0
    %1648 = vmatpush1.bf16.msra.mxu0 0
    %1649 = vmatprep.subr.bf16.mxu0 0
    %1650 = vmatpush1.bf16.msra.mxu0 0
    %1651 = vmatprep.subr.bf16.mxu0 0
    %1652 = vmatpush1.bf16.msra.mxu0 0
    %1653 = vmatprep.subr.bf16.mxu0 0
    %1654 = vmatpush1.bf16.msra.mxu0 0
    %1655 = vmatprep.subr.bf16.mxu0 0
    %1656 = vmatpush1.bf16.msra.mxu0 0
    %1657 = vmatprep.subr.bf16.mxu0 0
    %1658 = vmatpush1.bf16.msra.mxu0 0
    %1659 = vmatprep.subr.bf16.mxu0 0
    %1660 = vmatpush1.bf16.msra.mxu0 0
    %1661 = vmatprep.subr.bf16.mxu0 0
    %1662 = vmatpush1.bf16.msra.mxu0 0
    %1663 = vmatprep.subr.bf16.mxu0 0
    %1664 = vmatpush1.bf16.msra.mxu0 0
    %1665 = vmatprep.subr.bf16.mxu0 0
    %1666 = vmatpush1.bf16.msra.mxu0 0
    %1667 = vmatprep.subr.bf16.mxu0 0
    %1668 = vmatpush1.bf16.msra.mxu0 0
    %1669 = vmatprep.mubr.bf16.mxu0 0
    %1670 = vmatmul.mubr.bf16.gmra.mrb[0].mxu0 %v1225
    %v1671 = vpop.f32.mrb[0].mxu0
    %v1672 = vadd.f32 0.0, %v1671
    %v1673 = vpop.f32.mrb[0].mxu0
    %v1674 = vadd.f32 0.0, %v1673
    %v1675 = vpop.f32.mrb[0].mxu0
    %v1676 = vpop.f32.mrb[0].mxu0
    %1677 = vdwg.mxu0
    %1678 = vmatprep.subr.bf16.mxu0 %v990
    %1679 = vmatpush1.bf16.msra.mxu0 %v989
    %1680 = vmatprep.subr.bf16.mxu0 %v1054
    %1681 = vmatpush1.bf16.msra.mxu0 %v1053
    %1682 = vmatprep.subr.bf16.mxu0 0
    %1683 = vmatpush1.bf16.msra.mxu0 0
    %1684 = vmatprep.subr.bf16.mxu0 0
    %1685 = vmatpush1.bf16.msra.mxu0 0
    %1686 = vmatprep.subr.bf16.mxu0 0
    %1687 = vmatpush1.bf16.msra.mxu0 0
    %1688 = vmatprep.subr.bf16.mxu0 0
    %1689 = vmatpush1.bf16.msra.mxu0 0
    %1690 = vmatprep.subr.bf16.mxu0 0
    %1691 = vmatpush1.bf16.msra.mxu0 0
    %1692 = vmatprep.subr.bf16.mxu0 0
    %1693 = vmatpush1.bf16.msra.mxu0 0
    %1694 = vmatprep.subr.bf16.mxu0 0
    %1695 = vmatpush1.bf16.msra.mxu0 0
    %1696 = vmatprep.subr.bf16.mxu0 0
    %1697 = vmatpush1.bf16.msra.mxu0 0
    %1698 = vmatprep.subr.bf16.mxu0 0
    %1699 = vmatpush1.bf16.msra.mxu0 0
    %1700 = vmatprep.subr.bf16.mxu0 0
    %1701 = vmatpush1.bf16.msra.mxu0 0
    %1702 = vmatprep.subr.bf16.mxu0 0
    %1703 = vmatpush1.bf16.msra.mxu0 0
    %1704 = vmatprep.subr.bf16.mxu0 0
    %1705 = vmatpush1.bf16.msra.mxu0 0
    %1706 = vmatprep.subr.bf16.mxu0 0
    %1707 = vmatpush1.bf16.msra.mxu0 0
    %1708 = vmatprep.subr.bf16.mxu0 0
    %1709 = vmatpush1.bf16.msra.mxu0 0
    %1710 = vmatprep.mubr.bf16.mxu0 0
    %1711 = vmatmul.mubr.bf16.gmra.mrb[0].mxu0 %v1225
    %v1712 = vpop.f32.mrb[0].mxu0
    %v1713 = vadd.f32 0.0, %v1712
    %v1714 = vpop.f32.mrb[0].mxu0
    %v1715 = vadd.f32 0.0, %v1714
    %v1716 = vpop.f32.mrb[0].mxu0
    %v1717 = vpop.f32.mrb[0].mxu0
    %1718 = vdwg.mxu0
    %1719 = vmatprep.subr.bf16.mxu0 %v992
    %1720 = vmatpush1.bf16.msra.mxu0 %v991
    %1721 = vmatprep.subr.bf16.mxu0 %v1056
    %1722 = vmatpush1.bf16.msra.mxu0 %v1055
    %1723 = vmatprep.subr.bf16.mxu0 0
    %1724 = vmatpush1.bf16.msra.mxu0 0
    %1725 = vmatprep.subr.bf16.mxu0 0
    %1726 = vmatpush1.bf16.msra.mxu0 0
    %1727 = vmatprep.subr.bf16.mxu0 0
    %1728 = vmatpush1.bf16.msra.mxu0 0
    %1729 = vmatprep.subr.bf16.mxu0 0
    %1730 = vmatpush1.bf16.msra.mxu0 0
    %1731 = vmatprep.subr.bf16.mxu0 0
    %1732 = vmatpush1.bf16.msra.mxu0 0
    %1733 = vmatprep.subr.bf16.mxu0 0
    %1734 = vmatpush1.bf16.msra.mxu0 0
    %1735 = vmatprep.subr.bf16.mxu0 0
    %1736 = vmatpush1.bf16.msra.mxu0 0
    %1737 = vmatprep.subr.bf16.mxu0 0
    %1738 = vmatpush1.bf16.msra.mxu0 0
    %1739 = vmatprep.subr.bf16.mxu0 0
    %1740 = vmatpush1.bf16.msra.mxu0 0
    %1741 = vmatprep.subr.bf16.mxu0 0
    %1742 = vmatpush1.bf16.msra.mxu0 0
    %1743 = vmatprep.subr.bf16.mxu0 0
    %1744 = vmatpush1.bf16.msra.mxu0 0
    %1745 = vmatprep.subr.bf16.mxu0 0
    %1746 = vmatpush1.bf16.msra.mxu0 0
    %1747 = vmatprep.subr.bf16.mxu0 0
    %1748 = vmatpush1.bf16.msra.mxu0 0
    %1749 = vmatprep.subr.bf16.mxu0 0
    %1750 = vmatpush1.bf16.msra.mxu0 0
    %1751 = vmatprep.mubr.bf16.mxu0 0
    %1752 = vmatmul.mubr.bf16.gmra.mrb[0].mxu0 %v1225
    %v1753 = vpop.f32.mrb[0].mxu0
    %v1754 = vadd.f32 0.0, %v1753
    %v1755 = vpop.f32.mrb[0].mxu0
    %v1756 = vadd.f32 0.0, %v1755
    %v1757 = vpop.f32.mrb[0].mxu0
    %v1758 = vpop.f32.mrb[0].mxu0
    %1759 = vdwg.mxu0
    %1760 = vmatprep.subr.bf16.mxu0 %v994
    %1761 = vmatpush1.bf16.msra.mxu0 %v993
    %1762 = vmatprep.subr.bf16.mxu0 %v1058
    %1763 = vmatpush1.bf16.msra.mxu0 %v1057
    %1764 = vmatprep.subr.bf16.mxu0 0
    %1765 = vmatpush1.bf16.msra.mxu0 0
    %1766 = vmatprep.subr.bf16.mxu0 0
    %1767 = vmatpush1.bf16.msra.mxu0 0
    %1768 = vmatprep.subr.bf16.mxu0 0
    %1769 = vmatpush1.bf16.msra.mxu0 0
    %1770 = vmatprep.subr.bf16.mxu0 0
    %1771 = vmatpush1.bf16.msra.mxu0 0
    %1772 = vmatprep.subr.bf16.mxu0 0
    %1773 = vmatpush1.bf16.msra.mxu0 0
    %1774 = vmatprep.subr.bf16.mxu0 0
    %1775 = vmatpush1.bf16.msra.mxu0 0
    %1776 = vmatprep.subr.bf16.mxu0 0
    %1777 = vmatpush1.bf16.msra.mxu0 0
    %1778 = vmatprep.subr.bf16.mxu0 0
    %1779 = vmatpush1.bf16.msra.mxu0 0
    %1780 = vmatprep.subr.bf16.mxu0 0
    %1781 = vmatpush1.bf16.msra.mxu0 0
    %1782 = vmatprep.subr.bf16.mxu0 0
    %1783 = vmatpush1.bf16.msra.mxu0 0
    %1784 = vmatprep.subr.bf16.mxu0 0
    %1785 = vmatpush1.bf16.msra.mxu0 0
    %1786 = vmatprep.subr.bf16.mxu0 0
    %1787 = vmatpush1.bf16.msra.mxu0 0
    %1788 = vmatprep.subr.bf16.mxu0 0
    %1789 = vmatpush1.bf16.msra.mxu0 0
    %1790 = vmatprep.subr.bf16.mxu0 0
    %1791 = vmatpush1.bf16.msra.mxu0 0
    %1792 = vmatprep.mubr.bf16.mxu0 0
    %1793 = vmatmul.mubr.bf16.gmra.mrb[0].mxu0 %v1225
    %v1794 = vpop.f32.mrb[0].mxu0
    %v1795 = vadd.f32 0.0, %v1794
    %v1796 = vpop.f32.mrb[0].mxu0
    %v1797 = vadd.f32 0.0, %v1796
    %v1798 = vpop.f32.mrb[0].mxu0
    %v1799 = vpop.f32.mrb[0].mxu0
    %1800 = vdwg.mxu0
    %1801 = vmatprep.subr.bf16.mxu0 %v996
    %1802 = vmatpush1.bf16.msra.mxu0 %v995
    %1803 = vmatprep.subr.bf16.mxu0 %v1060
    %1804 = vmatpush1.bf16.msra.mxu0 %v1059
    %1805 = vmatprep.subr.bf16.mxu0 0
    %1806 = vmatpush1.bf16.msra.mxu0 0
    %1807 = vmatprep.subr.bf16.mxu0 0
    %1808 = vmatpush1.bf16.msra.mxu0 0
    %1809 = vmatprep.subr.bf16.mxu0 0
    %1810 = vmatpush1.bf16.msra.mxu0 0
    %1811 = vmatprep.subr.bf16.mxu0 0
    %1812 = vmatpush1.bf16.msra.mxu0 0
    %1813 = vmatprep.subr.bf16.mxu0 0
    %1814 = vmatpush1.bf16.msra.mxu0 0
    %1815 = vmatprep.subr.bf16.mxu0 0
    %1816 = vmatpush1.bf16.msra.mxu0 0
    %1817 = vmatprep.subr.bf16.mxu0 0
    %1818 = vmatpush1.bf16.msra.mxu0 0
    %1819 = vmatprep.subr.bf16.mxu0 0
    %1820 = vmatpush1.bf16.msra.mxu0 0
    %1821 = vmatprep.subr.bf16.mxu0 0
    %1822 = vmatpush1.bf16.msra.mxu0 0
    %1823 = vmatprep.subr.bf16.mxu0 0
    %1824 = vmatpush1.bf16.msra.mxu0 0
    %1825 = vmatprep.subr.bf16.mxu0 0
    %1826 = vmatpush1.bf16.msra.mxu0 0
    %1827 = vmatprep.subr.bf16.mxu0 0
    %1828 = vmatpush1.bf16.msra.mxu0 0
    %1829 = vmatprep.subr.bf16.mxu0 0
    %1830 = vmatpush1.bf16.msra.mxu0 0
    %1831 = vmatprep.subr.bf16.mxu0 0
    %1832 = vmatpush1.bf16.msra.mxu0 0
    %1833 = vmatprep.mubr.bf16.mxu0 0
    %1834 = vmatmul.mubr.bf16.gmra.mrb[0].mxu0 %v1225
    %v1835 = vpop.f32.mrb[0].mxu0
    %v1836 = vadd.f32 0.0, %v1835
    %v1837 = vpop.f32.mrb[0].mxu0
    %v1838 = vadd.f32 0.0, %v1837
    %v1839 = vpop.f32.mrb[0].mxu0
    %v1840 = vpop.f32.mrb[0].mxu0
    %1841 = vdwg.mxu0
    %1842 = vmatprep.subr.bf16.mxu0 %v998
    %1843 = vmatpush1.bf16.msra.mxu0 %v997
    %1844 = vmatprep.subr.bf16.mxu0 %v1062
    %1845 = vmatpush1.bf16.msra.mxu0 %v1061
    %1846 = vmatprep.subr.bf16.mxu0 0
    %1847 = vmatpush1.bf16.msra.mxu0 0
    %1848 = vmatprep.subr.bf16.mxu0 0
    %1849 = vmatpush1.bf16.msra.mxu0 0
    %1850 = vmatprep.subr.bf16.mxu0 0
    %1851 = vmatpush1.bf16.msra.mxu0 0
    %1852 = vmatprep.subr.bf16.mxu0 0
    %1853 = vmatpush1.bf16.msra.mxu0 0
    %1854 = vmatprep.subr.bf16.mxu0 0
    %1855 = vmatpush1.bf16.msra.mxu0 0
    %1856 = vmatprep.subr.bf16.mxu0 0
    %1857 = vmatpush1.bf16.msra.mxu0 0
    %1858 = vmatprep.subr.bf16.mxu0 0
    %1859 = vmatpush1.bf16.msra.mxu0 0
    %1860 = vmatprep.subr.bf16.mxu0 0
    %1861 = vmatpush1.bf16.msra.mxu0 0
    %1862 = vmatprep.subr.bf16.mxu0 0
    %1863 = vmatpush1.bf16.msra.mxu0 0
    %1864 = vmatprep.subr.bf16.mxu0 0
    %1865 = vmatpush1.bf16.msra.mxu0 0
    %1866 = vmatprep.subr.bf16.mxu0 0
    %1867 = vmatpush1.bf16.msra.mxu0 0
    %1868 = vmatprep.subr.bf16.mxu0 0
    %1869 = vmatpush1.bf16.msra.mxu0 0
    %1870 = vmatprep.subr.bf16.mxu0 0
    %1871 = vmatpush1.bf16.msra.mxu0 0
    %1872 = vmatprep.subr.bf16.mxu0 0
    %1873 = vmatpush1.bf16.msra.mxu0 0
    %1874 = vmatprep.mubr.bf16.mxu0 0
    %1875 = vmatmul.mubr.bf16.gmra.mrb[0].mxu0 %v1225
    %v1876 = vpop.f32.mrb[0].mxu0
    %v1877 = vadd.f32 0.0, %v1876
    %v1878 = vpop.f32.mrb[0].mxu0
    %v1879 = vadd.f32 0.0, %v1878
    %v1880 = vpop.f32.mrb[0].mxu0
    %v1881 = vpop.f32.mrb[0].mxu0
    %1882 = vdwg.mxu0
    %1883 = vmatprep.subr.bf16.mxu0 %v1000
    %1884 = vmatpush1.bf16.msra.mxu0 %v999
    %1885 = vmatprep.subr.bf16.mxu0 %v1064
    %1886 = vmatpush1.bf16.msra.mxu0 %v1063
    %1887 = vmatprep.subr.bf16.mxu0 0
    %1888 = vmatpush1.bf16.msra.mxu0 0
    %1889 = vmatprep.subr.bf16.mxu0 0
    %1890 = vmatpush1.bf16.msra.mxu0 0
    %1891 = vmatprep.subr.bf16.mxu0 0
    %1892 = vmatpush1.bf16.msra.mxu0 0
    %1893 = vmatprep.subr.bf16.mxu0 0
    %1894 = vmatpush1.bf16.msra.mxu0 0
    %1895 = vmatprep.subr.bf16.mxu0 0
    %1896 = vmatpush1.bf16.msra.mxu0 0
    %1897 = vmatprep.subr.bf16.mxu0 0
    %1898 = vmatpush1.bf16.msra.mxu0 0
    %1899 = vmatprep.subr.bf16.mxu0 0
    %1900 = vmatpush1.bf16.msra.mxu0 0
    %1901 = vmatprep.subr.bf16.mxu0 0
    %1902 = vmatpush1.bf16.msra.mxu0 0
    %1903 = vmatprep.subr.bf16.mxu0 0
    %1904 = vmatpush1.bf16.msra.mxu0 0
    %1905 = vmatprep.subr.bf16.mxu0 0
    %1906 = vmatpush1.bf16.msra.mxu0 0
    %1907 = vmatprep.subr.bf16.mxu0 0
    %1908 = vmatpush1.bf16.msra.mxu0 0
    %1909 = vmatprep.subr.bf16.mxu0 0
    %1910 = vmatpush1.bf16.msra.mxu0 0
    %1911 = vmatprep.subr.bf16.mxu0 0
    %1912 = vmatpush1.bf16.msra.mxu0 0
    %1913 = vmatprep.subr.bf16.mxu0 0
    %1914 = vmatpush1.bf16.msra.mxu0 0
    %1915 = vmatprep.mubr.bf16.mxu0 0
    %1916 = vmatmul.mubr.bf16.gmra.mrb[0].mxu0 %v1225
    %v1917 = vpop.f32.mrb[0].mxu0
    %v1918 = vadd.f32 0.0, %v1917
    %v1919 = vpop.f32.mrb[0].mxu0
    %v1920 = vadd.f32 0.0, %v1919
    %v1921 = vpop.f32.mrb[0].mxu0
    %v1922 = vpop.f32.mrb[0].mxu0
    %1923 = vdwg.mxu0
    %1924 = vmatprep.subr.bf16.mxu0 %v1002
    %1925 = vmatpush1.bf16.msra.mxu0 %v1001
    %1926 = vmatprep.subr.bf16.mxu0 %v1066
    %1927 = vmatpush1.bf16.msra.mxu0 %v1065
    %1928 = vmatprep.subr.bf16.mxu0 0
    %1929 = vmatpush1.bf16.msra.mxu0 0
    %1930 = vmatprep.subr.bf16.mxu0 0
    %1931 = vmatpush1.bf16.msra.mxu0 0
    %1932 = vmatprep.subr.bf16.mxu0 0
    %1933 = vmatpush1.bf16.msra.mxu0 0
    %1934 = vmatprep.subr.bf16.mxu0 0
    %1935 = vmatpush1.bf16.msra.mxu0 0
    %1936 = vmatprep.subr.bf16.mxu0 0
    %1937 = vmatpush1.bf16.msra.mxu0 0
    %1938 = vmatprep.subr.bf16.mxu0 0
    %1939 = vmatpush1.bf16.msra.mxu0 0
    %1940 = vmatprep.subr.bf16.mxu0 0
    %1941 = vmatpush1.bf16.msra.mxu0 0
    %1942 = vmatprep.subr.bf16.mxu0 0
    %1943 = vmatpush1.bf16.msra.mxu0 0
    %1944 = vmatprep.subr.bf16.mxu0 0
    %1945 = vmatpush1.bf16.msra.mxu0 0
    %1946 = vmatprep.subr.bf16.mxu0 0
    %1947 = vmatpush1.bf16.msra.mxu0 0
    %1948 = vmatprep.subr.bf16.mxu0 0
    %1949 = vmatpush1.bf16.msra.mxu0 0
    %1950 = vmatprep.subr.bf16.mxu0 0
    %1951 = vmatpush1.bf16.msra.mxu0 0
    %1952 = vmatprep.subr.bf16.mxu0 0
    %1953 = vmatpush1.bf16.msra.mxu0 0
    %1954 = vmatprep.subr.bf16.mxu0 0
    %1955 = vmatpush1.bf16.msra.mxu0 0
    %1956 = vmatprep.mubr.bf16.mxu0 0
    %1957 = vmatmul.mubr.bf16.gmra.mrb[0].mxu0 %v1225
    %v1958 = vpop.f32.mrb[0].mxu0
    %v1959 = vadd.f32 0.0, %v1958
    %v1960 = vpop.f32.mrb[0].mxu0
    %v1961 = vadd.f32 0.0, %v1960
    %v1962 = vpop.f32.mrb[0].mxu0
    %v1963 = vpop.f32.mrb[0].mxu0
    %1964 = vdwg.mxu0
    %1965 = vmatprep.subr.bf16.mxu0 %v1004
    %1966 = vmatpush1.bf16.msra.mxu0 %v1003
    %1967 = vmatprep.subr.bf16.mxu0 %v1068
    %1968 = vmatpush1.bf16.msra.mxu0 %v1067
    %1969 = vmatprep.subr.bf16.mxu0 0
    %1970 = vmatpush1.bf16.msra.mxu0 0
    %1971 = vmatprep.subr.bf16.mxu0 0
    %1972 = vmatpush1.bf16.msra.mxu0 0
    %1973 = vmatprep.subr.bf16.mxu0 0
    %1974 = vmatpush1.bf16.msra.mxu0 0
    %1975 = vmatprep.subr.bf16.mxu0 0
    %1976 = vmatpush1.bf16.msra.mxu0 0
    %1977 = vmatprep.subr.bf16.mxu0 0
    %1978 = vmatpush1.bf16.msra.mxu0 0
    %1979 = vmatprep.subr.bf16.mxu0 0
    %1980 = vmatpush1.bf16.msra.mxu0 0
    %1981 = vmatprep.subr.bf16.mxu0 0
    %1982 = vmatpush1.bf16.msra.mxu0 0
    %1983 = vmatprep.subr.bf16.mxu0 0
    %1984 = vmatpush1.bf16.msra.mxu0 0
    %1985 = vmatprep.subr.bf16.mxu0 0
    %1986 = vmatpush1.bf16.msra.mxu0 0
    %1987 = vmatprep.subr.bf16.mxu0 0
    %1988 = vmatpush1.bf16.msra.mxu0 0
    %1989 = vmatprep.subr.bf16.mxu0 0
    %1990 = vmatpush1.bf16.msra.mxu0 0
    %1991 = vmatprep.subr.bf16.mxu0 0
    %1992 = vmatpush1.bf16.msra.mxu0 0
    %1993 = vmatprep.subr.bf16.mxu0 0
    %1994 = vmatpush1.bf16.msra.mxu0 0
    %1995 = vmatprep.subr.bf16.mxu0 0
    %1996 = vmatpush1.bf16.msra.mxu0 0
    %1997 = vmatprep.mubr.bf16.mxu0 0
    %1998 = vmatmul.mubr.bf16.gmra.mrb[0].mxu0 %v1225
    %v1999 = vpop.f32.mrb[0].mxu0
    %v2000 = vadd.f32 0.0, %v1999
    %v2001 = vpop.f32.mrb[0].mxu0
    %v2002 = vadd.f32 0.0, %v2001
    %v2003 = vpop.f32.mrb[0].mxu0
    %v2004 = vpop.f32.mrb[0].mxu0
    %2005 = vdwg.mxu0
    %2006 = vmatprep.subr.bf16.mxu0 %v1006
    %2007 = vmatpush1.bf16.msra.mxu0 %v1005
    %2008 = vmatprep.subr.bf16.mxu0 %v1070
    %2009 = vmatpush1.bf16.msra.mxu0 %v1069
    %2010 = vmatprep.subr.bf16.mxu0 0
    %2011 = vmatpush1.bf16.msra.mxu0 0
    %2012 = vmatprep.subr.bf16.mxu0 0
    %2013 = vmatpush1.bf16.msra.mxu0 0
    %2014 = vmatprep.subr.bf16.mxu0 0
    %2015 = vmatpush1.bf16.msra.mxu0 0
    %2016 = vmatprep.subr.bf16.mxu0 0
    %2017 = vmatpush1.bf16.msra.mxu0 0
    %2018 = vmatprep.subr.bf16.mxu0 0
    %2019 = vmatpush1.bf16.msra.mxu0 0
    %2020 = vmatprep.subr.bf16.mxu0 0
    %2021 = vmatpush1.bf16.msra.mxu0 0
    %2022 = vmatprep.subr.bf16.mxu0 0
    %2023 = vmatpush1.bf16.msra.mxu0 0
    %2024 = vmatprep.subr.bf16.mxu0 0
    %2025 = vmatpush1.bf16.msra.mxu0 0
    %2026 = vmatprep.subr.bf16.mxu0 0
    %2027 = vmatpush1.bf16.msra.mxu0 0
    %2028 = vmatprep.subr.bf16.mxu0 0
    %2029 = vmatpush1.bf16.msra.mxu0 0
    %2030 = vmatprep.subr.bf16.mxu0 0
    %2031 = vmatpush1.bf16.msra.mxu0 0
    %2032 = vmatprep.subr.bf16.mxu0 0
    %2033 = vmatpush1.bf16.msra.mxu0 0
    %2034 = vmatprep.subr.bf16.mxu0 0
    %2035 = vmatpush1.bf16.msra.mxu0 0
    %2036 = vmatprep.subr.bf16.mxu0 0
    %2037 = vmatpush1.bf16.msra.mxu0 0
    %2038 = vmatprep.mubr.bf16.mxu0 0
    %2039 = vmatmul.mubr.bf16.gmra.mrb[0].mxu0 %v1225
    %v2040 = vpop.f32.mrb[0].mxu0
    %v2041 = vadd.f32 0.0, %v2040
    %v2042 = vpop.f32.mrb[0].mxu0
    %v2043 = vadd.f32 0.0, %v2042
    %v2044 = vpop.f32.mrb[0].mxu0
    %v2045 = vpop.f32.mrb[0].mxu0
    %2046 = vdwg.mxu0
    %2047 = vmatprep.subr.bf16.mxu0 %v1008
    %2048 = vmatpush1.bf16.msra.mxu0 %v1007
    %2049 = vmatprep.subr.bf16.mxu0 %v1072
    %2050 = vmatpush1.bf16.msra.mxu0 %v1071
    %2051 = vmatprep.subr.bf16.mxu0 0
    %2052 = vmatpush1.bf16.msra.mxu0 0
    %2053 = vmatprep.subr.bf16.mxu0 0
    %2054 = vmatpush1.bf16.msra.mxu0 0
    %2055 = vmatprep.subr.bf16.mxu0 0
    %2056 = vmatpush1.bf16.msra.mxu0 0
    %2057 = vmatprep.subr.bf16.mxu0 0
    %2058 = vmatpush1.bf16.msra.mxu0 0
    %2059 = vmatprep.subr.bf16.mxu0 0
    %2060 = vmatpush1.bf16.msra.mxu0 0
    %2061 = vmatprep.subr.bf16.mxu0 0
    %2062 = vmatpush1.bf16.msra.mxu0 0
    %2063 = vmatprep.subr.bf16.mxu0 0
    %2064 = vmatpush1.bf16.msra.mxu0 0
    %2065 = vmatprep.subr.bf16.mxu0 0
    %2066 = vmatpush1.bf16.msra.mxu0 0
    %2067 = vmatprep.subr.bf16.mxu0 0
    %2068 = vmatpush1.bf16.msra.mxu0 0
    %2069 = vmatprep.subr.bf16.mxu0 0
    %2070 = vmatpush1.bf16.msra.mxu0 0
    %2071 = vmatprep.subr.bf16.mxu0 0
    %2072 = vmatpush1.bf16.msra.mxu0 0
    %2073 = vmatprep.subr.bf16.mxu0 0
    %2074 = vmatpush1.bf16.msra.mxu0 0
    %2075 = vmatprep.subr.bf16.mxu0 0
    %2076 = vmatpush1.bf16.msra.mxu0 0
    %2077 = vmatprep.subr.bf16.mxu0 0
    %2078 = vmatpush1.bf16.msra.mxu0 0
    %2079 = vmatprep.mubr.bf16.mxu0 0
    %2080 = vmatmul.mubr.bf16.gmra.mrb[0].mxu0 %v1225
    %v2081 = vpop.f32.mrb[0].mxu0
    %v2082 = vadd.f32 0.0, %v2081
    %v2083 = vpop.f32.mrb[0].mxu0
    %v2084 = vadd.f32 0.0, %v2083
    %v2085 = vpop.f32.mrb[0].mxu0
    %v2086 = vpop.f32.mrb[0].mxu0
    %2087 = vdwg.mxu0
    %2088 = vmatprep.subr.bf16.mxu0 %v1010
    %2089 = vmatpush1.bf16.msra.mxu0 %v1009
    %2090 = vmatprep.subr.bf16.mxu0 %v1074
    %2091 = vmatpush1.bf16.msra.mxu0 %v1073
    %2092 = vmatprep.subr.bf16.mxu0 0
    %2093 = vmatpush1.bf16.msra.mxu0 0
    %2094 = vmatprep.subr.bf16.mxu0 0
    %2095 = vmatpush1.bf16.msra.mxu0 0
    %2096 = vmatprep.subr.bf16.mxu0 0
    %2097 = vmatpush1.bf16.msra.mxu0 0
    %2098 = vmatprep.subr.bf16.mxu0 0
    %2099 = vmatpush1.bf16.msra.mxu0 0
    %2100 = vmatprep.subr.bf16.mxu0 0
    %2101 = vmatpush1.bf16.msra.mxu0 0
    %2102 = vmatprep.subr.bf16.mxu0 0
    %2103 = vmatpush1.bf16.msra.mxu0 0
    %2104 = vmatprep.subr.bf16.mxu0 0
    %2105 = vmatpush1.bf16.msra.mxu0 0
    %2106 = vmatprep.subr.bf16.mxu0 0
    %2107 = vmatpush1.bf16.msra.mxu0 0
    %2108 = vmatprep.subr.bf16.mxu0 0
    %2109 = vmatpush1.bf16.msra.mxu0 0
    %2110 = vmatprep.subr.bf16.mxu0 0
    %2111 = vmatpush1.bf16.msra.mxu0 0
    %2112 = vmatprep.subr.bf16.mxu0 0
    %2113 = vmatpush1.bf16.msra.mxu0 0
    %2114 = vmatprep.subr.bf16.mxu0 0
    %2115 = vmatpush1.bf16.msra.mxu0 0
    %2116 = vmatprep.subr.bf16.mxu0 0
    %2117 = vmatpush1.bf16.msra.mxu0 0
    %2118 = vmatprep.subr.bf16.mxu0 0
    %2119 = vmatpush1.bf16.msra.mxu0 0
    %2120 = vmatprep.mubr.bf16.mxu0 0
    %2121 = vmatmul.mubr.bf16.gmra.mrb[0].mxu0 %v1225
    %v2122 = vpop.f32.mrb[0].mxu0
    %v2123 = vadd.f32 0.0, %v2122
    %v2124 = vpop.f32.mrb[0].mxu0
    %v2125 = vadd.f32 0.0, %v2124
    %v2126 = vpop.f32.mrb[0].mxu0
    %v2127 = vpop.f32.mrb[0].mxu0
    %2128 = vdwg.mxu0
    %2129 = vmatprep.subr.bf16.mxu0 %v1012
    %2130 = vmatpush1.bf16.msra.mxu0 %v1011
    %2131 = vmatprep.subr.bf16.mxu0 %v1076
    %2132 = vmatpush1.bf16.msra.mxu0 %v1075
    %2133 = vmatprep.subr.bf16.mxu0 0
    %2134 = vmatpush1.bf16.msra.mxu0 0
    %2135 = vmatprep.subr.bf16.mxu0 0
    %2136 = vmatpush1.bf16.msra.mxu0 0
    %2137 = vmatprep.subr.bf16.mxu0 0
    %2138 = vmatpush1.bf16.msra.mxu0 0
    %2139 = vmatprep.subr.bf16.mxu0 0
    %2140 = vmatpush1.bf16.msra.mxu0 0
    %2141 = vmatprep.subr.bf16.mxu0 0
    %2142 = vmatpush1.bf16.msra.mxu0 0
    %2143 = vmatprep.subr.bf16.mxu0 0
    %2144 = vmatpush1.bf16.msra.mxu0 0
    %2145 = vmatprep.subr.bf16.mxu0 0
    %2146 = vmatpush1.bf16.msra.mxu0 0
    %2147 = vmatprep.subr.bf16.mxu0 0
    %2148 = vmatpush1.bf16.msra.mxu0 0
    %2149 = vmatprep.subr.bf16.mxu0 0
    %2150 = vmatpush1.bf16.msra.mxu0 0
    %2151 = vmatprep.subr.bf16.mxu0 0
    %2152 = vmatpush1.bf16.msra.mxu0 0
    %2153 = vmatprep.subr.bf16.mxu0 0
    %2154 = vmatpush1.bf16.msra.mxu0 0
    %2155 = vmatprep.subr.bf16.mxu0 0
    %2156 = vmatpush1.bf16.msra.mxu0 0
    %2157 = vmatprep.subr.bf16.mxu0 0
    %2158 = vmatpush1.bf16.msra.mxu0 0
    %2159 = vmatprep.subr.bf16.mxu0 0
    %2160 = vmatpush1.bf16.msra.mxu0 0
    %2161 = vmatprep.mubr.bf16.mxu0 0
    %2162 = vmatmul.mubr.bf16.gmra.mrb[0].mxu0 %v1225
    %v2163 = vpop.f32.mrb[0].mxu0
    %v2164 = vadd.f32 0.0, %v2163
    %v2165 = vpop.f32.mrb[0].mxu0
    %v2166 = vadd.f32 0.0, %v2165
    %v2167 = vpop.f32.mrb[0].mxu0
    %v2168 = vpop.f32.mrb[0].mxu0
    %2169 = vdwg.mxu0
    %2170 = vmatprep.subr.bf16.mxu0 %v1014
    %2171 = vmatpush1.bf16.msra.mxu0 %v1013
    %2172 = vmatprep.subr.bf16.mxu0 %v1078
    %2173 = vmatpush1.bf16.msra.mxu0 %v1077
    %2174 = vmatprep.subr.bf16.mxu0 0
    %2175 = vmatpush1.bf16.msra.mxu0 0
    %2176 = vmatprep.subr.bf16.mxu0 0
    %2177 = vmatpush1.bf16.msra.mxu0 0
    %2178 = vmatprep.subr.bf16.mxu0 0
    %2179 = vmatpush1.bf16.msra.mxu0 0
    %2180 = vmatprep.subr.bf16.mxu0 0
    %2181 = vmatpush1.bf16.msra.mxu0 0
    %2182 = vmatprep.subr.bf16.mxu0 0
    %2183 = vmatpush1.bf16.msra.mxu0 0
    %2184 = vmatprep.subr.bf16.mxu0 0
    %2185 = vmatpush1.bf16.msra.mxu0 0
    %2186 = vmatprep.subr.bf16.mxu0 0
    %2187 = vmatpush1.bf16.msra.mxu0 0
    %2188 = vmatprep.subr.bf16.mxu0 0
    %2189 = vmatpush1.bf16.msra.mxu0 0
    %2190 = vmatprep.subr.bf16.mxu0 0
    %2191 = vmatpush1.bf16.msra.mxu0 0
    %2192 = vmatprep.subr.bf16.mxu0 0
    %2193 = vmatpush1.bf16.msra.mxu0 0
    %2194 = vmatprep.subr.bf16.mxu0 0
    %2195 = vmatpush1.bf16.msra.mxu0 0
    %2196 = vmatprep.subr.bf16.mxu0 0
    %2197 = vmatpush1.bf16.msra.mxu0 0
    %2198 = vmatprep.subr.bf16.mxu0 0
    %2199 = vmatpush1.bf16.msra.mxu0 0
    %2200 = vmatprep.subr.bf16.mxu0 0
    %2201 = vmatpush1.bf16.msra.mxu0 0
    %2202 = vmatprep.mubr.bf16.mxu0 0
    %2203 = vmatmul.mubr.bf16.gmra.mrb[0].mxu0 %v1225
    %v2204 = vpop.f32.mrb[0].mxu0
    %v2205 = vadd.f32 0.0, %v2204
    %v2206 = vpop.f32.mrb[0].mxu0
    %v2207 = vadd.f32 0.0, %v2206
    %v2208 = vpop.f32.mrb[0].mxu0
    %v2209 = vpop.f32.mrb[0].mxu0
    %2210 = vdwg.mxu0
    %2211 = vmatprep.subr.bf16.mxu0 %v1016
    %2212 = vmatpush1.bf16.msra.mxu0 %v1015
    %2213 = vmatprep.subr.bf16.mxu0 %v1080
    %2214 = vmatpush1.bf16.msra.mxu0 %v1079
    %2215 = vmatprep.subr.bf16.mxu0 0
    %2216 = vmatpush1.bf16.msra.mxu0 0
    %2217 = vmatprep.subr.bf16.mxu0 0
    %2218 = vmatpush1.bf16.msra.mxu0 0
    %2219 = vmatprep.subr.bf16.mxu0 0
    %2220 = vmatpush1.bf16.msra.mxu0 0
    %2221 = vmatprep.subr.bf16.mxu0 0
    %2222 = vmatpush1.bf16.msra.mxu0 0
    %2223 = vmatprep.subr.bf16.mxu0 0
    %2224 = vmatpush1.bf16.msra.mxu0 0
    %2225 = vmatprep.subr.bf16.mxu0 0
    %2226 = vmatpush1.bf16.msra.mxu0 0
    %2227 = vmatprep.subr.bf16.mxu0 0
    %2228 = vmatpush1.bf16.msra.mxu0 0
    %2229 = vmatprep.subr.bf16.mxu0 0
    %2230 = vmatpush1.bf16.msra.mxu0 0
    %2231 = vmatprep.subr.bf16.mxu0 0
    %2232 = vmatpush1.bf16.msra.mxu0 0
    %2233 = vmatprep.subr.bf16.mxu0 0
    %2234 = vmatpush1.bf16.msra.mxu0 0
    %2235 = vmatprep.subr.bf16.mxu0 0
    %2236 = vmatpush1.bf16.msra.mxu0 0
    %2237 = vmatprep.subr.bf16.mxu0 0
    %2238 = vmatpush1.bf16.msra.mxu0 0
    %2239 = vmatprep.subr.bf16.mxu0 0
    %2240 = vmatpush1.bf16.msra.mxu0 0
    %2241 = vmatprep.subr.bf16.mxu0 0
    %2242 = vmatpush1.bf16.msra.mxu0 0
    %2243 = vmatprep.mubr.bf16.mxu0 0
    %2244 = vmatmul.mubr.bf16.gmra.mrb[0].mxu0 %v1225
    %v2245 = vpop.f32.mrb[0].mxu0
    %v2246 = vadd.f32 0.0, %v2245
    %v2247 = vpop.f32.mrb[0].mxu0
    %v2248 = vadd.f32 0.0, %v2247
    %v2249 = vpop.f32.mrb[0].mxu0
    %v2250 = vpop.f32.mrb[0].mxu0
    %2251 = vdwg.mxu0
    %2252 = vmatprep.subr.bf16.mxu0 %v1018
    %2253 = vmatpush1.bf16.msra.mxu0 %v1017
    %2254 = vmatprep.subr.bf16.mxu0 %v1082
    %2255 = vmatpush1.bf16.msra.mxu0 %v1081
    %2256 = vmatprep.subr.bf16.mxu0 0
    %2257 = vmatpush1.bf16.msra.mxu0 0
    %2258 = vmatprep.subr.bf16.mxu0 0
    %2259 = vmatpush1.bf16.msra.mxu0 0
    %2260 = vmatprep.subr.bf16.mxu0 0
    %2261 = vmatpush1.bf16.msra.mxu0 0
    %2262 = vmatprep.subr.bf16.mxu0 0
    %2263 = vmatpush1.bf16.msra.mxu0 0
    %2264 = vmatprep.subr.bf16.mxu0 0
    %2265 = vmatpush1.bf16.msra.mxu0 0
    %2266 = vmatprep.subr.bf16.mxu0 0
    %2267 = vmatpush1.bf16.msra.mxu0 0
    %2268 = vmatprep.subr.bf16.mxu0 0
    %2269 = vmatpush1.bf16.msra.mxu0 0
    %2270 = vmatprep.subr.bf16.mxu0 0
    %2271 = vmatpush1.bf16.msra.mxu0 0
    %2272 = vmatprep.subr.bf16.mxu0 0
    %2273 = vmatpush1.bf16.msra.mxu0 0
    %2274 = vmatprep.subr.bf16.mxu0 0
    %2275 = vmatpush1.bf16.msra.mxu0 0
    %2276 = vmatprep.subr.bf16.mxu0 0
    %2277 = vmatpush1.bf16.msra.mxu0 0
    %2278 = vmatprep.subr.bf16.mxu0 0
    %2279 = vmatpush1.bf16.msra.mxu0 0
    %2280 = vmatprep.subr.bf16.mxu0 0
    %2281 = vmatpush1.bf16.msra.mxu0 0
    %2282 = vmatprep.subr.bf16.mxu0 0
    %2283 = vmatpush1.bf16.msra.mxu0 0
    %2284 = vmatprep.mubr.bf16.mxu0 0
    %2285 = vmatmul.mubr.bf16.gmra.mrb[0].mxu0 %v1225
    %v2286 = vpop.f32.mrb[0].mxu0
    %v2287 = vadd.f32 0.0, %v2286
    %v2288 = vpop.f32.mrb[0].mxu0
    %v2289 = vadd.f32 0.0, %v2288
    %v2290 = vpop.f32.mrb[0].mxu0
    %v2291 = vpop.f32.mrb[0].mxu0
    %2292 = vdwg.mxu0
    %2293 = vmatprep.subr.bf16.mxu0 %v1020
    %2294 = vmatpush1.bf16.msra.mxu0 %v1019
    %2295 = vmatprep.subr.bf16.mxu0 %v1084
    %2296 = vmatpush1.bf16.msra.mxu0 %v1083
    %2297 = vmatprep.subr.bf16.mxu0 0
    %2298 = vmatpush1.bf16.msra.mxu0 0
    %2299 = vmatprep.subr.bf16.mxu0 0
    %2300 = vmatpush1.bf16.msra.mxu0 0
    %2301 = vmatprep.subr.bf16.mxu0 0
    %2302 = vmatpush1.bf16.msra.mxu0 0
    %2303 = vmatprep.subr.bf16.mxu0 0
    %2304 = vmatpush1.bf16.msra.mxu0 0
    %2305 = vmatprep.subr.bf16.mxu0 0
    %2306 = vmatpush1.bf16.msra.mxu0 0
    %2307 = vmatprep.subr.bf16.mxu0 0
    %2308 = vmatpush1.bf16.msra.mxu0 0
    %2309 = vmatprep.subr.bf16.mxu0 0
    %2310 = vmatpush1.bf16.msra.mxu0 0
    %2311 = vmatprep.subr.bf16.mxu0 0
    %2312 = vmatpush1.bf16.msra.mxu0 0
    %2313 = vmatprep.subr.bf16.mxu0 0
    %2314 = vmatpush1.bf16.msra.mxu0 0
    %2315 = vmatprep.subr.bf16.mxu0 0
    %2316 = vmatpush1.bf16.msra.mxu0 0
    %2317 = vmatprep.subr.bf16.mxu0 0
    %2318 = vmatpush1.bf16.msra.mxu0 0
    %2319 = vmatprep.subr.bf16.mxu0 0
    %2320 = vmatpush1.bf16.msra.mxu0 0
    %2321 = vmatprep.subr.bf16.mxu0 0
    %2322 = vmatpush1.bf16.msra.mxu0 0
    %2323 = vmatprep.subr.bf16.mxu0 0
    %2324 = vmatpush1.bf16.msra.mxu0 0
    %2325 = vmatprep.mubr.bf16.mxu0 0
    %2326 = vmatmul.mubr.bf16.gmra.mrb[0].mxu0 %v1225
    %v2327 = vpop.f32.mrb[0].mxu0
    %v2328 = vadd.f32 0.0, %v2327
    %v2329 = vpop.f32.mrb[0].mxu0
    %v2330 = vadd.f32 0.0, %v2329
    %v2331 = vpop.f32.mrb[0].mxu0
    %v2332 = vpop.f32.mrb[0].mxu0
    %2333 = vdwg.mxu0
    %2334 = vmatprep.subr.bf16.mxu0 %v1022
    %2335 = vmatpush1.bf16.msra.mxu0 %v1021
    %2336 = vmatprep.subr.bf16.mxu0 %v1086
    %2337 = vmatpush1.bf16.msra.mxu0 %v1085
    %2338 = vmatprep.subr.bf16.mxu0 0
    %2339 = vmatpush1.bf16.msra.mxu0 0
    %2340 = vmatprep.subr.bf16.mxu0 0
    %2341 = vmatpush1.bf16.msra.mxu0 0
    %2342 = vmatprep.subr.bf16.mxu0 0
    %2343 = vmatpush1.bf16.msra.mxu0 0
    %2344 = vmatprep.subr.bf16.mxu0 0
    %2345 = vmatpush1.bf16.msra.mxu0 0
    %2346 = vmatprep.subr.bf16.mxu0 0
    %2347 = vmatpush1.bf16.msra.mxu0 0
    %2348 = vmatprep.subr.bf16.mxu0 0
    %2349 = vmatpush1.bf16.msra.mxu0 0
    %2350 = vmatprep.subr.bf16.mxu0 0
    %2351 = vmatpush1.bf16.msra.mxu0 0
    %2352 = vmatprep.subr.bf16.mxu0 0
    %2353 = vmatpush1.bf16.msra.mxu0 0
    %2354 = vmatprep.subr.bf16.mxu0 0
    %2355 = vmatpush1.bf16.msra.mxu0 0
    %2356 = vmatprep.subr.bf16.mxu0 0
    %2357 = vmatpush1.bf16.msra.mxu0 0
    %2358 = vmatprep.subr.bf16.mxu0 0
    %2359 = vmatpush1.bf16.msra.mxu0 0
    %2360 = vmatprep.subr.bf16.mxu0 0
    %2361 = vmatpush1.bf16.msra.mxu0 0
    %2362 = vmatprep.subr.bf16.mxu0 0
    %2363 = vmatpush1.bf16.msra.mxu0 0
    %2364 = vmatprep.subr.bf16.mxu0 0
    %2365 = vmatpush1.bf16.msra.mxu0 0
    %2366 = vmatprep.mubr.bf16.mxu0 0
    %2367 = vmatmul.mubr.bf16.gmra.mrb[0].mxu0 %v1225
    %v2368 = vpop.f32.mrb[0].mxu0
    %v2369 = vadd.f32 0.0, %v2368
    %v2370 = vpop.f32.mrb[0].mxu0
    %v2371 = vadd.f32 0.0, %v2370
    %v2372 = vpop.f32.mrb[0].mxu0
    %v2373 = vpop.f32.mrb[0].mxu0
    %2374 = vdwg.mxu0
    %2375 = vmatprep.subr.bf16.mxu0 %v1024
    %2376 = vmatpush1.bf16.msra.mxu0 %v1023
    %2377 = vmatprep.subr.bf16.mxu0 %v1088
    %2378 = vmatpush1.bf16.msra.mxu0 %v1087
    %2379 = vmatprep.subr.bf16.mxu0 0
    %2380 = vmatpush1.bf16.msra.mxu0 0
    %2381 = vmatprep.subr.bf16.mxu0 0
    %2382 = vmatpush1.bf16.msra.mxu0 0
    %2383 = vmatprep.subr.bf16.mxu0 0
    %2384 = vmatpush1.bf16.msra.mxu0 0
    %2385 = vmatprep.subr.bf16.mxu0 0
    %2386 = vmatpush1.bf16.msra.mxu0 0
    %2387 = vmatprep.subr.bf16.mxu0 0
    %2388 = vmatpush1.bf16.msra.mxu0 0
    %2389 = vmatprep.subr.bf16.mxu0 0
    %2390 = vmatpush1.bf16.msra.mxu0 0
    %2391 = vmatprep.subr.bf16.mxu0 0
    %2392 = vmatpush1.bf16.msra.mxu0 0
    %2393 = vmatprep.subr.bf16.mxu0 0
    %2394 = vmatpush1.bf16.msra.mxu0 0
    %2395 = vmatprep.subr.bf16.mxu0 0
    %2396 = vmatpush1.bf16.msra.mxu0 0
    %2397 = vmatprep.subr.bf16.mxu0 0
    %2398 = vmatpush1.bf16.msra.mxu0 0
    %2399 = vmatprep.subr.bf16.mxu0 0
    %2400 = vmatpush1.bf16.msra.mxu0 0
    %2401 = vmatprep.subr.bf16.mxu0 0
    %2402 = vmatpush1.bf16.msra.mxu0 0
    %2403 = vmatprep.subr.bf16.mxu0 0
    %2404 = vmatpush1.bf16.msra.mxu0 0
    %2405 = vmatprep.subr.bf16.mxu0 0
    %2406 = vmatpush1.bf16.msra.mxu0 0
    %2407 = vmatprep.mubr.bf16.mxu0 0
    %2408 = vmatmul.mubr.bf16.gmra.mrb[0].mxu0 %v1225
    %v2409 = vpop.f32.mrb[0].mxu0
    %v2410 = vadd.f32 0.0, %v2409
    %v2411 = vpop.f32.mrb[0].mxu0
    %v2412 = vadd.f32 0.0, %v2411
    %v2413 = vpop.f32.mrb[0].mxu0
    %v2414 = vpop.f32.mrb[0].mxu0
    %2415 = vdwg.mxu0
    %2416 = vmatprep.subr.bf16.mxu0 %v1026
    %2417 = vmatpush1.bf16.msra.mxu0 %v1025
    %2418 = vmatprep.subr.bf16.mxu0 %v1090
    %2419 = vmatpush1.bf16.msra.mxu0 %v1089
    %2420 = vmatprep.subr.bf16.mxu0 0
    %2421 = vmatpush1.bf16.msra.mxu0 0
    %2422 = vmatprep.subr.bf16.mxu0 0
    %2423 = vmatpush1.bf16.msra.mxu0 0
    %2424 = vmatprep.subr.bf16.mxu0 0
    %2425 = vmatpush1.bf16.msra.mxu0 0
    %2426 = vmatprep.subr.bf16.mxu0 0
    %2427 = vmatpush1.bf16.msra.mxu0 0
    %2428 = vmatprep.subr.bf16.mxu0 0
    %2429 = vmatpush1.bf16.msra.mxu0 0
    %2430 = vmatprep.subr.bf16.mxu0 0
    %2431 = vmatpush1.bf16.msra.mxu0 0
    %2432 = vmatprep.subr.bf16.mxu0 0
    %2433 = vmatpush1.bf16.msra.mxu0 0
    %2434 = vmatprep.subr.bf16.mxu0 0
    %2435 = vmatpush1.bf16.msra.mxu0 0
    %2436 = vmatprep.subr.bf16.mxu0 0
    %2437 = vmatpush1.bf16.msra.mxu0 0
    %2438 = vmatprep.subr.bf16.mxu0 0
    %2439 = vmatpush1.bf16.msra.mxu0 0
    %2440 = vmatprep.subr.bf16.mxu0 0
    %2441 = vmatpush1.bf16.msra.mxu0 0
    %2442 = vmatprep.subr.bf16.mxu0 0
    %2443 = vmatpush1.bf16.msra.mxu0 0
    %2444 = vmatprep.subr.bf16.mxu0 0
    %2445 = vmatpush1.bf16.msra.mxu0 0
    %2446 = vmatprep.subr.bf16.mxu0 0
    %2447 = vmatpush1.bf16.msra.mxu0 0
    %2448 = vmatprep.mubr.bf16.mxu0 0
    %2449 = vmatmul.mubr.bf16.gmra.mrb[0].mxu0 %v1225
    %v2450 = vpop.f32.mrb[0].mxu0
    %v2451 = vadd.f32 0.0, %v2450
    %v2452 = vpop.f32.mrb[0].mxu0
    %v2453 = vadd.f32 0.0, %v2452
    %v2454 = vpop.f32.mrb[0].mxu0
    %v2455 = vpop.f32.mrb[0].mxu0
    %2456 = vdwg.mxu0
    %2457 = vmatprep.subr.bf16.mxu0 %v1028
    %2458 = vmatpush1.bf16.msra.mxu0 %v1027
    %2459 = vmatprep.subr.bf16.mxu0 %v1092
    %2460 = vmatpush1.bf16.msra.mxu0 %v1091
    %2461 = vmatprep.subr.bf16.mxu0 0
    %2462 = vmatpush1.bf16.msra.mxu0 0
    %2463 = vmatprep.subr.bf16.mxu0 0
    %2464 = vmatpush1.bf16.msra.mxu0 0
    %2465 = vmatprep.subr.bf16.mxu0 0
    %2466 = vmatpush1.bf16.msra.mxu0 0
    %2467 = vmatprep.subr.bf16.mxu0 0
    %2468 = vmatpush1.bf16.msra.mxu0 0
    %2469 = vmatprep.subr.bf16.mxu0 0
    %2470 = vmatpush1.bf16.msra.mxu0 0
    %2471 = vmatprep.subr.bf16.mxu0 0
    %2472 = vmatpush1.bf16.msra.mxu0 0
    %2473 = vmatprep.subr.bf16.mxu0 0
    %2474 = vmatpush1.bf16.msra.mxu0 0
    %2475 = vmatprep.subr.bf16.mxu0 0
    %2476 = vmatpush1.bf16.msra.mxu0 0
    %2477 = vmatprep.subr.bf16.mxu0 0
    %2478 = vmatpush1.bf16.msra.mxu0 0
    %2479 = vmatprep.subr.bf16.mxu0 0
    %2480 = vmatpush1.bf16.msra.mxu0 0
    %2481 = vmatprep.subr.bf16.mxu0 0
    %2482 = vmatpush1.bf16.msra.mxu0 0
    %2483 = vmatprep.subr.bf16.mxu0 0
    %2484 = vmatpush1.bf16.msra.mxu0 0
    %2485 = vmatprep.subr.bf16.mxu0 0
    %2486 = vmatpush1.bf16.msra.mxu0 0
    %2487 = vmatprep.subr.bf16.mxu0 0
    %2488 = vmatpush1.bf16.msra.mxu0 0
    %2489 = vmatprep.mubr.bf16.mxu0 0
    %2490 = vmatmul.mubr.bf16.gmra.mrb[0].mxu0 %v1225
    %v2491 = vpop.f32.mrb[0].mxu0
    %v2492 = vadd.f32 0.0, %v2491
    %v2493 = vpop.f32.mrb[0].mxu0
    %v2494 = vadd.f32 0.0, %v2493
    %v2495 = vpop.f32.mrb[0].mxu0
    %v2496 = vpop.f32.mrb[0].mxu0
    %2497 = vdwg.mxu0
    %2498 = vmatprep.subr.bf16.mxu0 %v1030
    %2499 = vmatpush1.bf16.msra.mxu0 %v1029
    %2500 = vmatprep.subr.bf16.mxu0 %v1094
    %2501 = vmatpush1.bf16.msra.mxu0 %v1093
    %2502 = vmatprep.subr.bf16.mxu0 0
    %2503 = vmatpush1.bf16.msra.mxu0 0
    %2504 = vmatprep.subr.bf16.mxu0 0
    %2505 = vmatpush1.bf16.msra.mxu0 0
    %2506 = vmatprep.subr.bf16.mxu0 0
    %2507 = vmatpush1.bf16.msra.mxu0 0
    %2508 = vmatprep.subr.bf16.mxu0 0
    %2509 = vmatpush1.bf16.msra.mxu0 0
    %2510 = vmatprep.subr.bf16.mxu0 0
    %2511 = vmatpush1.bf16.msra.mxu0 0
    %2512 = vmatprep.subr.bf16.mxu0 0
    %2513 = vmatpush1.bf16.msra.mxu0 0
    %2514 = vmatprep.subr.bf16.mxu0 0
    %2515 = vmatpush1.bf16.msra.mxu0 0
    %2516 = vmatprep.subr.bf16.mxu0 0
    %2517 = vmatpush1.bf16.msra.mxu0 0
    %2518 = vmatprep.subr.bf16.mxu0 0
    %2519 = vmatpush1.bf16.msra.mxu0 0
    %2520 = vmatprep.subr.bf16.mxu0 0
    %2521 = vmatpush1.bf16.msra.mxu0 0
    %2522 = vmatprep.subr.bf16.mxu0 0
    %2523 = vmatpush1.bf16.msra.mxu0 0
    %2524 = vmatprep.subr.bf16.mxu0 0
    %2525 = vmatpush1.bf16.msra.mxu0 0
    %2526 = vmatprep.subr.bf16.mxu0 0
    %2527 = vmatpush1.bf16.msra.mxu0 0
    %2528 = vmatprep.subr.bf16.mxu0 0
    %2529 = vmatpush1.bf16.msra.mxu0 0
    %2530 = vmatprep.mubr.bf16.mxu0 0
    %2531 = vmatmul.mubr.bf16.gmra.mrb[0].mxu0 %v1225
    %v2532 = vpop.f32.mrb[0].mxu0
    %v2533 = vadd.f32 0.0, %v2532
    %v2534 = vpop.f32.mrb[0].mxu0
    %v2535 = vadd.f32 0.0, %v2534
    %v2536 = vpop.f32.mrb[0].mxu0
    %v2537 = vpop.f32.mrb[0].mxu0
    %2538 = vdwg.mxu0
    %2540 = vset.pattern.permute.xlu0 0
    %2541 = vperm.xlu0 %2540, %v346
    %v2542 = vpop.permute.xlu0 %2541
    %v2544 = vmul.f32 %v2542, %v1262
    %v2545 = vmul.f32 %v2542, %v1264
    %v2546 = vadd.f32 %v446, %v2544
    %v2547 = vadd.f32 %v448, %v2545
    %2548 = vset.pattern.permute.xlu0 1
    %2549 = vperm.xlu0 %2548, %v346
    %v2550 = vpop.permute.xlu0 %2549
    %v2552 = vmul.f32 %v2550, %v1303
    %v2553 = vmul.f32 %v2550, %v1305
    %v2554 = vadd.f32 %v2552, 0.0
    %v2555 = vadd.f32 %v2553, 0.0
    %2556 = vset.pattern.permute.xlu0 2
    %2557 = vperm.xlu0 %2556, %v346
    %v2558 = vpop.permute.xlu0 %2557
    %v2560 = vmul.f32 %v2558, %v1344
    %v2561 = vmul.f32 %v2558, %v1346
    %v2562 = vadd.f32 %v2560, 0.0
    %v2563 = vadd.f32 %v2561, 0.0
    %2564 = vset.pattern.permute.xlu0 3
    %2565 = vperm.xlu0 %2564, %v346
    %v2566 = vpop.permute.xlu0 %2565
    %v2568 = vmul.f32 %v2566, %v1385
    %v2569 = vmul.f32 %v2566, %v1387
    %v2570 = vadd.f32 %v2568, 0.0
    %v2571 = vadd.f32 %v2569, 0.0
    %2572 = vset.pattern.permute.xlu0 4
    %2573 = vperm.xlu0 %2572, %v346
    %v2574 = vpop.permute.xlu0 %2573
    %v2576 = vmul.f32 %v2574, %v1426
    %v2577 = vmul.f32 %v2574, %v1428
    %v2578 = vadd.f32 %v2546, %v2576
    %v2579 = vadd.f32 %v2547, %v2577
    %2580 = vset.pattern.permute.xlu0 5
    %2581 = vperm.xlu0 %2580, %v346
    %v2582 = vpop.permute.xlu0 %2581
    %v2584 = vmul.f32 %v2582, %v1467
    %v2585 = vmul.f32 %v2582, %v1469
    %v2586 = vadd.f32 %v2554, %v2584
    %v2587 = vadd.f32 %v2555, %v2585
    %2588 = vset.pattern.permute.xlu0 6
    %2589 = vperm.xlu0 %2588, %v346
    %v2590 = vpop.permute.xlu0 %2589
    %v2592 = vmul.f32 %v2590, %v1508
    %v2593 = vmul.f32 %v2590, %v1510
    %v2594 = vadd.f32 %v2562, %v2592
    %v2595 = vadd.f32 %v2563, %v2593
    %2596 = vset.pattern.permute.xlu0 7
    %2597 = vperm.xlu0 %2596, %v346
    %v2598 = vpop.permute.xlu0 %2597
    %v2600 = vmul.f32 %v2598, %v1549
    %v2601 = vmul.f32 %v2598, %v1551
    %v2602 = vadd.f32 %v2570, %v2600
    %v2603 = vadd.f32 %v2571, %v2601
    %2604 = vset.pattern.permute.xlu0 8
    %2605 = vperm.xlu0 %2604, %v346
    %v2606 = vpop.permute.xlu0 %2605
    %v2608 = vmul.f32 %v2606, %v1590
    %v2609 = vmul.f32 %v2606, %v1592
    %v2610 = vadd.f32 %v2578, %v2608
    %v2611 = vadd.f32 %v2579, %v2609
    %2612 = vset.pattern.permute.xlu0 9
    %2613 = vperm.xlu0 %2612, %v346
    %v2614 = vpop.permute.xlu0 %2613
    %v2616 = vmul.f32 %v2614, %v1631
    %v2617 = vmul.f32 %v2614, %v1633
    %v2618 = vadd.f32 %v2586, %v2616
    %v2619 = vadd.f32 %v2587, %v2617
    %2620 = vset.pattern.permute.xlu0 10
    %2621 = vperm.xlu0 %2620, %v346
    %v2622 = vpop.permute.xlu0 %2621
    %v2624 = vmul.f32 %v2622, %v1672
    %v2625 = vmul.f32 %v2622, %v1674
    %v2626 = vadd.f32 %v2594, %v2624
    %v2627 = vadd.f32 %v2595, %v2625
    %2628 = vset.pattern.permute.xlu0 11
    %2629 = vperm.xlu0 %2628, %v346
    %v2630 = vpop.permute.xlu0 %2629
    %v2632 = vmul.f32 %v2630, %v1713
    %v2633 = vmul.f32 %v2630, %v1715
    %v2634 = vadd.f32 %v2602, %v2632
    %v2635 = vadd.f32 %v2603, %v2633
    %2636 = vset.pattern.permute.xlu0 12
    %2637 = vperm.xlu0 %2636, %v346
    %v2638 = vpop.permute.xlu0 %2637
    %v2640 = vmul.f32 %v2638, %v1754
    %v2641 = vmul.f32 %v2638, %v1756
    %v2642 = vadd.f32 %v2610, %v2640
    %v2643 = vadd.f32 %v2611, %v2641
    %2644 = vset.pattern.permute.xlu0 13
    %2645 = vperm.xlu0 %2644, %v346
    %v2646 = vpop.permute.xlu0 %2645
    %v2648 = vmul.f32 %v2646, %v1795
    %v2649 = vmul.f32 %v2646, %v1797
    %v2650 = vadd.f32 %v2618, %v2648
    %v2651 = vadd.f32 %v2619, %v2649
    %2652 = vset.pattern.permute.xlu0 14
    %2653 = vperm.xlu0 %2652, %v346
    %v2654 = vpop.permute.xlu0 %2653
    %v2656 = vmul.f32 %v2654, %v1836
    %v2657 = vmul.f32 %v2654, %v1838
    %v2658 = vadd.f32 %v2626, %v2656
    %v2659 = vadd.f32 %v2627, %v2657
    %2660 = vset.pattern.permute.xlu0 15
    %2661 = vperm.xlu0 %2660, %v346
    %v2662 = vpop.permute.xlu0 %2661
    %v2664 = vmul.f32 %v2662, %v1877
    %v2665 = vmul.f32 %v2662, %v1879
    %v2666 = vadd.f32 %v2634, %v2664
    %v2667 = vadd.f32 %v2635, %v2665
    %2668 = vset.pattern.permute.xlu0 16
    %2669 = vperm.xlu0 %2668, %v346
    %v2670 = vpop.permute.xlu0 %2669
    %v2672 = vmul.f32 %v2670, %v1918
    %v2673 = vmul.f32 %v2670, %v1920
    %v2674 = vadd.f32 %v2642, %v2672
    %v2675 = vadd.f32 %v2643, %v2673
    %2676 = vset.pattern.permute.xlu0 17
    %2677 = vperm.xlu0 %2676, %v346
    %v2678 = vpop.permute.xlu0 %2677
    %v2680 = vmul.f32 %v2678, %v1959
    %v2681 = vmul.f32 %v2678, %v1961
    %v2682 = vadd.f32 %v2650, %v2680
    %v2683 = vadd.f32 %v2651, %v2681
    %2684 = vset.pattern.permute.xlu0 18
    %2685 = vperm.xlu0 %2684, %v346
    %v2686 = vpop.permute.xlu0 %2685
    %v2688 = vmul.f32 %v2686, %v2000
    %v2689 = vmul.f32 %v2686, %v2002
    %v2690 = vadd.f32 %v2658, %v2688
    %v2691 = vadd.f32 %v2659, %v2689
    %2692 = vset.pattern.permute.xlu0 19
    %2693 = vperm.xlu0 %2692, %v346
    %v2694 = vpop.permute.xlu0 %2693
    %v2696 = vmul.f32 %v2694, %v2041
    %v2697 = vmul.f32 %v2694, %v2043
    %v2698 = vadd.f32 %v2666, %v2696
    %v2699 = vadd.f32 %v2667, %v2697
    %2700 = vset.pattern.permute.xlu0 20
    %2701 = vperm.xlu0 %2700, %v346
    %v2702 = vpop.permute.xlu0 %2701
    %v2704 = vmul.f32 %v2702, %v2082
    %v2705 = vmul.f32 %v2702, %v2084
    %v2706 = vadd.f32 %v2674, %v2704
    %v2707 = vadd.f32 %v2675, %v2705
    %2708 = vset.pattern.permute.xlu0 21
    %2709 = vperm.xlu0 %2708, %v346
    %v2710 = vpop.permute.xlu0 %2709
    %v2712 = vmul.f32 %v2710, %v2123
    %v2713 = vmul.f32 %v2710, %v2125
    %v2714 = vadd.f32 %v2682, %v2712
    %v2715 = vadd.f32 %v2683, %v2713
    %2716 = vset.pattern.permute.xlu0 22
    %2717 = vperm.xlu0 %2716, %v346
    %v2718 = vpop.permute.xlu0 %2717
    %v2720 = vmul.f32 %v2718, %v2164
    %v2721 = vmul.f32 %v2718, %v2166
    %v2722 = vadd.f32 %v2690, %v2720
    %v2723 = vadd.f32 %v2691, %v2721
    %2724 = vset.pattern.permute.xlu0 23
    %2725 = vperm.xlu0 %2724, %v346
    %v2726 = vpop.permute.xlu0 %2725
    %v2728 = vmul.f32 %v2726, %v2205
    %v2729 = vmul.f32 %v2726, %v2207
    %v2730 = vadd.f32 %v2698, %v2728
    %v2731 = vadd.f32 %v2699, %v2729
    %2732 = vset.pattern.permute.xlu0 24
    %2733 = vperm.xlu0 %2732, %v346
    %v2734 = vpop.permute.xlu0 %2733
    %v2736 = vmul.f32 %v2734, %v2246
    %v2737 = vmul.f32 %v2734, %v2248
    %v2738 = vadd.f32 %v2706, %v2736
    %v2739 = vadd.f32 %v2707, %v2737
    %2740 = vset.pattern.permute.xlu0 25
    %2741 = vperm.xlu0 %2740, %v346
    %v2742 = vpop.permute.xlu0 %2741
    %v2744 = vmul.f32 %v2742, %v2287
    %v2745 = vmul.f32 %v2742, %v2289
    %v2746 = vadd.f32 %v2714, %v2744
    %v2747 = vadd.f32 %v2715, %v2745
    %2748 = vset.pattern.permute.xlu0 26
    %2749 = vperm.xlu0 %2748, %v346
    %v2750 = vpop.permute.xlu0 %2749
    %v2752 = vmul.f32 %v2750, %v2328
    %v2753 = vmul.f32 %v2750, %v2330
    %v2754 = vadd.f32 %v2722, %v2752
    %v2755 = vadd.f32 %v2723, %v2753
    %2756 = vset.pattern.permute.xlu0 27
    %2757 = vperm.xlu0 %2756, %v346
    %v2758 = vpop.permute.xlu0 %2757
    %v2760 = vmul.f32 %v2758, %v2369
    %v2761 = vmul.f32 %v2758, %v2371
    %v2762 = vadd.f32 %v2730, %v2760
    %v2763 = vadd.f32 %v2731, %v2761
    %2764 = vset.pattern.permute.xlu0 28
    %2765 = vperm.xlu0 %2764, %v346
    %v2766 = vpop.permute.xlu0 %2765
    %v2768 = vmul.f32 %v2766, %v2410
    %v2769 = vmul.f32 %v2766, %v2412
    %v2770 = vadd.f32 %v2738, %v2768
    %v2771 = vadd.f32 %v2739, %v2769
    %2772 = vset.pattern.permute.xlu0 29
    %2773 = vperm.xlu0 %2772, %v346
    %v2774 = vpop.permute.xlu0 %2773
    %v2776 = vmul.f32 %v2774, %v2451
    %v2777 = vmul.f32 %v2774, %v2453
    %v2778 = vadd.f32 %v2746, %v2776
    %v2779 = vadd.f32 %v2747, %v2777
    %2780 = vset.pattern.permute.xlu0 30
    %2781 = vperm.xlu0 %2780, %v346
    %v2782 = vpop.permute.xlu0 %2781
    %v2784 = vmul.f32 %v2782, %v2492
    %v2785 = vmul.f32 %v2782, %v2494
    %v2786 = vadd.f32 %v2754, %v2784
    %v2787 = vadd.f32 %v2755, %v2785
    %2788 = vset.pattern.permute.xlu0 31
    %2789 = vperm.xlu0 %2788, %v346
    %v2790 = vpop.permute.xlu0 %2789
    %v2792 = vmul.f32 %v2790, %v2533
    %v2793 = vmul.f32 %v2790, %v2535
    %v2794 = vadd.f32 %v2762, %v2792
    %v2795 = vadd.f32 %v2763, %v2793
    %v2796 = vadd.f32 %v2770, %v2778
    %v2797 = vadd.f32 %v2771, %v2779
    %v2798 = vadd.f32 %v2796, %v2786
    %v2799 = vadd.f32 %v2797, %v2787
    %v2800 = vadd.f32 %v2798, %v2794
    %v2801 = vadd.f32 %v2799, %v2795
    %v2802 = vmax.f32 %v2800, 0.0
    %v2803 = vmax.f32 %v2801, 0.0
    %v2804 = vpack.c.bf16 %v2802, %v2802
    %v2805 = vpack.c.bf16 %v2803, %v2803
    %v2806 = vld [vmem:[#allocation16] sm:$0xf]
    %v2807 = vld [vmem:[#allocation16 + $0x4] sm:$0xf]
    %v2808 = vld [vmem:[#allocation16 + $0x8] sm:$0xf]
    %v2809 = vld [vmem:[#allocation16 + $0xc] sm:$0xf]
    %v2810 = vld [vmem:[#allocation16 + $0x10] sm:$0xf]
    %v2811 = vld [vmem:[#allocation16 + $0x14] sm:$0xf]
    %v2812 = vld [vmem:[#allocation16 + $0x18] sm:$0xf]
    %v2813 = vld [vmem:[#allocation16 + $0x1c] sm:$0xf]
    %v2814 = vld [vmem:[#allocation16 + $0x20] sm:$0xf]
    %v2815 = vld [vmem:[#allocation16 + $0x24] sm:$0xf]
    %v2816 = vld [vmem:[#allocation16 + $0x28] sm:$0xf]
    %v2817 = vld [vmem:[#allocation16 + $0x2c] sm:$0xf]
    %v2818 = vld [vmem:[#allocation16 + $0x30] sm:$0xf]
    %v2819 = vld [vmem:[#allocation16 + $0x34] sm:$0xf]
    %v2820 = vld [vmem:[#allocation16 + $0x38] sm:$0xf]
    %v2821 = vld [vmem:[#allocation16 + $0x3c] sm:$0xf]
    %v2822 = vld [vmem:[#allocation16 + $0x40] sm:$0xf]
    %v2823 = vld [vmem:[#allocation16 + $0x44] sm:$0xf]
    %v2824 = vld [vmem:[#allocation16 + $0x48] sm:$0xf]
    %v2825 = vld [vmem:[#allocation16 + $0x4c] sm:$0xf]
    %v2826 = vld [vmem:[#allocation16 + $0x50] sm:$0xf]
    %v2827 = vld [vmem:[#allocation16 + $0x54] sm:$0xf]
    %v2828 = vld [vmem:[#allocation16 + $0x58] sm:$0xf]
    %v2829 = vld [vmem:[#allocation16 + $0x5c] sm:$0xf]
    %v2830 = vld [vmem:[#allocation16 + $0x60] sm:$0xf]
    %v2831 = vld [vmem:[#allocation16 + $0x64] sm:$0xf]
    %v2832 = vld [vmem:[#allocation16 + $0x68] sm:$0xf]
    %v2833 = vld [vmem:[#allocation16 + $0x6c] sm:$0xf]
    %v2834 = vld [vmem:[#allocation16 + $0x70] sm:$0xf]
    %v2835 = vld [vmem:[#allocation16 + $0x74] sm:$0xf]
    %v2836 = vld [vmem:[#allocation16 + $0x78] sm:$0xf]
    %v2837 = vld [vmem:[#allocation16 + $0x7c] sm:$0xf]
    %v2838 = vld [vmem:[#allocation17] sm:$0x1]
    %v2840 = vlaneseq
    %v2841 = vshrl.u32 %v2840, 7
    %v2842 = vsub.s32 0, %v2841
    %v2843 = vrot.slane %v2838, %v2842
    %v2877 = vunpack.c.l.b16 %v2806
    %v2878 = vunpack.c.l.b16 %v2807
    %v2879 = vunpack.c.l.b16 %v2808
    %v2880 = vunpack.c.l.b16 %v2809
    %v2881 = vunpack.c.l.b16 %v2810
    %v2882 = vunpack.c.l.b16 %v2811
    %v2883 = vunpack.c.l.b16 %v2812
    %v2884 = vunpack.c.l.b16 %v2813
    %v2885 = vunpack.c.l.b16 %v2814
    %v2886 = vunpack.c.l.b16 %v2815
    %v2887 = vunpack.c.l.b16 %v2816
    %v2888 = vunpack.c.l.b16 %v2817
    %v2889 = vunpack.c.l.b16 %v2818
    %v2890 = vunpack.c.l.b16 %v2819
    %v2891 = vunpack.c.l.b16 %v2820
    %v2892 = vunpack.c.l.b16 %v2821
    %v2893 = vunpack.c.l.b16 %v2822
    %v2894 = vunpack.c.l.b16 %v2823
    %v2895 = vunpack.c.l.b16 %v2824
    %v2896 = vunpack.c.l.b16 %v2825
    %v2897 = vunpack.c.l.b16 %v2826
    %v2898 = vunpack.c.l.b16 %v2827
    %v2899 = vunpack.c.l.b16 %v2828
    %v2900 = vunpack.c.l.b16 %v2829
    %v2901 = vunpack.c.l.b16 %v2830
    %v2902 = vunpack.c.l.b16 %v2831
    %v2903 = vunpack.c.l.b16 %v2832
    %v2904 = vunpack.c.l.b16 %v2833
    %v2905 = vunpack.c.l.b16 %v2834
    %v2906 = vunpack.c.l.b16 %v2835
    %v2907 = vunpack.c.l.b16 %v2836
    %v2908 = vunpack.c.l.b16 %v2837
    %v2909 = vpack.c.b16 %v2878, %v2877
    %v2910 = vpack.c.b16 %v2880, %v2879
    %v2911 = vpack.c.b16 %v2882, %v2881
    %v2912 = vpack.c.b16 %v2884, %v2883
    %v2913 = vpack.c.b16 %v2886, %v2885
    %v2914 = vpack.c.b16 %v2888, %v2887
    %v2915 = vpack.c.b16 %v2890, %v2889
    %v2916 = vpack.c.b16 %v2892, %v2891
    %v2917 = vpack.c.b16 %v2894, %v2893
    %v2918 = vpack.c.b16 %v2896, %v2895
    %v2919 = vpack.c.b16 %v2898, %v2897
    %v2920 = vpack.c.b16 %v2900, %v2899
    %v2921 = vpack.c.b16 %v2902, %v2901
    %v2922 = vpack.c.b16 %v2904, %v2903
    %v2923 = vpack.c.b16 %v2906, %v2905
    %v2924 = vpack.c.b16 %v2908, %v2907
    %2941 = vmatprep.subr.bf16.mxu0 0
    %2942 = vmatpush1.bf16.msra.mxu0 %v2909
    %2943 = vmatprep.subr.bf16.mxu0 0
    %2944 = vmatpush1.bf16.msra.mxu0 %v2910
    %2945 = vmatprep.subr.bf16.mxu0 0
    %2946 = vmatpush1.bf16.msra.mxu0 %v2911
    %2947 = vmatprep.subr.bf16.mxu0 0
    %2948 = vmatpush1.bf16.msra.mxu0 %v2912
    %2949 = vmatprep.subr.bf16.mxu0 0
    %2950 = vmatpush1.bf16.msra.mxu0 %v2913
    %2951 = vmatprep.subr.bf16.mxu0 0
    %2952 = vmatpush1.bf16.msra.mxu0 %v2914
    %2953 = vmatprep.subr.bf16.mxu0 0
    %2954 = vmatpush1.bf16.msra.mxu0 %v2915
    %2955 = vmatprep.subr.bf16.mxu0 0
    %2956 = vmatpush1.bf16.msra.mxu0 %v2916
    %2957 = vmatprep.subr.bf16.mxu0 0
    %2958 = vmatpush1.bf16.msra.mxu0 %v2917
    %2959 = vmatprep.subr.bf16.mxu0 0
    %2960 = vmatpush1.bf16.msra.mxu0 %v2918
    %2961 = vmatprep.subr.bf16.mxu0 0
    %2962 = vmatpush1.bf16.msra.mxu0 %v2919
    %2963 = vmatprep.subr.bf16.mxu0 0
    %2964 = vmatpush1.bf16.msra.mxu0 %v2920
    %2965 = vmatprep.subr.bf16.mxu0 0
    %2966 = vmatpush1.bf16.msra.mxu0 %v2921
    %2967 = vmatprep.subr.bf16.mxu0 0
    %2968 = vmatpush1.bf16.msra.mxu0 %v2922
    %2969 = vmatprep.subr.bf16.mxu0 0
    %2970 = vmatpush1.bf16.msra.mxu0 %v2923
    %2971 = vmatprep.subr.bf16.mxu0 0
    %2972 = vmatpush1.bf16.msra.mxu0 %v2924
    %2973 = vmatprep.mubr.bf16.mxu0 %v2805
    %2974 = vmatmul.mubr.bf16.gmra.mrb[0].mxu0 %v2804
    %v2975 = vpop.f32.mrb[0].mxu0
    %v2976 = vadd.f32 %v2843, %v2975
    %v2977 = vpop.f32.mrb[0].mxu0
    %v2978 = vpop.f32.mrb[0].mxu0
    %v2979 = vpop.f32.mrb[0].mxu0
    %2980 = vdwg.mxu0
    %v2981 = vmax.f32 %v2976, 0.0
    %2982 = vst [vmem:[#allocation19] sm:$0xff] %v2981
    // Predicated region
    $region82: #{tpu_custom_call.1} parent=1 // pred_check
      _
    $region83: #{tpu_custom_call.1} parent=1 // pred_check_branch
      %2984 = sbr.rel (0) target = $region85
    $region84: #{tpu_custom_call.1} parent=1 // pred_region
      %s2986 = ssub.s32 128, 128
      %2987 = vsyncadd [#allocation4], %s2986
      %s2989 = sshll.u32 [#allocation19], 4
      %s2990 = int_to_ptr.vmem [resolvable:$true] %s2989
      %2992 = dma.vmem_to_hbm [thread:$0]  %s2990, 128, %s10, [#allocation4]
    $region85: #{tpu_custom_call.1} parent=1 // pred_fallthru
      _
    // Predicated region
    $region86: #{tpu_custom_call.1} parent=1 // pred_check
      _
    $region87: #{tpu_custom_call.1} parent=1 // pred_check_branch
      %2994 = sbr.rel (0) target = $region89
    $region88: #{tpu_custom_call.1} parent=1 // pred_region
      %2995 = dma.done [#allocation4], 128
    $region89: #{tpu_custom_call.1} parent=1 // pred_fallthru
      _
    %2996 = vsyncpa [#allocation3], 1
    %2997 = vsyncpa [#allocation6], 1
    %2998 = vsyncpa [#allocation9], 1
    %2999 = vsyncpa [#allocation12], 1
    %3000 = vsyncpa [#allocation15], 1
    %3001 = vsyncpa [#allocation18], 1
    %3002 = vsyncpa [#allocation4], 1

</llo_original>
